<compile_context>
chip_gen: v7x
topology: tpu7x:2x2x1
jax: 0.10.0
libtpu: 0.0.40
codegen_flags: <defaults>
</compile_context>

<pallas_src>
import numpy as np
import jax
import jax.numpy as jnp
from jax import lax
from jax.experimental import pallas as pl
from jax.experimental.pallas import tpu as pltpu

# ------------------------- configuration (small, consistent with the module) --
VOLUME   = 16          # volume_size (cube)
PATCH    = 8           # patch_size (cube)
DIM      = 96          # divisible by 6 for the 3d sincos embedding
DEPTH    = 2
HEADS    = 2
DIM_HEAD = 16
INNER    = HEADS * DIM_HEAD
MLP_DIM  = 48
CHANNELS = 1
BATCH    = 2

GRID_SZ   = VOLUME // PATCH
NPATCH    = GRID_SZ ** 3
PATCH_DIM = CHANNELS * PATCH ** 3
SCALE     = DIM_HEAD ** (-0.5)
EPS       = 1e-5

# ------------------------- sincos position embedding (verbatim numpy port) ----
def get_1d_sincos_pos_embed_from_grid(embed_dim, pos):
    assert embed_dim % 2 == 0
    omega = np.arange(embed_dim // 2, dtype=float)
    omega /= embed_dim / 2.0
    omega = 1.0 / 10000 ** omega
    pos = pos.reshape(-1)
    out = np.einsum('m,d->md', pos, omega)
    emb_sin = np.sin(out)
    emb_cos = np.cos(out)
    return np.concatenate([emb_sin, emb_cos], axis=1)

def get_3d_sincos_pos_embed_from_grid(embed_dim, grid):
    assert embed_dim % 3 == 0
    emb_d = get_1d_sincos_pos_embed_from_grid(embed_dim // 3, grid[0])
    emb_h = get_1d_sincos_pos_embed_from_grid(embed_dim // 3, grid[1])
    emb_w = get_1d_sincos_pos_embed_from_grid(embed_dim // 3, grid[2])
    return np.concatenate([emb_d, emb_h, emb_w], axis=1)

def get_3d_sincos_pos_embed(embed_dim, grid_size):
    grid_size = (grid_size, grid_size, grid_size) if type(grid_size) != tuple else grid_size
    grid_d = np.arange(grid_size[0], dtype=np.float32)
    grid_h = np.arange(grid_size[1], dtype=np.float32)
    grid_w = np.arange(grid_size[2], dtype=np.float32)
    grid = np.meshgrid(grid_w, grid_h, grid_d)
    grid = np.stack(grid, axis=0)
    grid = grid.reshape([3, 1, grid_size[0], grid_size[1], grid_size[2]])
    return get_3d_sincos_pos_embed_from_grid(embed_dim, grid)

# ------------------------- in-kernel helpers ---------------------------------
def _layernorm(x, w, b):
    # x: (R, dim), w/b: (1, dim).  rsqrt -> EUP slot, keeps VALU free.
    mu  = jnp.mean(x, axis=-1, keepdims=True)
    xc  = x - mu
    var = jnp.mean(xc * xc, axis=-1, keepdims=True)
    return xc * lax.rsqrt(var + EPS) * w + b

# ------------------------- fused Pallas kernel --------------------------------
def vit_fused_kernel(patches_ref, wp_ref, posb_ref,
                     ln1w_ref, ln1b_ref, wq_ref, wk_ref, wv_ref, wo_ref, bo_ref,
                     ln2w_ref, ln2b_ref, w1_ref, b1_ref, w2_ref, b2_ref,
                     lnfw_ref, lnfb_ref, out_ref):
    BB, N, PD = patches_ref.shape        # batch elements in this block, tokens, patch dim
    R = BB * N                           # batch folded into matmul rows

    # --- patch embedding: whole batch as one (R, PD) @ (PD, DIM) matmul,
    #     plus (pos-embed + conv bias) pre-folded host-side and tiled once.
    p_slab = patches_ref[...].reshape(R, PD)
    pe = jnp.tile(posb_ref[...], (BB, 1))                             # (R, DIM)
    x = jnp.dot(p_slab, wp_ref[...], preferred_element_type=jnp.float32) + pe

    for l in range(DEPTH):               # static unroll over layers
        ln1w = ln1w_ref[l]; ln1b = ln1b_ref[l]
        wq = wq_ref[l]; wk = wk_ref[l]; wv = wv_ref[l]
        wo = wo_ref[l]; bo = bo_ref[l]
        ln2w = ln2w_ref[l]; ln2b = ln2b_ref[l]
        w1 = w1_ref[l]; b1 = b1_ref[l]; w2 = w2_ref[l]; b2 = b2_ref[l]

        # --- PreNorm + multi-head attention --------------------------------
        h = _layernorm(x, ln1w, ln1b)                                  # (R, DIM)
        # separate Q/K/V matmuls -> every MXU operand/result starts at lane 0
        q = jnp.dot(h, wq, preferred_element_type=jnp.float32)        # (R, INNER)
        k = jnp.dot(h, wk, preferred_element_type=jnp.float32)        # (R, INNER)
        v = jnp.dot(h, wv, preferred_element_type=jnp.float32)        # (R, INNER)

        ov_rows = []
        for b in range(BB):                                            # (N,N) blocks are per-batch
            r0 = b * N
            ov_heads = []
            for hd in range(HEADS):
                c0 = hd * DIM_HEAD
                q_bh = q[r0:r0 + N, c0:c0 + DIM_HEAD]
                k_bh = k[r0:r0 + N, c0:c0 + DIM_HEAD]
                v_bh = v[r0:r0 + N, c0:c0 + DIM_HEAD]
                # contract on both last dims -> no explicit k.T transpose
                s = lax.dot_general(q_bh, k_bh, (((1,), (1,)), ((), ())),
                                    preferred_element_type=jnp.float32) * SCALE
                s = s - jnp.max(s, axis=-1, keepdims=True)
                e = jnp.exp(s)
                p = e / jnp.sum(e, axis=-1, keepdims=True)             # exact softmax
                ov_heads.append(jnp.dot(p, v_bh, preferred_element_type=jnp.float32))
            # heads concat = adjacent 16-lane writes inside one vreg
            ov_rows.append(jnp.concatenate(ov_heads, axis=-1))         # (N, INNER)
        ov = jnp.concatenate(ov_rows, axis=0)                          # (R, INNER)
        # single output projection over the whole slab
        x = x + jnp.dot(ov, wo, preferred_element_type=jnp.float32) + bo

        # --- PreNorm + FeedForward (Linear -> Tanh -> Linear) ---------------
        h2 = _layernorm(x, ln2w, ln2b)
        f = jnp.tanh(jnp.dot(h2, w1, preferred_element_type=jnp.float32) + b1)
        x = x + jnp.dot(f, w2, preferred_element_type=jnp.float32) + b2

    # --- final LayerNorm of the Transformer ---------------------------------
    y = _layernorm(x, lnfw_ref[...], lnfb_ref[...])
    out_ref[...] = y.reshape(BB, N, DIM)

# ------------------------- wrapper (pallas_call plumbing) ---------------------
def vit_encoder3d_forward(volume, params):
    patches = patchify(volume)                       # (B, N, PATCH_DIM) host-side layout glue
    B, N, PD = patches.shape

    # Small batches are processed in ONE grid step with batch folded into matmul rows
    # (fewer, larger matmuls -> best for this issue-bound size).  Larger batches are
    # split into modest blocks so code size / vreg live ranges stay bounded.
    if B <= 8:
        bb = B
    else:
        bb = next(d for d in (8, 4, 2, 1) if B % d == 0)
    n_blocks = B // bb
    # TODO(synk): when scaling to realistic ViT sizes, stream DEPTH-stacked weights
    # (grid axis over layers / emit_pipeline) instead of keeping them all VMEM-resident,
    # and shard the batch grid across TensorCores on multi-core chips.

    weights = (params["wp"], params["posb"],
               params["ln1w"], params["ln1b"],
               params["wq"], params["wk"], params["wv"], params["wo"], params["bo"],
               params["ln2w"], params["ln2b"], params["w1"], params["b1"],
               params["w2"], params["b2"],
               params["lnfw"], params["lnfb"])

    def _full_spec(shape):
        nd = len(shape)
        return pl.BlockSpec(shape, lambda i, _nd=nd: (0,) * _nd)

    return pl.pallas_call(
        vit_fused_kernel,
        out_shape=jax.ShapeDtypeStruct((B, N, DIM), jnp.float32),
        grid=(n_blocks,),
        in_specs=[pl.BlockSpec((bb, N, PD), lambda i: (i, 0, 0))]
                 + [_full_spec(w.shape) for w in weights],
        out_specs=pl.BlockSpec((bb, N, DIM), lambda i: (i, 0, 0)),
        compiler_params=pltpu.CompilerParams(
            dimension_semantics=("parallel",)),
    )(patches, *weights)

# ------------------------- glue: patchify + parameter init --------------------
def patchify(vol):
    # vol: (B, C, D, H, W) -> (B, N, C*pd*ph*pw); patch order (d,h,w), inner (c, kd, kh, kw)
    B, C, D, H, W = vol.shape
    g = D // PATCH
    x = vol.reshape(B, C, g, PATCH, g, PATCH, g, PATCH)
    x = x.transpose(0, 2, 4, 6, 1, 3, 5, 7)
    return x.reshape(B, g * g * g, C * PATCH ** 3)

def xavier_uniform(key, fan_in, fan_out, shape):
    a = float(np.sqrt(6.0 / (fan_in + fan_out)))
    return jax.random.uniform(key, shape, jnp.float32, -a, a)

def init_params(key):
    keys = jax.random.split(key, 2 + 4 * DEPTH)
    ki = iter(keys)
    params = {}
    # Conv3d(channels, dim, k=p, s=p): xavier on flattened (dim, patch_dim); default uniform bias
    params["wp"] = xavier_uniform(next(ki), PATCH_DIM, DIM, (PATCH_DIM, DIM))
    bbnd = 1.0 / np.sqrt(PATCH_DIM)
    params["bp"] = jax.random.uniform(next(ki), (1, DIM), jnp.float32, -bbnd, bbnd)
    params["pos"] = jnp.asarray(get_3d_sincos_pos_embed(DIM, (GRID_SZ, GRID_SZ, GRID_SZ)),
                                dtype=jnp.float32)                  # (N, dim)
    # fold pos-embed + patch-embed bias once (host-side) for the kernel
    params["posb"] = params["pos"] + params["bp"]                    # (N, dim)

    # stacked per-layer weights (leading DEPTH axis)
    wqkv, wo, w1, w2 = [], [], [], []
    for _ in range(DEPTH):
        wqkv.append(xavier_uniform(next(ki), DIM, 3 * INNER, (DIM, 3 * INNER)))
        wo.append(xavier_uniform(next(ki), INNER, DIM, (INNER, DIM)))
        w1.append(xavier_uniform(next(ki), DIM, MLP_DIM, (DIM, MLP_DIM)))
        w2.append(xavier_uniform(next(ki), MLP_DIM, DIM, (MLP_DIM, DIM)))
    params["wqkv"] = jnp.stack(wqkv)                                 # (DEPTH, DIM, 3*INNER)
    # split host-side so the kernel's Q/K/V matmul outputs all start at lane 0
    params["wq"] = params["wqkv"][:, :, 0 * INNER:1 * INNER]
    params["wk"] = params["wqkv"][:, :, 1 * INNER:2 * INNER]
    params["wv"] = params["wqkv"][:, :, 2 * INNER:3 * INNER]
    params["wo"]   = jnp.stack(wo)
    params["w1"]   = jnp.stack(w1)
    params["w2"]   = jnp.stack(w2)
    params["ln1w"] = jnp.ones((DEPTH, 1, DIM), jnp.float32)
    params["ln1b"] = jnp.zeros((DEPTH, 1, DIM), jnp.float32)
    params["bo"]   = jnp.zeros((DEPTH, 1, DIM), jnp.float32)
    params["ln2w"] = jnp.ones((DEPTH, 1, DIM), jnp.float32)
    params["ln2b"] = jnp.zeros((DEPTH, 1, DIM), jnp.float32)
    params["b1"]   = jnp.zeros((DEPTH, 1, MLP_DIM), jnp.float32)
    params["b2"]   = jnp.zeros((DEPTH, 1, DIM), jnp.float32)
    params["lnfw"] = jnp.ones((1, DIM), jnp.float32)
    params["lnfb"] = jnp.zeros((1, DIM), jnp.float32)
    return params

# ------------------------- pure-JAX reference (for correctness) ---------------
def _ln_ref(x, w, b):
    mu = jnp.mean(x, axis=-1, keepdims=True)
    var = jnp.mean((x - mu) ** 2, axis=-1, keepdims=True)
    return (x - mu) / jnp.sqrt(var + EPS) * w + b

def vit_encoder3d_reference(volume, params):
    x = patchify(volume) @ params["wp"] + params["bp"] + params["pos"]
    for l in range(DEPTH):
        h = _ln_ref(x, params["ln1w"][l], params["ln1b"][l])
        qkv = h @ params["wqkv"][l]
        q, k, v = jnp.split(qkv, 3, axis=-1)
        B, N, _ = q.shape
        q = q.reshape(B, N, HEADS, DIM_HEAD).transpose(0, 2, 1, 3)
        k = k.reshape(B, N, HEADS, DIM_HEAD).transpose(0, 2, 1, 3)
        v = v.reshape(B, N, HEADS, DIM_HEAD).transpose(0, 2, 1, 3)
        s = jnp.einsum("bhnd,bhmd->bhnm", q, k) * SCALE
        a = jax.nn.softmax(s, axis=-1)
        o = jnp.einsum("bhnm,bhmd->bhnd", a, v).transpose(0, 2, 1, 3).reshape(B, N, INNER)
        x = x + (o @ params["wo"][l] + params["bo"][l])
        h2 = _ln_ref(x, params["ln2w"][l], params["ln2b"][l])
        x = x + (jnp.tanh(h2 @ params["w1"][l] + params["b1"][l]) @ params["w2"][l] + params["b2"][l])
    return _ln_ref(x, params["lnfw"], params["lnfb"])

# ------------------------- main ------------------------------------------------
if __name__ == "__main__":
    key = jax.random.PRNGKey(0)
    k_vol, k_par = jax.random.split(key)
    volume = jax.random.normal(k_vol, (BATCH, CHANNELS, VOLUME, VOLUME, VOLUME), jnp.float32)
    params = init_params(k_par)

    out = jax.block_until_ready(vit_encoder3d_forward(volume, params))
    assert out.shape == (BATCH, NPATCH, DIM), out.shape

    ref = jax.block_until_ready(vit_encoder3d_reference(volume, params))
    err = float(jnp.max(jnp.abs(out - ref)))
    # softmax / matmul math is exact f32 now; error should be ~1e-5
    assert err < 2e-3, err

    print("KERNEL_OK")
</pallas_src>

<mosaic_0001>
module attributes {stable_mosaic.version = 11 : i64} {
  func.func @vit_fused_kernel(%arg0: i32, %arg1: memref<2x8x512xf32, #tpu.memory_space<vmem>>, %arg2: memref<512x96xf32, #tpu.memory_space<vmem>>, %arg3: memref<8x96xf32, #tpu.memory_space<vmem>>, %arg4: memref<2x1x96xf32, #tpu.memory_space<vmem>>, %arg5: memref<2x1x96xf32, #tpu.memory_space<vmem>>, %arg6: memref<2x96x32xf32, #tpu.memory_space<vmem>>, %arg7: memref<2x96x32xf32, #tpu.memory_space<vmem>>, %arg8: memref<2x96x32xf32, #tpu.memory_space<vmem>>, %arg9: memref<2x32x96xf32, #tpu.memory_space<vmem>>, %arg10: memref<2x1x96xf32, #tpu.memory_space<vmem>>, %arg11: memref<2x1x96xf32, #tpu.memory_space<vmem>>, %arg12: memref<2x1x96xf32, #tpu.memory_space<vmem>>, %arg13: memref<2x96x48xf32, #tpu.memory_space<vmem>>, %arg14: memref<2x1x48xf32, #tpu.memory_space<vmem>>, %arg15: memref<2x48x96xf32, #tpu.memory_space<vmem>>, %arg16: memref<2x1x96xf32, #tpu.memory_space<vmem>>, %arg17: memref<1x96xf32, #tpu.memory_space<vmem>>, %arg18: memref<1x96xf32, #tpu.memory_space<vmem>>, %arg19: memref<2x8x96xf32, #tpu.memory_space<vmem>>) attributes {dimension_semantics = [#tpu.dimension_semantics<parallel>], iteration_bounds = array<i64: 1>, scalar_prefetch = 0 : i64, scratch_operands = 0 : i64, tpu.core_type = #tpu.core_type<tc>, window_params = [{transform_indices = @transform_0, window_bounds = array<i64: 2, 8, 512>}, {pipeline_mode = #tpu.pipeline_mode<synchronous>, transform_indices = @transform_1, window_bounds = array<i64: 512, 96>}, {pipeline_mode = #tpu.pipeline_mode<synchronous>, transform_indices = @transform_2, window_bounds = array<i64: 8, 96>}, {pipeline_mode = #tpu.pipeline_mode<synchronous>, transform_indices = @transform_3, window_bounds = array<i64: 2, 1, 96>}, {pipeline_mode = #tpu.pipeline_mode<synchronous>, transform_indices = @transform_4, window_bounds = array<i64: 2, 1, 96>}, {pipeline_mode = #tpu.pipeline_mode<synchronous>, transform_indices = @transform_5, window_bounds = array<i64: 2, 96, 32>}, {pipeline_mode = #tpu.pipeline_mode<synchronous>, transform_indices = @transform_6, window_bounds = array<i64: 2, 96, 32>}, {pipeline_mode = #tpu.pipeline_mode<synchronous>, transform_indices = @transform_7, window_bounds = array<i64: 2, 96, 32>}, {pipeline_mode = #tpu.pipeline_mode<synchronous>, transform_indices = @transform_8, window_bounds = array<i64: 2, 32, 96>}, {pipeline_mode = #tpu.pipeline_mode<synchronous>, transform_indices = @transform_9, window_bounds = array<i64: 2, 1, 96>}, {pipeline_mode = #tpu.pipeline_mode<synchronous>, transform_indices = @transform_10, window_bounds = array<i64: 2, 1, 96>}, {pipeline_mode = #tpu.pipeline_mode<synchronous>, transform_indices = @transform_11, window_bounds = array<i64: 2, 1, 96>}, {pipeline_mode = #tpu.pipeline_mode<synchronous>, transform_indices = @transform_12, window_bounds = array<i64: 2, 96, 48>}, {pipeline_mode = #tpu.pipeline_mode<synchronous>, transform_indices = @transform_13, window_bounds = array<i64: 2, 1, 48>}, {pipeline_mode = #tpu.pipeline_mode<synchronous>, transform_indices = @transform_14, window_bounds = array<i64: 2, 48, 96>}, {pipeline_mode = #tpu.pipeline_mode<synchronous>, transform_indices = @transform_15, window_bounds = array<i64: 2, 1, 96>}, {pipeline_mode = #tpu.pipeline_mode<synchronous>, transform_indices = @transform_16, window_bounds = array<i64: 1, 96>}, {pipeline_mode = #tpu.pipeline_mode<synchronous>, transform_indices = @transform_17, window_bounds = array<i64: 1, 96>}, {transform_indices = @transform_18, window_bounds = array<i64: 2, 8, 96>}]} {
    %c0 = arith.constant 0 : index
    %c0_0 = arith.constant 0 : index
    %c0_1 = arith.constant 0 : index
    %0 = vector.load %arg1[%c0, %c0_0, %c0_1] : memref<2x8x512xf32, #tpu.memory_space<vmem>>, vector<2x8x512xf32>
    %1 = vector.shape_cast %0 : vector<2x8x512xf32> to vector<16x512xf32>
    %c0_2 = arith.constant 0 : index
    %c0_3 = arith.constant 0 : index
    %2 = vector.load %arg3[%c0_2, %c0_3] : memref<8x96xf32, #tpu.memory_space<vmem>>, vector<8x96xf32>
    %3 = tpu.concatenate %2, %2 in 0 : vector<8x96xf32>, vector<8x96xf32> -> vector<16x96xf32>
    %c0_4 = arith.constant 0 : index
    %c0_5 = arith.constant 0 : index
    %4 = vector.load %arg2[%c0_4, %c0_5] : memref<512x96xf32, #tpu.memory_space<vmem>>, vector<512x96xf32>
    %cst = arith.constant dense<0.000000e+00> : vector<16x96xf32>
    %5 = tpu.matmul %1, %4, %cst {dimension_numbers = #tpu.dot_dimension_numbers<[1], [0], [0], [1], [0, 0, 1, 1], [], []>} : vector<16x512xf32>, vector<512x96xf32>, vector<16x96xf32> -> vector<16x96xf32>
    %6 = arith.addf %5, %3 : vector<16x96xf32>
    %c0_6 = arith.constant 0 : index
    %c0_7 = arith.constant 0 : index
    %c0_8 = arith.constant 0 : index
    %7 = vector.load %arg4[%c0_6, %c0_7, %c0_8] : memref<2x1x96xf32, #tpu.memory_space<vmem>>, vector<1x1x96xf32>
    %8 = vector.shape_cast %7 : vector<1x1x96xf32> to vector<1x96xf32>
    %c0_9 = arith.constant 0 : index
    %c0_10 = arith.constant 0 : index
    %c0_11 = arith.constant 0 : index
    %9 = vector.load %arg5[%c0_9, %c0_10, %c0_11] : memref<2x1x96xf32, #tpu.memory_space<vmem>>, vector<1x1x96xf32>
    %10 = vector.shape_cast %9 : vector<1x1x96xf32> to vector<1x96xf32>
    %c0_12 = arith.constant 0 : index
    %c0_13 = arith.constant 0 : index
    %c0_14 = arith.constant 0 : index
    %11 = vector.load %arg6[%c0_12, %c0_13, %c0_14] : memref<2x96x32xf32, #tpu.memory_space<vmem>>, vector<1x96x32xf32>
    %12 = vector.shape_cast %11 : vector<1x96x32xf32> to vector<96x32xf32>
    %c0_15 = arith.constant 0 : index
    %c0_16 = arith.constant 0 : index
    %c0_17 = arith.constant 0 : index
    %13 = vector.load %arg7[%c0_15, %c0_16, %c0_17] : memref<2x96x32xf32, #tpu.memory_space<vmem>>, vector<1x96x32xf32>
    %14 = vector.shape_cast %13 : vector<1x96x32xf32> to vector<96x32xf32>
    %c0_18 = arith.constant 0 : index
    %c0_19 = arith.constant 0 : index
    %c0_20 = arith.constant 0 : index
    %15 = vector.load %arg8[%c0_18, %c0_19, %c0_20] : memref<2x96x32xf32, #tpu.memory_space<vmem>>, vector<1x96x32xf32>
    %16 = vector.shape_cast %15 : vector<1x96x32xf32> to vector<96x32xf32>
    %c0_21 = arith.constant 0 : index
    %c0_22 = arith.constant 0 : index
    %c0_23 = arith.constant 0 : index
    %17 = vector.load %arg9[%c0_21, %c0_22, %c0_23] : memref<2x32x96xf32, #tpu.memory_space<vmem>>, vector<1x32x96xf32>
    %18 = vector.shape_cast %17 : vector<1x32x96xf32> to vector<32x96xf32>
    %c0_24 = arith.constant 0 : index
    %c0_25 = arith.constant 0 : index
    %c0_26 = arith.constant 0 : index
    %19 = vector.load %arg10[%c0_24, %c0_25, %c0_26] : memref<2x1x96xf32, #tpu.memory_space<vmem>>, vector<1x1x96xf32>
    %20 = vector.shape_cast %19 : vector<1x1x96xf32> to vector<1x96xf32>
    %c0_27 = arith.constant 0 : index
    %c0_28 = arith.constant 0 : index
    %c0_29 = arith.constant 0 : index
    %21 = vector.load %arg11[%c0_27, %c0_28, %c0_29] : memref<2x1x96xf32, #tpu.memory_space<vmem>>, vector<1x1x96xf32>
    %22 = vector.shape_cast %21 : vector<1x1x96xf32> to vector<1x96xf32>
    %c0_30 = arith.constant 0 : index
    %c0_31 = arith.constant 0 : index
    %c0_32 = arith.constant 0 : index
    %23 = vector.load %arg12[%c0_30, %c0_31, %c0_32] : memref<2x1x96xf32, #tpu.memory_space<vmem>>, vector<1x1x96xf32>
    %24 = vector.shape_cast %23 : vector<1x1x96xf32> to vector<1x96xf32>
    %c0_33 = arith.constant 0 : index
    %c0_34 = arith.constant 0 : index
    %c0_35 = arith.constant 0 : index
    %25 = vector.load %arg13[%c0_33, %c0_34, %c0_35] : memref<2x96x48xf32, #tpu.memory_space<vmem>>, vector<1x96x48xf32>
    %26 = vector.shape_cast %25 : vector<1x96x48xf32> to vector<96x48xf32>
    %c0_36 = arith.constant 0 : index
    %c0_37 = arith.constant 0 : index
    %c0_38 = arith.constant 0 : index
    %27 = vector.load %arg14[%c0_36, %c0_37, %c0_38] : memref<2x1x48xf32, #tpu.memory_space<vmem>>, vector<1x1x48xf32>
    %28 = vector.shape_cast %27 : vector<1x1x48xf32> to vector<1x48xf32>
    %c0_39 = arith.constant 0 : index
    %c0_40 = arith.constant 0 : index
    %c0_41 = arith.constant 0 : index
    %29 = vector.load %arg15[%c0_39, %c0_40, %c0_41] : memref<2x48x96xf32, #tpu.memory_space<vmem>>, vector<1x48x96xf32>
    %30 = vector.shape_cast %29 : vector<1x48x96xf32> to vector<48x96xf32>
    %c0_42 = arith.constant 0 : index
    %c0_43 = arith.constant 0 : index
    %c0_44 = arith.constant 0 : index
    %31 = vector.load %arg16[%c0_42, %c0_43, %c0_44] : memref<2x1x96xf32, #tpu.memory_space<vmem>>, vector<1x1x96xf32>
    %32 = vector.shape_cast %31 : vector<1x1x96xf32> to vector<1x96xf32>
    %cst_45 = arith.constant dense<0.000000e+00> : vector<16xf32>
    %33 = vector.multi_reduction <add>, %6, %cst_45 [1] : vector<16x96xf32> to vector<16xf32>
    %34 = vector.shape_cast %33 : vector<16xf32> to vector<16x1xf32>
    %cst_46 = arith.constant 9.600000e+01 : f32
    %35 = vector.broadcast %cst_46 : f32 to vector<16x1xf32>
    %36 = arith.divf %34, %35 : vector<16x1xf32>
    %37 = vector.broadcast %36 : vector<16x1xf32> to vector<16x96xf32>
    %38 = arith.subf %6, %37 : vector<16x96xf32>
    %39 = arith.mulf %38, %38 : vector<16x96xf32>
    %cst_47 = arith.constant dense<0.000000e+00> : vector<16xf32>
    %40 = vector.multi_reduction <add>, %39, %cst_47 [1] : vector<16x96xf32> to vector<16xf32>
    %41 = vector.shape_cast %40 : vector<16xf32> to vector<16x1xf32>
    %cst_48 = arith.constant 9.600000e+01 : f32
    %42 = vector.broadcast %cst_48 : f32 to vector<16x1xf32>
    %43 = arith.divf %41, %42 : vector<16x1xf32>
    %cst_49 = arith.constant 9.99999974E-6 : f32
    %44 = vector.broadcast %cst_49 : f32 to vector<16x1xf32>
    %45 = arith.addf %43, %44 : vector<16x1xf32>
    %46 = math.rsqrt %45 : vector<16x1xf32>
    %47 = vector.broadcast %46 : vector<16x1xf32> to vector<16x96xf32>
    %48 = arith.mulf %38, %47 : vector<16x96xf32>
    %49 = vector.broadcast %8 : vector<1x96xf32> to vector<16x96xf32>
    %50 = arith.mulf %48, %49 : vector<16x96xf32>
    %51 = vector.broadcast %10 : vector<1x96xf32> to vector<16x96xf32>
    %52 = arith.addf %50, %51 : vector<16x96xf32>
    %cst_50 = arith.constant dense<0.000000e+00> : vector<16x32xf32>
    %53 = tpu.matmul %52, %12, %cst_50 {dimension_numbers = #tpu.dot_dimension_numbers<[1], [0], [0], [1], [0, 0, 1, 1], [], []>} : vector<16x96xf32>, vector<96x32xf32>, vector<16x32xf32> -> vector<16x32xf32>
    %cst_51 = arith.constant dense<0.000000e+00> : vector<16x32xf32>
    %54 = tpu.matmul %52, %14, %cst_51 {dimension_numbers = #tpu.dot_dimension_numbers<[1], [0], [0], [1], [0, 0, 1, 1], [], []>} : vector<16x96xf32>, vector<96x32xf32>, vector<16x32xf32> -> vector<16x32xf32>
    %cst_52 = arith.constant dense<0.000000e+00> : vector<16x32xf32>
    %55 = tpu.matmul %52, %16, %cst_52 {dimension_numbers = #tpu.dot_dimension_numbers<[1], [0], [0], [1], [0, 0, 1, 1], [], []>} : vector<16x96xf32>, vector<96x32xf32>, vector<16x32xf32> -> vector<16x32xf32>
    %56 = vector.extract_strided_slice %53 {offsets = [0, 0], sizes = [8, 16], strides = [1, 1]} : vector<16x32xf32> to vector<8x16xf32>
    %57 = vector.extract_strided_slice %54 {offsets = [0, 0], sizes = [8, 16], strides = [1, 1]} : vector<16x32xf32> to vector<8x16xf32>
    %58 = vector.extract_strided_slice %55 {offsets = [0, 0], sizes = [8, 16], strides = [1, 1]} : vector<16x32xf32> to vector<8x16xf32>
    %cst_53 = arith.constant dense<0.000000e+00> : vector<8x8xf32>
    %59 = tpu.matmul %56, %57, %cst_53 {dimension_numbers = #tpu.dot_dimension_numbers<[1], [1], [0], [0], [0, 0, 1, 0], [], []>} : vector<8x16xf32>, vector<8x16xf32>, vector<8x8xf32> -> vector<8x8xf32>
    %cst_54 = arith.constant 2.500000e-01 : f32
    %60 = vector.broadcast %cst_54 : f32 to vector<8x8xf32>
    %61 = arith.mulf %59, %60 : vector<8x8xf32>
    %cst_55 = arith.constant dense<0xFF800000> : vector<8xf32>
    %62 = vector.multi_reduction <maximumf>, %61, %cst_55 [1] : vector<8x8xf32> to vector<8xf32>
    %63 = vector.shape_cast %62 : vector<8xf32> to vector<8x1xf32>
    %64 = vector.broadcast %63 : vector<8x1xf32> to vector<8x8xf32>
    %65 = arith.subf %61, %64 : vector<8x8xf32>
    %66 = math.exp %65 : vector<8x8xf32>
    %cst_56 = arith.constant dense<0.000000e+00> : vector<8xf32>
    %67 = vector.multi_reduction <add>, %66, %cst_56 [1] : vector<8x8xf32> to vector<8xf32>
    %68 = vector.shape_cast %67 : vector<8xf32> to vector<8x1xf32>
    %69 = vector.broadcast %68 : vector<8x1xf32> to vector<8x8xf32>
    %70 = arith.divf %66, %69 : vector<8x8xf32>
    %cst_57 = arith.constant dense<0.000000e+00> : vector<8x16xf32>
    %71 = tpu.matmul %70, %58, %cst_57 {dimension_numbers = #tpu.dot_dimension_numbers<[1], [0], [0], [1], [0, 0, 1, 1], [], []>} : vector<8x8xf32>, vector<8x16xf32>, vector<8x16xf32> -> vector<8x16xf32>
    %72 = vector.extract_strided_slice %53 {offsets = [0, 16], sizes = [8, 16], strides = [1, 1]} : vector<16x32xf32> to vector<8x16xf32>
    %73 = vector.extract_strided_slice %54 {offsets = [0, 16], sizes = [8, 16], strides = [1, 1]} : vector<16x32xf32> to vector<8x16xf32>
    %74 = vector.extract_strided_slice %55 {offsets = [0, 16], sizes = [8, 16], strides = [1, 1]} : vector<16x32xf32> to vector<8x16xf32>
    %cst_58 = arith.constant dense<0.000000e+00> : vector<8x8xf32>
    %75 = tpu.matmul %72, %73, %cst_58 {dimension_numbers = #tpu.dot_dimension_numbers<[1], [1], [0], [0], [0, 0, 1, 0], [], []>} : vector<8x16xf32>, vector<8x16xf32>, vector<8x8xf32> -> vector<8x8xf32>
    %cst_59 = arith.constant 2.500000e-01 : f32
    %76 = vector.broadcast %cst_59 : f32 to vector<8x8xf32>
    %77 = arith.mulf %75, %76 : vector<8x8xf32>
    %cst_60 = arith.constant dense<0xFF800000> : vector<8xf32>
    %78 = vector.multi_reduction <maximumf>, %77, %cst_60 [1] : vector<8x8xf32> to vector<8xf32>
    %79 = vector.shape_cast %78 : vector<8xf32> to vector<8x1xf32>
    %80 = vector.broadcast %79 : vector<8x1xf32> to vector<8x8xf32>
    %81 = arith.subf %77, %80 : vector<8x8xf32>
    %82 = math.exp %81 : vector<8x8xf32>
    %cst_61 = arith.constant dense<0.000000e+00> : vector<8xf32>
    %83 = vector.multi_reduction <add>, %82, %cst_61 [1] : vector<8x8xf32> to vector<8xf32>
    %84 = vector.shape_cast %83 : vector<8xf32> to vector<8x1xf32>
    %85 = vector.broadcast %84 : vector<8x1xf32> to vector<8x8xf32>
    %86 = arith.divf %82, %85 : vector<8x8xf32>
    %cst_62 = arith.constant dense<0.000000e+00> : vector<8x16xf32>
    %87 = tpu.matmul %86, %74, %cst_62 {dimension_numbers = #tpu.dot_dimension_numbers<[1], [0], [0], [1], [0, 0, 1, 1], [], []>} : vector<8x8xf32>, vector<8x16xf32>, vector<8x16xf32> -> vector<8x16xf32>
    %88 = tpu.concatenate %71, %87 in 1 : vector<8x16xf32>, vector<8x16xf32> -> vector<8x32xf32>
    %89 = vector.extract_strided_slice %53 {offsets = [8, 0], sizes = [8, 16], strides = [1, 1]} : vector<16x32xf32> to vector<8x16xf32>
    %90 = vector.extract_strided_slice %54 {offsets = [8, 0], sizes = [8, 16], strides = [1, 1]} : vector<16x32xf32> to vector<8x16xf32>
    %91 = vector.extract_strided_slice %55 {offsets = [8, 0], sizes = [8, 16], strides = [1, 1]} : vector<16x32xf32> to vector<8x16xf32>
    %cst_63 = arith.constant dense<0.000000e+00> : vector<8x8xf32>
    %92 = tpu.matmul %89, %90, %cst_63 {dimension_numbers = #tpu.dot_dimension_numbers<[1], [1], [0], [0], [0, 0, 1, 0], [], []>} : vector<8x16xf32>, vector<8x16xf32>, vector<8x8xf32> -> vector<8x8xf32>
    %cst_64 = arith.constant 2.500000e-01 : f32
    %93 = vector.broadcast %cst_64 : f32 to vector<8x8xf32>
    %94 = arith.mulf %92, %93 : vector<8x8xf32>
    %cst_65 = arith.constant dense<0xFF800000> : vector<8xf32>
    %95 = vector.multi_reduction <maximumf>, %94, %cst_65 [1] : vector<8x8xf32> to vector<8xf32>
    %96 = vector.shape_cast %95 : vector<8xf32> to vector<8x1xf32>
    %97 = vector.broadcast %96 : vector<8x1xf32> to vector<8x8xf32>
    %98 = arith.subf %94, %97 : vector<8x8xf32>
    %99 = math.exp %98 : vector<8x8xf32>
    %cst_66 = arith.constant dense<0.000000e+00> : vector<8xf32>
    %100 = vector.multi_reduction <add>, %99, %cst_66 [1] : vector<8x8xf32> to vector<8xf32>
    %101 = vector.shape_cast %100 : vector<8xf32> to vector<8x1xf32>
    %102 = vector.broadcast %101 : vector<8x1xf32> to vector<8x8xf32>
    %103 = arith.divf %99, %102 : vector<8x8xf32>
    %cst_67 = arith.constant dense<0.000000e+00> : vector<8x16xf32>
    %104 = tpu.matmul %103, %91, %cst_67 {dimension_numbers = #tpu.dot_dimension_numbers<[1], [0], [0], [1], [0, 0, 1, 1], [], []>} : vector<8x8xf32>, vector<8x16xf32>, vector<8x16xf32> -> vector<8x16xf32>
    %105 = vector.extract_strided_slice %53 {offsets = [8, 16], sizes = [8, 16], strides = [1, 1]} : vector<16x32xf32> to vector<8x16xf32>
    %106 = vector.extract_strided_slice %54 {offsets = [8, 16], sizes = [8, 16], strides = [1, 1]} : vector<16x32xf32> to vector<8x16xf32>
    %107 = vector.extract_strided_slice %55 {offsets = [8, 16], sizes = [8, 16], strides = [1, 1]} : vector<16x32xf32> to vector<8x16xf32>
    %cst_68 = arith.constant dense<0.000000e+00> : vector<8x8xf32>
    %108 = tpu.matmul %105, %106, %cst_68 {dimension_numbers = #tpu.dot_dimension_numbers<[1], [1], [0], [0], [0, 0, 1, 0], [], []>} : vector<8x16xf32>, vector<8x16xf32>, vector<8x8xf32> -> vector<8x8xf32>
    %cst_69 = arith.constant 2.500000e-01 : f32
    %109 = vector.broadcast %cst_69 : f32 to vector<8x8xf32>
    %110 = arith.mulf %108, %109 : vector<8x8xf32>
    %cst_70 = arith.constant dense<0xFF800000> : vector<8xf32>
    %111 = vector.multi_reduction <maximumf>, %110, %cst_70 [1] : vector<8x8xf32> to vector<8xf32>
    %112 = vector.shape_cast %111 : vector<8xf32> to vector<8x1xf32>
    %113 = vector.broadcast %112 : vector<8x1xf32> to vector<8x8xf32>
    %114 = arith.subf %110, %113 : vector<8x8xf32>
    %115 = math.exp %114 : vector<8x8xf32>
    %cst_71 = arith.constant dense<0.000000e+00> : vector<8xf32>
    %116 = vector.multi_reduction <add>, %115, %cst_71 [1] : vector<8x8xf32> to vector<8xf32>
    %117 = vector.shape_cast %116 : vector<8xf32> to vector<8x1xf32>
    %118 = vector.broadcast %117 : vector<8x1xf32> to vector<8x8xf32>
    %119 = arith.divf %115, %118 : vector<8x8xf32>
    %cst_72 = arith.constant dense<0.000000e+00> : vector<8x16xf32>
    %120 = tpu.matmul %119, %107, %cst_72 {dimension_numbers = #tpu.dot_dimension_numbers<[1], [0], [0], [1], [0, 0, 1, 1], [], []>} : vector<8x8xf32>, vector<8x16xf32>, vector<8x16xf32> -> vector<8x16xf32>
    %121 = tpu.concatenate %104, %120 in 1 : vector<8x16xf32>, vector<8x16xf32> -> vector<8x32xf32>
    %122 = tpu.concatenate %88, %121 in 0 : vector<8x32xf32>, vector<8x32xf32> -> vector<16x32xf32>
    %cst_73 = arith.constant dense<0.000000e+00> : vector<16x96xf32>
    %123 = tpu.matmul %122, %18, %cst_73 {dimension_numbers = #tpu.dot_dimension_numbers<[1], [0], [0], [1], [0, 0, 1, 1], [], []>} : vector<16x32xf32>, vector<32x96xf32>, vector<16x96xf32> -> vector<16x96xf32>
    %124 = arith.addf %6, %123 : vector<16x96xf32>
    %125 = vector.broadcast %20 : vector<1x96xf32> to vector<16x96xf32>
    %126 = arith.addf %124, %125 : vector<16x96xf32>
    %cst_74 = arith.constant dense<0.000000e+00> : vector<16xf32>
    %127 = vector.multi_reduction <add>, %126, %cst_74 [1] : vector<16x96xf32> to vector<16xf32>
    %128 = vector.shape_cast %127 : vector<16xf32> to vector<16x1xf32>
    %cst_75 = arith.constant 9.600000e+01 : f32
    %129 = vector.broadcast %cst_75 : f32 to vector<16x1xf32>
    %130 = arith.divf %128, %129 : vector<16x1xf32>
    %131 = vector.broadcast %130 : vector<16x1xf32> to vector<16x96xf32>
    %132 = arith.subf %126, %131 : vector<16x96xf32>
    %133 = arith.mulf %132, %132 : vector<16x96xf32>
    %cst_76 = arith.constant dense<0.000000e+00> : vector<16xf32>
    %134 = vector.multi_reduction <add>, %133, %cst_76 [1] : vector<16x96xf32> to vector<16xf32>
    %135 = vector.shape_cast %134 : vector<16xf32> to vector<16x1xf32>
    %cst_77 = arith.constant 9.600000e+01 : f32
    %136 = vector.broadcast %cst_77 : f32 to vector<16x1xf32>
    %137 = arith.divf %135, %136 : vector<16x1xf32>
    %cst_78 = arith.constant 9.99999974E-6 : f32
    %138 = vector.broadcast %cst_78 : f32 to vector<16x1xf32>
    %139 = arith.addf %137, %138 : vector<16x1xf32>
    %140 = math.rsqrt %139 : vector<16x1xf32>
    %141 = vector.broadcast %140 : vector<16x1xf32> to vector<16x96xf32>
    %142 = arith.mulf %132, %141 : vector<16x96xf32>
    %143 = vector.broadcast %22 : vector<1x96xf32> to vector<16x96xf32>
    %144 = arith.mulf %142, %143 : vector<16x96xf32>
    %145 = vector.broadcast %24 : vector<1x96xf32> to vector<16x96xf32>
    %146 = arith.addf %144, %145 : vector<16x96xf32>
    %cst_79 = arith.constant dense<0.000000e+00> : vector<16x48xf32>
    %147 = tpu.matmul %146, %26, %cst_79 {dimension_numbers = #tpu.dot_dimension_numbers<[1], [0], [0], [1], [0, 0, 1, 1], [], []>} : vector<16x96xf32>, vector<96x48xf32>, vector<16x48xf32> -> vector<16x48xf32>
    %148 = vector.broadcast %28 : vector<1x48xf32> to vector<16x48xf32>
    %149 = arith.addf %147, %148 : vector<16x48xf32>
    %150 = math.tanh %149 : vector<16x48xf32>
    %cst_80 = arith.constant dense<0.000000e+00> : vector<16x96xf32>
    %151 = tpu.matmul %150, %30, %cst_80 {dimension_numbers = #tpu.dot_dimension_numbers<[1], [0], [0], [1], [0, 0, 1, 1], [], []>} : vector<16x48xf32>, vector<48x96xf32>, vector<16x96xf32> -> vector<16x96xf32>
    %152 = arith.addf %126, %151 : vector<16x96xf32>
    %153 = vector.broadcast %32 : vector<1x96xf32> to vector<16x96xf32>
    %154 = arith.addf %152, %153 : vector<16x96xf32>
    %c1 = arith.constant 1 : index
    %c0_81 = arith.constant 0 : index
    %c0_82 = arith.constant 0 : index
    %155 = vector.load %arg4[%c1, %c0_81, %c0_82] : memref<2x1x96xf32, #tpu.memory_space<vmem>>, vector<1x1x96xf32>
    %156 = vector.shape_cast %155 : vector<1x1x96xf32> to vector<1x96xf32>
    %c1_83 = arith.constant 1 : index
    %c0_84 = arith.constant 0 : index
    %c0_85 = arith.constant 0 : index
    %157 = vector.load %arg5[%c1_83, %c0_84, %c0_85] : memref<2x1x96xf32, #tpu.memory_space<vmem>>, vector<1x1x96xf32>
    %158 = vector.shape_cast %157 : vector<1x1x96xf32> to vector<1x96xf32>
    %c1_86 = arith.constant 1 : index
    %c0_87 = arith.constant 0 : index
    %c0_88 = arith.constant 0 : index
    %159 = vector.load %arg6[%c1_86, %c0_87, %c0_88] : memref<2x96x32xf32, #tpu.memory_space<vmem>>, vector<1x96x32xf32>
    %160 = vector.shape_cast %159 : vector<1x96x32xf32> to vector<96x32xf32>
    %c1_89 = arith.constant 1 : index
    %c0_90 = arith.constant 0 : index
    %c0_91 = arith.constant 0 : index
    %161 = vector.load %arg7[%c1_89, %c0_90, %c0_91] : memref<2x96x32xf32, #tpu.memory_space<vmem>>, vector<1x96x32xf32>
    %162 = vector.shape_cast %161 : vector<1x96x32xf32> to vector<96x32xf32>
    %c1_92 = arith.constant 1 : index
    %c0_93 = arith.constant 0 : index
    %c0_94 = arith.constant 0 : index
    %163 = vector.load %arg8[%c1_92, %c0_93, %c0_94] : memref<2x96x32xf32, #tpu.memory_space<vmem>>, vector<1x96x32xf32>
    %164 = vector.shape_cast %163 : vector<1x96x32xf32> to vector<96x32xf32>
    %c1_95 = arith.constant 1 : index
    %c0_96 = arith.constant 0 : index
    %c0_97 = arith.constant 0 : index
    %165 = vector.load %arg9[%c1_95, %c0_96, %c0_97] : memref<2x32x96xf32, #tpu.memory_space<vmem>>, vector<1x32x96xf32>
    %166 = vector.shape_cast %165 : vector<1x32x96xf32> to vector<32x96xf32>
    %c1_98 = arith.constant 1 : index
    %c0_99 = arith.constant 0 : index
    %c0_100 = arith.constant 0 : index
    %167 = vector.load %arg10[%c1_98, %c0_99, %c0_100] : memref<2x1x96xf32, #tpu.memory_space<vmem>>, vector<1x1x96xf32>
    %168 = vector.shape_cast %167 : vector<1x1x96xf32> to vector<1x96xf32>
    %c1_101 = arith.constant 1 : index
    %c0_102 = arith.constant 0 : index
    %c0_103 = arith.constant 0 : index
    %169 = vector.load %arg11[%c1_101, %c0_102, %c0_103] : memref<2x1x96xf32, #tpu.memory_space<vmem>>, vector<1x1x96xf32>
    %170 = vector.shape_cast %169 : vector<1x1x96xf32> to vector<1x96xf32>
    %c1_104 = arith.constant 1 : index
    %c0_105 = arith.constant 0 : index
    %c0_106 = arith.constant 0 : index
    %171 = vector.load %arg12[%c1_104, %c0_105, %c0_106] : memref<2x1x96xf32, #tpu.memory_space<vmem>>, vector<1x1x96xf32>
    %172 = vector.shape_cast %171 : vector<1x1x96xf32> to vector<1x96xf32>
    %c1_107 = arith.constant 1 : index
    %c0_108 = arith.constant 0 : index
    %c0_109 = arith.constant 0 : index
    %173 = vector.load %arg13[%c1_107, %c0_108, %c0_109] : memref<2x96x48xf32, #tpu.memory_space<vmem>>, vector<1x96x48xf32>
    %174 = vector.shape_cast %173 : vector<1x96x48xf32> to vector<96x48xf32>
    %c1_110 = arith.constant 1 : index
    %c0_111 = arith.constant 0 : index
    %c0_112 = arith.constant 0 : index
    %175 = vector.load %arg14[%c1_110, %c0_111, %c0_112] : memref<2x1x48xf32, #tpu.memory_space<vmem>>, vector<1x1x48xf32>
    %176 = vector.shape_cast %175 : vector<1x1x48xf32> to vector<1x48xf32>
    %c1_113 = arith.constant 1 : index
    %c0_114 = arith.constant 0 : index
    %c0_115 = arith.constant 0 : index
    %177 = vector.load %arg15[%c1_113, %c0_114, %c0_115] : memref<2x48x96xf32, #tpu.memory_space<vmem>>, vector<1x48x96xf32>
    %178 = vector.shape_cast %177 : vector<1x48x96xf32> to vector<48x96xf32>
    %c1_116 = arith.constant 1 : index
    %c0_117 = arith.constant 0 : index
    %c0_118 = arith.constant 0 : index
    %179 = vector.load %arg16[%c1_116, %c0_117, %c0_118] : memref<2x1x96xf32, #tpu.memory_space<vmem>>, vector<1x1x96xf32>
    %180 = vector.shape_cast %179 : vector<1x1x96xf32> to vector<1x96xf32>
    %cst_119 = arith.constant dense<0.000000e+00> : vector<16xf32>
    %181 = vector.multi_reduction <add>, %154, %cst_119 [1] : vector<16x96xf32> to vector<16xf32>
    %182 = vector.shape_cast %181 : vector<16xf32> to vector<16x1xf32>
    %cst_120 = arith.constant 9.600000e+01 : f32
    %183 = vector.broadcast %cst_120 : f32 to vector<16x1xf32>
    %184 = arith.divf %182, %183 : vector<16x1xf32>
    %185 = vector.broadcast %184 : vector<16x1xf32> to vector<16x96xf32>
    %186 = arith.subf %154, %185 : vector<16x96xf32>
    %187 = arith.mulf %186, %186 : vector<16x96xf32>
    %cst_121 = arith.constant dense<0.000000e+00> : vector<16xf32>
    %188 = vector.multi_reduction <add>, %187, %cst_121 [1] : vector<16x96xf32> to vector<16xf32>
    %189 = vector.shape_cast %188 : vector<16xf32> to vector<16x1xf32>
    %cst_122 = arith.constant 9.600000e+01 : f32
    %190 = vector.broadcast %cst_122 : f32 to vector<16x1xf32>
    %191 = arith.divf %189, %190 : vector<16x1xf32>
    %cst_123 = arith.constant 9.99999974E-6 : f32
    %192 = vector.broadcast %cst_123 : f32 to vector<16x1xf32>
    %193 = arith.addf %191, %192 : vector<16x1xf32>
    %194 = math.rsqrt %193 : vector<16x1xf32>
    %195 = vector.broadcast %194 : vector<16x1xf32> to vector<16x96xf32>
    %196 = arith.mulf %186, %195 : vector<16x96xf32>
    %197 = vector.broadcast %156 : vector<1x96xf32> to vector<16x96xf32>
    %198 = arith.mulf %196, %197 : vector<16x96xf32>
    %199 = vector.broadcast %158 : vector<1x96xf32> to vector<16x96xf32>
    %200 = arith.addf %198, %199 : vector<16x96xf32>
    %cst_124 = arith.constant dense<0.000000e+00> : vector<16x32xf32>
    %201 = tpu.matmul %200, %160, %cst_124 {dimension_numbers = #tpu.dot_dimension_numbers<[1], [0], [0], [1], [0, 0, 1, 1], [], []>} : vector<16x96xf32>, vector<96x32xf32>, vector<16x32xf32> -> vector<16x32xf32>
    %cst_125 = arith.constant dense<0.000000e+00> : vector<16x32xf32>
    %202 = tpu.matmul %200, %162, %cst_125 {dimension_numbers = #tpu.dot_dimension_numbers<[1], [0], [0], [1], [0, 0, 1, 1], [], []>} : vector<16x96xf32>, vector<96x32xf32>, vector<16x32xf32> -> vector<16x32xf32>
    %cst_126 = arith.constant dense<0.000000e+00> : vector<16x32xf32>
    %203 = tpu.matmul %200, %164, %cst_126 {dimension_numbers = #tpu.dot_dimension_numbers<[1], [0], [0], [1], [0, 0, 1, 1], [], []>} : vector<16x96xf32>, vector<96x32xf32>, vector<16x32xf32> -> vector<16x32xf32>
    %204 = vector.extract_strided_slice %201 {offsets = [0, 0], sizes = [8, 16], strides = [1, 1]} : vector<16x32xf32> to vector<8x16xf32>
    %205 = vector.extract_strided_slice %202 {offsets = [0, 0], sizes = [8, 16], strides = [1, 1]} : vector<16x32xf32> to vector<8x16xf32>
    %206 = vector.extract_strided_slice %203 {offsets = [0, 0], sizes = [8, 16], strides = [1, 1]} : vector<16x32xf32> to vector<8x16xf32>
    %cst_127 = arith.constant dense<0.000000e+00> : vector<8x8xf32>
    %207 = tpu.matmul %204, %205, %cst_127 {dimension_numbers = #tpu.dot_dimension_numbers<[1], [1], [0], [0], [0, 0, 1, 0], [], []>} : vector<8x16xf32>, vector<8x16xf32>, vector<8x8xf32> -> vector<8x8xf32>
    %cst_128 = arith.constant 2.500000e-01 : f32
    %208 = vector.broadcast %cst_128 : f32 to vector<8x8xf32>
    %209 = arith.mulf %207, %208 : vector<8x8xf32>
    %cst_129 = arith.constant dense<0xFF800000> : vector<8xf32>
    %210 = vector.multi_reduction <maximumf>, %209, %cst_129 [1] : vector<8x8xf32> to vector<8xf32>
    %211 = vector.shape_cast %210 : vector<8xf32> to vector<8x1xf32>
    %212 = vector.broadcast %211 : vector<8x1xf32> to vector<8x8xf32>
    %213 = arith.subf %209, %212 : vector<8x8xf32>
    %214 = math.exp %213 : vector<8x8xf32>
    %cst_130 = arith.constant dense<0.000000e+00> : vector<8xf32>
    %215 = vector.multi_reduction <add>, %214, %cst_130 [1] : vector<8x8xf32> to vector<8xf32>
    %216 = vector.shape_cast %215 : vector<8xf32> to vector<8x1xf32>
    %217 = vector.broadcast %216 : vector<8x1xf32> to vector<8x8xf32>
    %218 = arith.divf %214, %217 : vector<8x8xf32>
    %cst_131 = arith.constant dense<0.000000e+00> : vector<8x16xf32>
    %219 = tpu.matmul %218, %206, %cst_131 {dimension_numbers = #tpu.dot_dimension_numbers<[1], [0], [0], [1], [0, 0, 1, 1], [], []>} : vector<8x8xf32>, vector<8x16xf32>, vector<8x16xf32> -> vector<8x16xf32>
    %220 = vector.extract_strided_slice %201 {offsets = [0, 16], sizes = [8, 16], strides = [1, 1]} : vector<16x32xf32> to vector<8x16xf32>
    %221 = vector.extract_strided_slice %202 {offsets = [0, 16], sizes = [8, 16], strides = [1, 1]} : vector<16x32xf32> to vector<8x16xf32>
    %222 = vector.extract_strided_slice %203 {offsets = [0, 16], sizes = [8, 16], strides = [1, 1]} : vector<16x32xf32> to vector<8x16xf32>
    %cst_132 = arith.constant dense<0.000000e+00> : vector<8x8xf32>
    %223 = tpu.matmul %220, %221, %cst_132 {dimension_numbers = #tpu.dot_dimension_numbers<[1], [1], [0], [0], [0, 0, 1, 0], [], []>} : vector<8x16xf32>, vector<8x16xf32>, vector<8x8xf32> -> vector<8x8xf32>
    %cst_133 = arith.constant 2.500000e-01 : f32
    %224 = vector.broadcast %cst_133 : f32 to vector<8x8xf32>
    %225 = arith.mulf %223, %224 : vector<8x8xf32>
    %cst_134 = arith.constant dense<0xFF800000> : vector<8xf32>
    %226 = vector.multi_reduction <maximumf>, %225, %cst_134 [1] : vector<8x8xf32> to vector<8xf32>
    %227 = vector.shape_cast %226 : vector<8xf32> to vector<8x1xf32>
    %228 = vector.broadcast %227 : vector<8x1xf32> to vector<8x8xf32>
    %229 = arith.subf %225, %228 : vector<8x8xf32>
    %230 = math.exp %229 : vector<8x8xf32>
    %cst_135 = arith.constant dense<0.000000e+00> : vector<8xf32>
    %231 = vector.multi_reduction <add>, %230, %cst_135 [1] : vector<8x8xf32> to vector<8xf32>
    %232 = vector.shape_cast %231 : vector<8xf32> to vector<8x1xf32>
    %233 = vector.broadcast %232 : vector<8x1xf32> to vector<8x8xf32>
    %234 = arith.divf %230, %233 : vector<8x8xf32>
    %cst_136 = arith.constant dense<0.000000e+00> : vector<8x16xf32>
    %235 = tpu.matmul %234, %222, %cst_136 {dimension_numbers = #tpu.dot_dimension_numbers<[1], [0], [0], [1], [0, 0, 1, 1], [], []>} : vector<8x8xf32>, vector<8x16xf32>, vector<8x16xf32> -> vector<8x16xf32>
    %236 = tpu.concatenate %219, %235 in 1 : vector<8x16xf32>, vector<8x16xf32> -> vector<8x32xf32>
    %237 = vector.extract_strided_slice %201 {offsets = [8, 0], sizes = [8, 16], strides = [1, 1]} : vector<16x32xf32> to vector<8x16xf32>
    %238 = vector.extract_strided_slice %202 {offsets = [8, 0], sizes = [8, 16], strides = [1, 1]} : vector<16x32xf32> to vector<8x16xf32>
    %239 = vector.extract_strided_slice %203 {offsets = [8, 0], sizes = [8, 16], strides = [1, 1]} : vector<16x32xf32> to vector<8x16xf32>
    %cst_137 = arith.constant dense<0.000000e+00> : vector<8x8xf32>
    %240 = tpu.matmul %237, %238, %cst_137 {dimension_numbers = #tpu.dot_dimension_numbers<[1], [1], [0], [0], [0, 0, 1, 0], [], []>} : vector<8x16xf32>, vector<8x16xf32>, vector<8x8xf32> -> vector<8x8xf32>
    %cst_138 = arith.constant 2.500000e-01 : f32
    %241 = vector.broadcast %cst_138 : f32 to vector<8x8xf32>
    %242 = arith.mulf %240, %241 : vector<8x8xf32>
    %cst_139 = arith.constant dense<0xFF800000> : vector<8xf32>
    %243 = vector.multi_reduction <maximumf>, %242, %cst_139 [1] : vector<8x8xf32> to vector<8xf32>
    %244 = vector.shape_cast %243 : vector<8xf32> to vector<8x1xf32>
    %245 = vector.broadcast %244 : vector<8x1xf32> to vector<8x8xf32>
    %246 = arith.subf %242, %245 : vector<8x8xf32>
    %247 = math.exp %246 : vector<8x8xf32>
    %cst_140 = arith.constant dense<0.000000e+00> : vector<8xf32>
    %248 = vector.multi_reduction <add>, %247, %cst_140 [1] : vector<8x8xf32> to vector<8xf32>
    %249 = vector.shape_cast %248 : vector<8xf32> to vector<8x1xf32>
    %250 = vector.broadcast %249 : vector<8x1xf32> to vector<8x8xf32>
    %251 = arith.divf %247, %250 : vector<8x8xf32>
    %cst_141 = arith.constant dense<0.000000e+00> : vector<8x16xf32>
    %252 = tpu.matmul %251, %239, %cst_141 {dimension_numbers = #tpu.dot_dimension_numbers<[1], [0], [0], [1], [0, 0, 1, 1], [], []>} : vector<8x8xf32>, vector<8x16xf32>, vector<8x16xf32> -> vector<8x16xf32>
    %253 = vector.extract_strided_slice %201 {offsets = [8, 16], sizes = [8, 16], strides = [1, 1]} : vector<16x32xf32> to vector<8x16xf32>
    %254 = vector.extract_strided_slice %202 {offsets = [8, 16], sizes = [8, 16], strides = [1, 1]} : vector<16x32xf32> to vector<8x16xf32>
    %255 = vector.extract_strided_slice %203 {offsets = [8, 16], sizes = [8, 16], strides = [1, 1]} : vector<16x32xf32> to vector<8x16xf32>
    %cst_142 = arith.constant dense<0.000000e+00> : vector<8x8xf32>
    %256 = tpu.matmul %253, %254, %cst_142 {dimension_numbers = #tpu.dot_dimension_numbers<[1], [1], [0], [0], [0, 0, 1, 0], [], []>} : vector<8x16xf32>, vector<8x16xf32>, vector<8x8xf32> -> vector<8x8xf32>
    %cst_143 = arith.constant 2.500000e-01 : f32
    %257 = vector.broadcast %cst_143 : f32 to vector<8x8xf32>
    %258 = arith.mulf %256, %257 : vector<8x8xf32>
    %cst_144 = arith.constant dense<0xFF800000> : vector<8xf32>
    %259 = vector.multi_reduction <maximumf>, %258, %cst_144 [1] : vector<8x8xf32> to vector<8xf32>
    %260 = vector.shape_cast %259 : vector<8xf32> to vector<8x1xf32>
    %261 = vector.broadcast %260 : vector<8x1xf32> to vector<8x8xf32>
    %262 = arith.subf %258, %261 : vector<8x8xf32>
    %263 = math.exp %262 : vector<8x8xf32>
    %cst_145 = arith.constant dense<0.000000e+00> : vector<8xf32>
    %264 = vector.multi_reduction <add>, %263, %cst_145 [1] : vector<8x8xf32> to vector<8xf32>
    %265 = vector.shape_cast %264 : vector<8xf32> to vector<8x1xf32>
    %266 = vector.broadcast %265 : vector<8x1xf32> to vector<8x8xf32>
    %267 = arith.divf %263, %266 : vector<8x8xf32>
    %cst_146 = arith.constant dense<0.000000e+00> : vector<8x16xf32>
    %268 = tpu.matmul %267, %255, %cst_146 {dimension_numbers = #tpu.dot_dimension_numbers<[1], [0], [0], [1], [0, 0, 1, 1], [], []>} : vector<8x8xf32>, vector<8x16xf32>, vector<8x16xf32> -> vector<8x16xf32>
    %269 = tpu.concatenate %252, %268 in 1 : vector<8x16xf32>, vector<8x16xf32> -> vector<8x32xf32>
    %270 = tpu.concatenate %236, %269 in 0 : vector<8x32xf32>, vector<8x32xf32> -> vector<16x32xf32>
    %cst_147 = arith.constant dense<0.000000e+00> : vector<16x96xf32>
    %271 = tpu.matmul %270, %166, %cst_147 {dimension_numbers = #tpu.dot_dimension_numbers<[1], [0], [0], [1], [0, 0, 1, 1], [], []>} : vector<16x32xf32>, vector<32x96xf32>, vector<16x96xf32> -> vector<16x96xf32>
    %272 = arith.addf %154, %271 : vector<16x96xf32>
    %273 = vector.broadcast %168 : vector<1x96xf32> to vector<16x96xf32>
    %274 = arith.addf %272, %273 : vector<16x96xf32>
    %cst_148 = arith.constant dense<0.000000e+00> : vector<16xf32>
    %275 = vector.multi_reduction <add>, %274, %cst_148 [1] : vector<16x96xf32> to vector<16xf32>
    %276 = vector.shape_cast %275 : vector<16xf32> to vector<16x1xf32>
    %cst_149 = arith.constant 9.600000e+01 : f32
    %277 = vector.broadcast %cst_149 : f32 to vector<16x1xf32>
    %278 = arith.divf %276, %277 : vector<16x1xf32>
    %279 = vector.broadcast %278 : vector<16x1xf32> to vector<16x96xf32>
    %280 = arith.subf %274, %279 : vector<16x96xf32>
    %281 = arith.mulf %280, %280 : vector<16x96xf32>
    %cst_150 = arith.constant dense<0.000000e+00> : vector<16xf32>
    %282 = vector.multi_reduction <add>, %281, %cst_150 [1] : vector<16x96xf32> to vector<16xf32>
    %283 = vector.shape_cast %282 : vector<16xf32> to vector<16x1xf32>
    %cst_151 = arith.constant 9.600000e+01 : f32
    %284 = vector.broadcast %cst_151 : f32 to vector<16x1xf32>
    %285 = arith.divf %283, %284 : vector<16x1xf32>
    %cst_152 = arith.constant 9.99999974E-6 : f32
    %286 = vector.broadcast %cst_152 : f32 to vector<16x1xf32>
    %287 = arith.addf %285, %286 : vector<16x1xf32>
    %288 = math.rsqrt %287 : vector<16x1xf32>
    %289 = vector.broadcast %288 : vector<16x1xf32> to vector<16x96xf32>
    %290 = arith.mulf %280, %289 : vector<16x96xf32>
    %291 = vector.broadcast %170 : vector<1x96xf32> to vector<16x96xf32>
    %292 = arith.mulf %290, %291 : vector<16x96xf32>
    %293 = vector.broadcast %172 : vector<1x96xf32> to vector<16x96xf32>
    %294 = arith.addf %292, %293 : vector<16x96xf32>
    %cst_153 = arith.constant dense<0.000000e+00> : vector<16x48xf32>
    %295 = tpu.matmul %294, %174, %cst_153 {dimension_numbers = #tpu.dot_dimension_numbers<[1], [0], [0], [1], [0, 0, 1, 1], [], []>} : vector<16x96xf32>, vector<96x48xf32>, vector<16x48xf32> -> vector<16x48xf32>
    %296 = vector.broadcast %176 : vector<1x48xf32> to vector<16x48xf32>
    %297 = arith.addf %295, %296 : vector<16x48xf32>
    %298 = math.tanh %297 : vector<16x48xf32>
    %cst_154 = arith.constant dense<0.000000e+00> : vector<16x96xf32>
    %299 = tpu.matmul %298, %178, %cst_154 {dimension_numbers = #tpu.dot_dimension_numbers<[1], [0], [0], [1], [0, 0, 1, 1], [], []>} : vector<16x48xf32>, vector<48x96xf32>, vector<16x96xf32> -> vector<16x96xf32>
    %300 = arith.addf %274, %299 : vector<16x96xf32>
    %301 = vector.broadcast %180 : vector<1x96xf32> to vector<16x96xf32>
    %302 = arith.addf %300, %301 : vector<16x96xf32>
    %c0_155 = arith.constant 0 : index
    %c0_156 = arith.constant 0 : index
    %303 = vector.load %arg17[%c0_155, %c0_156] : memref<1x96xf32, #tpu.memory_space<vmem>>, vector<1x96xf32>
    %c0_157 = arith.constant 0 : index
    %c0_158 = arith.constant 0 : index
    %304 = vector.load %arg18[%c0_157, %c0_158] : memref<1x96xf32, #tpu.memory_space<vmem>>, vector<1x96xf32>
    %cst_159 = arith.constant dense<0.000000e+00> : vector<16xf32>
    %305 = vector.multi_reduction <add>, %302, %cst_159 [1] : vector<16x96xf32> to vector<16xf32>
    %306 = vector.shape_cast %305 : vector<16xf32> to vector<16x1xf32>
    %cst_160 = arith.constant 9.600000e+01 : f32
    %307 = vector.broadcast %cst_160 : f32 to vector<16x1xf32>
    %308 = arith.divf %306, %307 : vector<16x1xf32>
    %309 = vector.broadcast %308 : vector<16x1xf32> to vector<16x96xf32>
    %310 = arith.subf %302, %309 : vector<16x96xf32>
    %311 = arith.mulf %310, %310 : vector<16x96xf32>
    %cst_161 = arith.constant dense<0.000000e+00> : vector<16xf32>
    %312 = vector.multi_reduction <add>, %311, %cst_161 [1] : vector<16x96xf32> to vector<16xf32>
    %313 = vector.shape_cast %312 : vector<16xf32> to vector<16x1xf32>
    %cst_162 = arith.constant 9.600000e+01 : f32
    %314 = vector.broadcast %cst_162 : f32 to vector<16x1xf32>
    %315 = arith.divf %313, %314 : vector<16x1xf32>
    %cst_163 = arith.constant 9.99999974E-6 : f32
    %316 = vector.broadcast %cst_163 : f32 to vector<16x1xf32>
    %317 = arith.addf %315, %316 : vector<16x1xf32>
    %318 = math.rsqrt %317 : vector<16x1xf32>
    %319 = vector.broadcast %318 : vector<16x1xf32> to vector<16x96xf32>
    %320 = arith.mulf %310, %319 : vector<16x96xf32>
    %321 = vector.broadcast %303 : vector<1x96xf32> to vector<16x96xf32>
    %322 = arith.mulf %320, %321 : vector<16x96xf32>
    %323 = vector.broadcast %304 : vector<1x96xf32> to vector<16x96xf32>
    %324 = arith.addf %322, %323 : vector<16x96xf32>
    %325 = vector.shape_cast %324 : vector<16x96xf32> to vector<2x8x96xf32>
    %c0_164 = arith.constant 0 : index
    %c0_165 = arith.constant 0 : index
    %c0_166 = arith.constant 0 : index
    %326 = vector.load %arg19[%c0_164, %c0_165, %c0_166] : memref<2x8x96xf32, #tpu.memory_space<vmem>>, vector<2x8x96xf32>
    tpu.vector_store %arg19[%c0_164, %c0_165, %c0_166], %325 {strides = array<i32>} : memref<2x8x96xf32, #tpu.memory_space<vmem>>, vector<2x8x96xf32>,
    return
  }
  func.func @transform_0(%arg0: i32) -> (i32, i32, i32) {
    %c0_i32 = arith.constant 0 : i32
    %c0_i32_0 = arith.constant 0 : i32
    %c0_i32_1 = arith.constant 0 : i32
    return %arg0, %c0_i32, %c0_i32_0 : i32, i32, i32
  }
  func.func @transform_1(%arg0: i32) -> (i32, i32) {
    %c0_i32 = arith.constant 0 : i32
    %c0_i32_0 = arith.constant 0 : i32
    %c0_i32_1 = arith.constant 0 : i32
    return %c0_i32, %c0_i32_0 : i32, i32
  }
  func.func @transform_2(%arg0: i32) -> (i32, i32) {
    %c0_i32 = arith.constant 0 : i32
    %c0_i32_0 = arith.constant 0 : i32
    %c0_i32_1 = arith.constant 0 : i32
    return %c0_i32, %c0_i32_0 : i32, i32
  }
  func.func @transform_3(%arg0: i32) -> (i32, i32, i32) {
    %c0_i32 = arith.constant 0 : i32
    %c0_i32_0 = arith.constant 0 : i32
    %c0_i32_1 = arith.constant 0 : i32
    %c0_i32_2 = arith.constant 0 : i32
    return %c0_i32, %c0_i32_0, %c0_i32_1 : i32, i32, i32
  }
  func.func @transform_4(%arg0: i32) -> (i32, i32, i32) {
    %c0_i32 = arith.constant 0 : i32
    %c0_i32_0 = arith.constant 0 : i32
    %c0_i32_1 = arith.constant 0 : i32
    %c0_i32_2 = arith.constant 0 : i32
    return %c0_i32, %c0_i32_0, %c0_i32_1 : i32, i32, i32
  }
  func.func @transform_5(%arg0: i32) -> (i32, i32, i32) {
    %c0_i32 = arith.constant 0 : i32
    %c0_i32_0 = arith.constant 0 : i32
    %c0_i32_1 = arith.constant 0 : i32
    %c0_i32_2 = arith.constant 0 : i32
    return %c0_i32, %c0_i32_0, %c0_i32_1 : i32, i32, i32
  }
  func.func @transform_6(%arg0: i32) -> (i32, i32, i32) {
    %c0_i32 = arith.constant 0 : i32
    %c0_i32_0 = arith.constant 0 : i32
    %c0_i32_1 = arith.constant 0 : i32
    %c0_i32_2 = arith.constant 0 : i32
    return %c0_i32, %c0_i32_0, %c0_i32_1 : i32, i32, i32
  }
  func.func @transform_7(%arg0: i32) -> (i32, i32, i32) {
    %c0_i32 = arith.constant 0 : i32
    %c0_i32_0 = arith.constant 0 : i32
    %c0_i32_1 = arith.constant 0 : i32
    %c0_i32_2 = arith.constant 0 : i32
    return %c0_i32, %c0_i32_0, %c0_i32_1 : i32, i32, i32
  }
  func.func @transform_8(%arg0: i32) -> (i32, i32, i32) {
    %c0_i32 = arith.constant 0 : i32
    %c0_i32_0 = arith.constant 0 : i32
    %c0_i32_1 = arith.constant 0 : i32
    %c0_i32_2 = arith.constant 0 : i32
    return %c0_i32, %c0_i32_0, %c0_i32_1 : i32, i32, i32
  }
  func.func @transform_9(%arg0: i32) -> (i32, i32, i32) {
    %c0_i32 = arith.constant 0 : i32
    %c0_i32_0 = arith.constant 0 : i32
    %c0_i32_1 = arith.constant 0 : i32
    %c0_i32_2 = arith.constant 0 : i32
    return %c0_i32, %c0_i32_0, %c0_i32_1 : i32, i32, i32
  }
  func.func @transform_10(%arg0: i32) -> (i32, i32, i32) {
    %c0_i32 = arith.constant 0 : i32
    %c0_i32_0 = arith.constant 0 : i32
    %c0_i32_1 = arith.constant 0 : i32
    %c0_i32_2 = arith.constant 0 : i32
    return %c0_i32, %c0_i32_0, %c0_i32_1 : i32, i32, i32
  }
  func.func @transform_11(%arg0: i32) -> (i32, i32, i32) {
    %c0_i32 = arith.constant 0 : i32
    %c0_i32_0 = arith.constant 0 : i32
    %c0_i32_1 = arith.constant 0 : i32
    %c0_i32_2 = arith.constant 0 : i32
    return %c0_i32, %c0_i32_0, %c0_i32_1 : i32, i32, i32
  }
  func.func @transform_12(%arg0: i32) -> (i32, i32, i32) {
    %c0_i32 = arith.constant 0 : i32
    %c0_i32_0 = arith.constant 0 : i32
    %c0_i32_1 = arith.constant 0 : i32
    %c0_i32_2 = arith.constant 0 : i32
    return %c0_i32, %c0_i32_0, %c0_i32_1 : i32, i32, i32
  }
  func.func @transform_13(%arg0: i32) -> (i32, i32, i32) {
    %c0_i32 = arith.constant 0 : i32
    %c0_i32_0 = arith.constant 0 : i32
    %c0_i32_1 = arith.constant 0 : i32
    %c0_i32_2 = arith.constant 0 : i32
    return %c0_i32, %c0_i32_0, %c0_i32_1 : i32, i32, i32
  }
  func.func @transform_14(%arg0: i32) -> (i32, i32, i32) {
    %c0_i32 = arith.constant 0 : i32
    %c0_i32_0 = arith.constant 0 : i32
    %c0_i32_1 = arith.constant 0 : i32
    %c0_i32_2 = arith.constant 0 : i32
    return %c0_i32, %c0_i32_0, %c0_i32_1 : i32, i32, i32
  }
  func.func @transform_15(%arg0: i32) -> (i32, i32, i32) {
    %c0_i32 = arith.constant 0 : i32
    %c0_i32_0 = arith.constant 0 : i32
    %c0_i32_1 = arith.constant 0 : i32
    %c0_i32_2 = arith.constant 0 : i32
    return %c0_i32, %c0_i32_0, %c0_i32_1 : i32, i32, i32
  }
  func.func @transform_16(%arg0: i32) -> (i32, i32) {
    %c0_i32 = arith.constant 0 : i32
    %c0_i32_0 = arith.constant 0 : i32
    %c0_i32_1 = arith.constant 0 : i32
    return %c0_i32, %c0_i32_0 : i32, i32
  }
  func.func @transform_17(%arg0: i32) -> (i32, i32) {
    %c0_i32 = arith.constant 0 : i32
    %c0_i32_0 = arith.constant 0 : i32
    %c0_i32_1 = arith.constant 0 : i32
    return %c0_i32, %c0_i32_0 : i32, i32
  }
  func.func @transform_18(%arg0: i32) -> (i32, i32, i32) {
    %c0_i32 = arith.constant 0 : i32
    %c0_i32_0 = arith.constant 0 : i32
    %c0_i32_1 = arith.constant 0 : i32
    return %arg0, %c0_i32, %c0_i32_0 : i32, i32, i32
  }
}

</mosaic_0001>

<llo_original>
// kernel: tpu_custom_call.1
$region0: #{tpu_custom_call.1}
  #allocation0 [shape = 'u32[]', space=smem, size = 0x4, offset = 0x4, fixed_abs, tag = 'smem constant byte address 0x4 - core index']
  #allocation1 [shape = 'u32[144,128]{1,0:T(1,128)}', space=vmem, size = 0x12000, scoped, tag = 'internal scratch']
  %s0 = inlined_call_operand.vmem [shape: f32[2,8,512], index: 0, kind: input, shape index: {}]
  %s1 = inlined_call_operand.vmem [shape: f32[512,96], index: 1, kind: input, shape index: {}]
  %s2 = inlined_call_operand.vmem [shape: f32[8,96], index: 2, kind: input, shape index: {}]
  %s3 = inlined_call_operand.vmem [shape: f32[2,1,96], index: 3, kind: input, shape index: {}]
  %s4 = inlined_call_operand.vmem [shape: f32[2,1,96], index: 4, kind: input, shape index: {}]
  %s5 = inlined_call_operand.vmem [shape: f32[2,96,32], index: 5, kind: input, shape index: {}]
  %s6 = inlined_call_operand.vmem [shape: f32[2,96,32], index: 6, kind: input, shape index: {}]
  %s7 = inlined_call_operand.vmem [shape: f32[2,96,32], index: 7, kind: input, shape index: {}]
  %s8 = inlined_call_operand.vmem [shape: f32[2,32,96], index: 8, kind: input, shape index: {}]
  %s9 = inlined_call_operand.vmem [shape: f32[2,1,96], index: 9, kind: input, shape index: {}]
  %s10 = inlined_call_operand.vmem [shape: f32[2,1,96], index: 10, kind: input, shape index: {}]
  %s11 = inlined_call_operand.vmem [shape: f32[2,1,96], index: 11, kind: input, shape index: {}]
  %s12 = inlined_call_operand.vmem [shape: f32[2,96,48], index: 12, kind: input, shape index: {}]
  %s13 = inlined_call_operand.vmem [shape: f32[2,1,48], index: 13, kind: input, shape index: {}]
  %s14 = inlined_call_operand.vmem [shape: f32[2,48,96], index: 14, kind: input, shape index: {}]
  %s15 = inlined_call_operand.vmem [shape: f32[2,1,96], index: 15, kind: input, shape index: {}]
  %s16 = inlined_call_operand.vmem [shape: f32[1,96], index: 16, kind: input, shape index: {}]
  %s17 = inlined_call_operand.vmem [shape: f32[1,96], index: 17, kind: input, shape index: {}]
  %s18 = inlined_call_operand.hbm [shape: f32[2,8,96], index: 18, kind: output, shape index: {}]
  %s19 = sld [smem:[#allocation0]]
  $region82: #{tpu_custom_call.1} parent=0
    _
  %s21 = ssub.s32 1, %s19
  %s22 = scalar_select 0, %s21, %s19
  $region1: #{tpu_custom_call.1} parent=0
    #allocation2 [shape = 'u8[8192]{0}', space=vmem, size = 0x2000, scoped, tag = 'output window, operand 0, single buffered']
    #allocation3 [shape = 's32[1]{0}', space=sflag, size = 0x4, scoped, tag = 'scoped memory for tpu_custom_call.1']
    %23 = vsyncpa [#allocation3], 0
    // Predicated region
    $region2: #{tpu_custom_call.1} parent=1 // pred_check
      _
    $region3: #{tpu_custom_call.1} parent=1 // pred_check_branch
      %25 = sbr.rel (0) target = $region5
    $region4: #{tpu_custom_call.1} parent=1 // pred_region
      _
    $region5: #{tpu_custom_call.1} parent=1 // pred_fallthru
      _
    // Predicated region
    $region6: #{tpu_custom_call.1} parent=1 // pred_check
      _
    $region7: #{tpu_custom_call.1} parent=1 // pred_check_branch
      %27 = sbr.rel (0) target = $region9
    $region8: #{tpu_custom_call.1} parent=1 // pred_region
      _
    $region9: #{tpu_custom_call.1} parent=1 // pred_fallthru
      _
    // Predicated region
    $region10: #{tpu_custom_call.1} parent=1 // pred_check
      _
    $region11: #{tpu_custom_call.1} parent=1 // pred_check_branch
      %29 = sbr.rel (0) target = $region13
    $region12: #{tpu_custom_call.1} parent=1 // pred_region
      _
    $region13: #{tpu_custom_call.1} parent=1 // pred_fallthru
      _
    // Predicated region
    $region14: #{tpu_custom_call.1} parent=1 // pred_check
      _
    $region15: #{tpu_custom_call.1} parent=1 // pred_check_branch
      %31 = sbr.rel (0) target = $region17
    $region16: #{tpu_custom_call.1} parent=1 // pred_region
      _
    $region17: #{tpu_custom_call.1} parent=1 // pred_fallthru
      _
    // Predicated region
    $region18: #{tpu_custom_call.1} parent=1 // pred_check
      _
    $region19: #{tpu_custom_call.1} parent=1 // pred_check_branch
      %33 = sbr.rel (0) target = $region21
    $region20: #{tpu_custom_call.1} parent=1 // pred_region
      _
    $region21: #{tpu_custom_call.1} parent=1 // pred_fallthru
      _
    // Predicated region
    $region22: #{tpu_custom_call.1} parent=1 // pred_check
      _
    $region23: #{tpu_custom_call.1} parent=1 // pred_check_branch
      %35 = sbr.rel (0) target = $region25
    $region24: #{tpu_custom_call.1} parent=1 // pred_region
      _
    $region25: #{tpu_custom_call.1} parent=1 // pred_fallthru
      _
    // Predicated region
    $region26: #{tpu_custom_call.1} parent=1 // pred_check
      _
    $region27: #{tpu_custom_call.1} parent=1 // pred_check_branch
      %37 = sbr.rel (0) target = $region29
    $region28: #{tpu_custom_call.1} parent=1 // pred_region
      _
    $region29: #{tpu_custom_call.1} parent=1 // pred_fallthru
      _
    // Predicated region
    $region30: #{tpu_custom_call.1} parent=1 // pred_check
      _
    $region31: #{tpu_custom_call.1} parent=1 // pred_check_branch
      %39 = sbr.rel (0) target = $region33
    $region32: #{tpu_custom_call.1} parent=1 // pred_region
      _
    $region33: #{tpu_custom_call.1} parent=1 // pred_fallthru
      _
    // Predicated region
    $region34: #{tpu_custom_call.1} parent=1 // pred_check
      _
    $region35: #{tpu_custom_call.1} parent=1 // pred_check_branch
      %41 = sbr.rel (0) target = $region37
    $region36: #{tpu_custom_call.1} parent=1 // pred_region
      _
    $region37: #{tpu_custom_call.1} parent=1 // pred_fallthru
      _
    // Predicated region
    $region38: #{tpu_custom_call.1} parent=1 // pred_check
      _
    $region39: #{tpu_custom_call.1} parent=1 // pred_check_branch
      %43 = sbr.rel (0) target = $region41
    $region40: #{tpu_custom_call.1} parent=1 // pred_region
      _
    $region41: #{tpu_custom_call.1} parent=1 // pred_fallthru
      _
    // Predicated region
    $region42: #{tpu_custom_call.1} parent=1 // pred_check
      _
    $region43: #{tpu_custom_call.1} parent=1 // pred_check_branch
      %45 = sbr.rel (0) target = $region45
    $region44: #{tpu_custom_call.1} parent=1 // pred_region
      _
    $region45: #{tpu_custom_call.1} parent=1 // pred_fallthru
      _
    // Predicated region
    $region46: #{tpu_custom_call.1} parent=1 // pred_check
      _
    $region47: #{tpu_custom_call.1} parent=1 // pred_check_branch
      %47 = sbr.rel (0) target = $region49
    $region48: #{tpu_custom_call.1} parent=1 // pred_region
      _
    $region49: #{tpu_custom_call.1} parent=1 // pred_fallthru
      _
    // Predicated region
    $region50: #{tpu_custom_call.1} parent=1 // pred_check
      _
    $region51: #{tpu_custom_call.1} parent=1 // pred_check_branch
      %49 = sbr.rel (0) target = $region53
    $region52: #{tpu_custom_call.1} parent=1 // pred_region
      _
    $region53: #{tpu_custom_call.1} parent=1 // pred_fallthru
      _
    // Predicated region
    $region54: #{tpu_custom_call.1} parent=1 // pred_check
      _
    $region55: #{tpu_custom_call.1} parent=1 // pred_check_branch
      %51 = sbr.rel (0) target = $region57
    $region56: #{tpu_custom_call.1} parent=1 // pred_region
      _
    $region57: #{tpu_custom_call.1} parent=1 // pred_fallthru
      _
    // Predicated region
    $region58: #{tpu_custom_call.1} parent=1 // pred_check
      _
    $region59: #{tpu_custom_call.1} parent=1 // pred_check_branch
      %53 = sbr.rel (0) target = $region61
    $region60: #{tpu_custom_call.1} parent=1 // pred_region
      _
    $region61: #{tpu_custom_call.1} parent=1 // pred_fallthru
      _
    // Predicated region
    $region62: #{tpu_custom_call.1} parent=1 // pred_check
      _
    $region63: #{tpu_custom_call.1} parent=1 // pred_check_branch
      %55 = sbr.rel (0) target = $region65
    $region64: #{tpu_custom_call.1} parent=1 // pred_region
      _
    $region65: #{tpu_custom_call.1} parent=1 // pred_fallthru
      _
    // Predicated region
    $region66: #{tpu_custom_call.1} parent=1 // pred_check
      _
    $region67: #{tpu_custom_call.1} parent=1 // pred_check_branch
      %57 = sbr.rel (0) target = $region69
    $region68: #{tpu_custom_call.1} parent=1 // pred_region
      _
    $region69: #{tpu_custom_call.1} parent=1 // pred_fallthru
      _
    // Predicated region
    $region70: #{tpu_custom_call.1} parent=1 // pred_check
      _
    $region71: #{tpu_custom_call.1} parent=1 // pred_check_branch
      %59 = sbr.rel (0) target = $region73
    $region72: #{tpu_custom_call.1} parent=1 // pred_region
      _
    $region73: #{tpu_custom_call.1} parent=1 // pred_fallthru
      _
    %v60 = vld [vmem:[%s0] sm:$0xff]
    %v61 = vld [vmem:[%s0 + $0x8] sm:$0xff]
    %v62 = vld [vmem:[%s0 + $0x10] sm:$0xff]
    %v63 = vld [vmem:[%s0 + $0x18] sm:$0xff]
    %v64 = vld [vmem:[%s0 + $0x20] sm:$0xff]
    %v65 = vld [vmem:[%s0 + $0x28] sm:$0xff]
    %v66 = vld [vmem:[%s0 + $0x30] sm:$0xff]
    %v67 = vld [vmem:[%s0 + $0x38] sm:$0xff]
    %v68 = vld [vmem:[%s2] sm:$0xff]
    %v69 = vld [vmem:[%s1] sm:$0xff]
    %v70 = vld [vmem:[%s1 + $0x8] sm:$0xff]
    %v71 = vld [vmem:[%s1 + $0x10] sm:$0xff]
    %v72 = vld [vmem:[%s1 + $0x18] sm:$0xff]
    %v73 = vld [vmem:[%s1 + $0x20] sm:$0xff]
    %v74 = vld [vmem:[%s1 + $0x28] sm:$0xff]
    %v75 = vld [vmem:[%s1 + $0x30] sm:$0xff]
    %v76 = vld [vmem:[%s1 + $0x38] sm:$0xff]
    %v77 = vld [vmem:[%s1 + $0x40] sm:$0xff]
    %v78 = vld [vmem:[%s1 + $0x48] sm:$0xff]
    %v79 = vld [vmem:[%s1 + $0x50] sm:$0xff]
    %v80 = vld [vmem:[%s1 + $0x58] sm:$0xff]
    %v81 = vld [vmem:[%s1 + $0x60] sm:$0xff]
    %v82 = vld [vmem:[%s1 + $0x68] sm:$0xff]
    %v83 = vld [vmem:[%s1 + $0x70] sm:$0xff]
    %v84 = vld [vmem:[%s1 + $0x78] sm:$0xff]
    %v85 = vld [vmem:[%s1 + $0x80] sm:$0xff]
    %v86 = vld [vmem:[%s1 + $0x88] sm:$0xff]
    %v87 = vld [vmem:[%s1 + $0x90] sm:$0xff]
    %v88 = vld [vmem:[%s1 + $0x98] sm:$0xff]
    %v89 = vld [vmem:[%s1 + $0xa0] sm:$0xff]
    %v90 = vld [vmem:[%s1 + $0xa8] sm:$0xff]
    %v91 = vld [vmem:[%s1 + $0xb0] sm:$0xff]
    %v92 = vld [vmem:[%s1 + $0xb8] sm:$0xff]
    %v93 = vld [vmem:[%s1 + $0xc0] sm:$0xff]
    %v94 = vld [vmem:[%s1 + $0xc8] sm:$0xff]
    %v95 = vld [vmem:[%s1 + $0xd0] sm:$0xff]
    %v96 = vld [vmem:[%s1 + $0xd8] sm:$0xff]
    %v97 = vld [vmem:[%s1 + $0xe0] sm:$0xff]
    %v98 = vld [vmem:[%s1 + $0xe8] sm:$0xff]
    %v99 = vld [vmem:[%s1 + $0xf0] sm:$0xff]
    %v100 = vld [vmem:[%s1 + $0xf8] sm:$0xff]
    %v101 = vld [vmem:[%s1 + $0x100] sm:$0xff]
    %v102 = vld [vmem:[%s1 + $0x108] sm:$0xff]
    %v103 = vld [vmem:[%s1 + $0x110] sm:$0xff]
    %v104 = vld [vmem:[%s1 + $0x118] sm:$0xff]
    %v105 = vld [vmem:[%s1 + $0x120] sm:$0xff]
    %v106 = vld [vmem:[%s1 + $0x128] sm:$0xff]
    %v107 = vld [vmem:[%s1 + $0x130] sm:$0xff]
    %v108 = vld [vmem:[%s1 + $0x138] sm:$0xff]
    %v109 = vld [vmem:[%s1 + $0x140] sm:$0xff]
    %v110 = vld [vmem:[%s1 + $0x148] sm:$0xff]
    %v111 = vld [vmem:[%s1 + $0x150] sm:$0xff]
    %v112 = vld [vmem:[%s1 + $0x158] sm:$0xff]
    %v113 = vld [vmem:[%s1 + $0x160] sm:$0xff]
    %v114 = vld [vmem:[%s1 + $0x168] sm:$0xff]
    %v115 = vld [vmem:[%s1 + $0x170] sm:$0xff]
    %v116 = vld [vmem:[%s1 + $0x178] sm:$0xff]
    %v117 = vld [vmem:[%s1 + $0x180] sm:$0xff]
    %v118 = vld [vmem:[%s1 + $0x188] sm:$0xff]
    %v119 = vld [vmem:[%s1 + $0x190] sm:$0xff]
    %v120 = vld [vmem:[%s1 + $0x198] sm:$0xff]
    %v121 = vld [vmem:[%s1 + $0x1a0] sm:$0xff]
    %v122 = vld [vmem:[%s1 + $0x1a8] sm:$0xff]
    %v123 = vld [vmem:[%s1 + $0x1b0] sm:$0xff]
    %v124 = vld [vmem:[%s1 + $0x1b8] sm:$0xff]
    %v125 = vld [vmem:[%s1 + $0x1c0] sm:$0xff]
    %v126 = vld [vmem:[%s1 + $0x1c8] sm:$0xff]
    %v127 = vld [vmem:[%s1 + $0x1d0] sm:$0xff]
    %v128 = vld [vmem:[%s1 + $0x1d8] sm:$0xff]
    %v129 = vld [vmem:[%s1 + $0x1e0] sm:$0xff]
    %v130 = vld [vmem:[%s1 + $0x1e8] sm:$0xff]
    %v131 = vld [vmem:[%s1 + $0x1f0] sm:$0xff]
    %v132 = vld [vmem:[%s1 + $0x1f8] sm:$0xff]
    %133 = vmatprep.subr.mxu0 0.0
    %134 = vmatpush1.msra.mxu0 %v69
    %135 = vmatprep.subr.mxu0 0.0
    %136 = vmatpush1.msra.mxu0 %v70
    %137 = vmatprep.subr.mxu0 0.0
    %138 = vmatpush1.msra.mxu0 %v71
    %139 = vmatprep.subr.mxu0 0.0
    %140 = vmatpush1.msra.mxu0 %v72
    %141 = vmatprep.subr.mxu0 0.0
    %142 = vmatpush1.msra.mxu0 %v73
    %143 = vmatprep.subr.mxu0 0.0
    %144 = vmatpush1.msra.mxu0 %v74
    %145 = vmatprep.subr.mxu0 0.0
    %146 = vmatpush1.msra.mxu0 %v75
    %147 = vmatprep.subr.mxu0 0.0
    %148 = vmatpush1.msra.mxu0 %v76
    %149 = vmatprep.subr.mxu0 0.0
    %150 = vmatpush1.msra.mxu0 %v77
    %151 = vmatprep.subr.mxu0 0.0
    %152 = vmatpush1.msra.mxu0 %v78
    %153 = vmatprep.subr.mxu0 0.0
    %154 = vmatpush1.msra.mxu0 %v79
    %155 = vmatprep.subr.mxu0 0.0
    %156 = vmatpush1.msra.mxu0 %v80
    %157 = vmatprep.subr.mxu0 0.0
    %158 = vmatpush1.msra.mxu0 %v81
    %159 = vmatprep.subr.mxu0 0.0
    %160 = vmatpush1.msra.mxu0 %v82
    %161 = vmatprep.subr.mxu0 0.0
    %162 = vmatpush1.msra.mxu0 %v83
    %163 = vmatprep.subr.mxu0 0.0
    %164 = vmatpush1.msra.mxu0 %v84
    %165 = vmatprep.subr.mxu0 0.0
    %166 = vmatpush1.msra.mxu0 %v85
    %167 = vmatprep.subr.mxu0 0.0
    %168 = vmatpush1.msra.mxu0 %v86
    %169 = vmatprep.subr.mxu0 0.0
    %170 = vmatpush1.msra.mxu0 %v87
    %171 = vmatprep.subr.mxu0 0.0
    %172 = vmatpush1.msra.mxu0 %v88
    %173 = vmatprep.subr.mxu0 0.0
    %174 = vmatpush1.msra.mxu0 %v89
    %175 = vmatprep.subr.mxu0 0.0
    %176 = vmatpush1.msra.mxu0 %v90
    %177 = vmatprep.subr.mxu0 0.0
    %178 = vmatpush1.msra.mxu0 %v91
    %179 = vmatprep.subr.mxu0 0.0
    %180 = vmatpush1.msra.mxu0 %v92
    %181 = vmatprep.subr.mxu0 0.0
    %182 = vmatpush1.msra.mxu0 %v93
    %183 = vmatprep.subr.mxu0 0.0
    %184 = vmatpush1.msra.mxu0 %v94
    %185 = vmatprep.subr.mxu0 0.0
    %186 = vmatpush1.msra.mxu0 %v95
    %187 = vmatprep.subr.mxu0 0.0
    %188 = vmatpush1.msra.mxu0 %v96
    %189 = vmatprep.subr.mxu0 0.0
    %190 = vmatpush1.msra.mxu0 %v97
    %191 = vmatprep.subr.mxu0 0.0
    %192 = vmatpush1.msra.mxu0 %v98
    %193 = vmatprep.subr.mxu0 0.0
    %194 = vmatpush1.msra.mxu0 %v99
    %195 = vmatprep.subr.mxu0 0.0
    %196 = vmatpush1.msra.mxu0 %v100
    %197 = vmatprep.mubr.f32.mxu0 %v61
    %198 = vmatmul.mubr.f32.gmra.mrb[0].mxu0 %v60
    %v199 = vpop.f32.mrb[0].mxu0
    %v200 = vadd.f32 %v68, %v199
    %v201 = vpop.f32.mrb[0].mxu0
    %202 = vmatprep.mubr.f32.mxu0 %v65
    %203 = vmatmul.mubr.f32.gmra.mrb[0].mxu0 %v64
    %v204 = vpop.f32.mrb[0].mxu0
    %v205 = vadd.f32 %v68, %v204
    %v206 = vpop.f32.mrb[0].mxu0
    %207 = vdwg.mxu0
    %208 = vmatprep.subr.mxu0 0.0
    %209 = vmatpush1.msra.mxu0 %v101
    %210 = vmatprep.subr.mxu0 0.0
    %211 = vmatpush1.msra.mxu0 %v102
    %212 = vmatprep.subr.mxu0 0.0
    %213 = vmatpush1.msra.mxu0 %v103
    %214 = vmatprep.subr.mxu0 0.0
    %215 = vmatpush1.msra.mxu0 %v104
    %216 = vmatprep.subr.mxu0 0.0
    %217 = vmatpush1.msra.mxu0 %v105
    %218 = vmatprep.subr.mxu0 0.0
    %219 = vmatpush1.msra.mxu0 %v106
    %220 = vmatprep.subr.mxu0 0.0
    %221 = vmatpush1.msra.mxu0 %v107
    %222 = vmatprep.subr.mxu0 0.0
    %223 = vmatpush1.msra.mxu0 %v108
    %224 = vmatprep.subr.mxu0 0.0
    %225 = vmatpush1.msra.mxu0 %v109
    %226 = vmatprep.subr.mxu0 0.0
    %227 = vmatpush1.msra.mxu0 %v110
    %228 = vmatprep.subr.mxu0 0.0
    %229 = vmatpush1.msra.mxu0 %v111
    %230 = vmatprep.subr.mxu0 0.0
    %231 = vmatpush1.msra.mxu0 %v112
    %232 = vmatprep.subr.mxu0 0.0
    %233 = vmatpush1.msra.mxu0 %v113
    %234 = vmatprep.subr.mxu0 0.0
    %235 = vmatpush1.msra.mxu0 %v114
    %236 = vmatprep.subr.mxu0 0.0
    %237 = vmatpush1.msra.mxu0 %v115
    %238 = vmatprep.subr.mxu0 0.0
    %239 = vmatpush1.msra.mxu0 %v116
    %240 = vmatprep.subr.mxu0 0.0
    %241 = vmatpush1.msra.mxu0 %v117
    %242 = vmatprep.subr.mxu0 0.0
    %243 = vmatpush1.msra.mxu0 %v118
    %244 = vmatprep.subr.mxu0 0.0
    %245 = vmatpush1.msra.mxu0 %v119
    %246 = vmatprep.subr.mxu0 0.0
    %247 = vmatpush1.msra.mxu0 %v120
    %248 = vmatprep.subr.mxu0 0.0
    %249 = vmatpush1.msra.mxu0 %v121
    %250 = vmatprep.subr.mxu0 0.0
    %251 = vmatpush1.msra.mxu0 %v122
    %252 = vmatprep.subr.mxu0 0.0
    %253 = vmatpush1.msra.mxu0 %v123
    %254 = vmatprep.subr.mxu0 0.0
    %255 = vmatpush1.msra.mxu0 %v124
    %256 = vmatprep.subr.mxu0 0.0
    %257 = vmatpush1.msra.mxu0 %v125
    %258 = vmatprep.subr.mxu0 0.0
    %259 = vmatpush1.msra.mxu0 %v126
    %260 = vmatprep.subr.mxu0 0.0
    %261 = vmatpush1.msra.mxu0 %v127
    %262 = vmatprep.subr.mxu0 0.0
    %263 = vmatpush1.msra.mxu0 %v128
    %264 = vmatprep.subr.mxu0 0.0
    %265 = vmatpush1.msra.mxu0 %v129
    %266 = vmatprep.subr.mxu0 0.0
    %267 = vmatpush1.msra.mxu0 %v130
    %268 = vmatprep.subr.mxu0 0.0
    %269 = vmatpush1.msra.mxu0 %v131
    %270 = vmatprep.subr.mxu0 0.0
    %271 = vmatpush1.msra.mxu0 %v132
    %272 = vmatprep.mubr.f32.mxu0 %v63
    %273 = vmatmul.mubr.f32.gmra.mrb[0].mxu0 %v62
    %v274 = vpop.f32.mrb[0].mxu0
    %v275 = vadd.f32 %v200, %v274
    %v276 = vpop.f32.mrb[0].mxu0
    %277 = vmatprep.mubr.f32.mxu0 %v67
    %278 = vmatmul.mubr.f32.gmra.mrb[0].mxu0 %v66
    %v279 = vpop.f32.mrb[0].mxu0
    %v280 = vadd.f32 %v205, %v279
    %v281 = vpop.f32.mrb[0].mxu0
    %282 = vdwg.mxu0
    %v283 = vld [vmem:[%s3] sm:$0x1]
    %v284 = vld [vmem:[%s4] sm:$0x1]
    %v285 = vld [vmem:[%s5] sm:$0xff]
    %v286 = vld [vmem:[%s5 + $0x8] sm:$0xff]
    %v287 = vld [vmem:[%s5 + $0x10] sm:$0xff]
    %v288 = vld [vmem:[%s5 + $0x18] sm:$0xff]
    %v289 = vld [vmem:[%s5 + $0x20] sm:$0xff]
    %v290 = vld [vmem:[%s5 + $0x28] sm:$0xff]
    %v291 = vld [vmem:[%s5 + $0x30] sm:$0xff]
    %v292 = vld [vmem:[%s5 + $0x38] sm:$0xff]
    %v293 = vld [vmem:[%s5 + $0x40] sm:$0xff]
    %v294 = vld [vmem:[%s5 + $0x48] sm:$0xff]
    %v295 = vld [vmem:[%s5 + $0x50] sm:$0xff]
    %v296 = vld [vmem:[%s5 + $0x58] sm:$0xff]
    %v297 = vld [vmem:[%s6] sm:$0xff]
    %v298 = vld [vmem:[%s6 + $0x8] sm:$0xff]
    %v299 = vld [vmem:[%s6 + $0x10] sm:$0xff]
    %v300 = vld [vmem:[%s6 + $0x18] sm:$0xff]
    %v301 = vld [vmem:[%s6 + $0x20] sm:$0xff]
    %v302 = vld [vmem:[%s6 + $0x28] sm:$0xff]
    %v303 = vld [vmem:[%s6 + $0x30] sm:$0xff]
    %v304 = vld [vmem:[%s6 + $0x38] sm:$0xff]
    %v305 = vld [vmem:[%s6 + $0x40] sm:$0xff]
    %v306 = vld [vmem:[%s6 + $0x48] sm:$0xff]
    %v307 = vld [vmem:[%s6 + $0x50] sm:$0xff]
    %v308 = vld [vmem:[%s6 + $0x58] sm:$0xff]
    %v309 = vld [vmem:[%s7] sm:$0xff]
    %v310 = vld [vmem:[%s7 + $0x8] sm:$0xff]
    %v311 = vld [vmem:[%s7 + $0x10] sm:$0xff]
    %v312 = vld [vmem:[%s7 + $0x18] sm:$0xff]
    %v313 = vld [vmem:[%s7 + $0x20] sm:$0xff]
    %v314 = vld [vmem:[%s7 + $0x28] sm:$0xff]
    %v315 = vld [vmem:[%s7 + $0x30] sm:$0xff]
    %v316 = vld [vmem:[%s7 + $0x38] sm:$0xff]
    %v317 = vld [vmem:[%s7 + $0x40] sm:$0xff]
    %v318 = vld [vmem:[%s7 + $0x48] sm:$0xff]
    %v319 = vld [vmem:[%s7 + $0x50] sm:$0xff]
    %v320 = vld [vmem:[%s7 + $0x58] sm:$0xff]
    %v321 = vld [vmem:[%s8] sm:$0xff]
    %v322 = vld [vmem:[%s8 + $0x8] sm:$0xff]
    %v323 = vld [vmem:[%s8 + $0x10] sm:$0xff]
    %v324 = vld [vmem:[%s8 + $0x18] sm:$0xff]
    %v325 = vld [vmem:[%s9] sm:$0x1]
    %v326 = vld [vmem:[%s10] sm:$0x1]
    %v327 = vld [vmem:[%s11] sm:$0x1]
    %v328 = vld [vmem:[%s12] sm:$0xff]
    %v329 = vld [vmem:[%s12 + $0x8] sm:$0xff]
    %v330 = vld [vmem:[%s12 + $0x10] sm:$0xff]
    %v331 = vld [vmem:[%s12 + $0x18] sm:$0xff]
    %v332 = vld [vmem:[%s12 + $0x20] sm:$0xff]
    %v333 = vld [vmem:[%s12 + $0x28] sm:$0xff]
    %v334 = vld [vmem:[%s12 + $0x30] sm:$0xff]
    %v335 = vld [vmem:[%s12 + $0x38] sm:$0xff]
    %v336 = vld [vmem:[%s12 + $0x40] sm:$0xff]
    %v337 = vld [vmem:[%s12 + $0x48] sm:$0xff]
    %v338 = vld [vmem:[%s12 + $0x50] sm:$0xff]
    %v339 = vld [vmem:[%s12 + $0x58] sm:$0xff]
    %v340 = vld [vmem:[%s13] sm:$0x1]
    %v341 = vld [vmem:[%s14] sm:$0xff]
    %v342 = vld [vmem:[%s14 + $0x8] sm:$0xff]
    %v343 = vld [vmem:[%s14 + $0x10] sm:$0xff]
    %v344 = vld [vmem:[%s14 + $0x18] sm:$0xff]
    %v345 = vld [vmem:[%s14 + $0x20] sm:$0xff]
    %v346 = vld [vmem:[%s14 + $0x28] sm:$0xff]
    %v347 = vld [vmem:[%s15] sm:$0x1]
    %vm348 = vcmask 785408
    %v349 = vsel %vm348, %v275, 0.0
    %350 = vadd.xlane.f32.xlu0 %v349
    %v351 = vpop.xlane.xlu0 %350
    %v352 = vsel %vm348, %v280, 0.0
    %353 = vadd.xlane.f32.xlu0 %v352
    %v354 = vpop.xlane.xlu0 %353
    %v355 = vrcp.pop 96.0
    %v356 = vmul.f32 %v351, %v355
    %v357 = vmul.f32 %v354, %v355
    %v358 = vsub.f32 %v275, %v356
    %v359 = vsub.f32 %v280, %v357
    %v360 = vmul.f32 %v358, %v358
    %v361 = vmul.f32 %v359, %v359
    %v362 = vsel %vm348, %v360, 0.0
    %363 = vadd.xlane.f32.xlu0 %v362
    %v364 = vpop.xlane.xlu0 %363
    %v365 = vsel %vm348, %v361, 0.0
    %366 = vadd.xlane.f32.xlu0 %v365
    %v367 = vpop.xlane.xlu0 %366
    %v368 = vmul.f32 %v364, %v355
    %v369 = vmul.f32 %v367, %v355
    %v370 = vadd.f32 %v368, 1e-05
    %v371 = vadd.f32 %v369, 1e-05
    %v372 = vrsqrt.pop %v370
    %v373 = vrsqrt.pop %v371
    %v374 = vmul.f32 %v358, %v372
    %v375 = vmul.f32 %v359, %v373
    %v377 = vlaneseq
    %v378 = vshrl.u32 %v377, 7
    %v379 = vsub.s32 0, %v378
    %v380 = vrot.slane %v283, %v379
    %v382 = vmul.f32 %v374, %v380
    %v383 = vmul.f32 %v375, %v380
    %v385 = vlaneseq
    %v386 = vshrl.u32 %v385, 7
    %v387 = vsub.s32 0, %v386
    %v388 = vrot.slane %v284, %v387
    %v390 = vadd.f32 %v382, %v388
    %v391 = vadd.f32 %v383, %v388
    %v393 = vsel %vm348, %v390, 0
    %v396 = vsel %vm348, %v391, 0
    %398 = vmatprep.subr.mxu0 0.0
    %399 = vmatpush1.msra.mxu0 %v285
    %400 = vmatprep.subr.mxu0 0.0
    %401 = vmatpush1.msra.mxu0 %v286
    %402 = vmatprep.subr.mxu0 0.0
    %403 = vmatpush1.msra.mxu0 %v287
    %404 = vmatprep.subr.mxu0 0.0
    %405 = vmatpush1.msra.mxu0 %v288
    %406 = vmatprep.subr.mxu0 0.0
    %407 = vmatpush1.msra.mxu0 %v289
    %408 = vmatprep.subr.mxu0 0.0
    %409 = vmatpush1.msra.mxu0 %v290
    %410 = vmatprep.subr.mxu0 0.0
    %411 = vmatpush1.msra.mxu0 %v291
    %412 = vmatprep.subr.mxu0 0.0
    %413 = vmatpush1.msra.mxu0 %v292
    %414 = vmatprep.subr.mxu0 0.0
    %415 = vmatpush1.msra.mxu0 %v293
    %416 = vmatprep.subr.mxu0 0.0
    %417 = vmatpush1.msra.mxu0 %v294
    %418 = vmatprep.subr.mxu0 0.0
    %419 = vmatpush1.msra.mxu0 %v295
    %420 = vmatprep.subr.mxu0 0.0
    %421 = vmatpush1.msra.mxu0 %v296
    %422 = vmatprep.subr.mxu0 0.0
    %423 = vmatpush1.msra.mxu0 0.0
    %424 = vmatprep.subr.mxu0 0.0
    %425 = vmatpush1.msra.mxu0 0.0
    %426 = vmatprep.subr.mxu0 0.0
    %427 = vmatpush1.msra.mxu0 0.0
    %428 = vmatprep.subr.mxu0 0.0
    %429 = vmatpush1.msra.mxu0 0.0
    %430 = vmatprep.subr.mxu0 0.0
    %431 = vmatpush1.msra.mxu0 0.0
    %432 = vmatprep.subr.mxu0 0.0
    %433 = vmatpush1.msra.mxu0 0.0
    %434 = vmatprep.subr.mxu0 0.0
    %435 = vmatpush1.msra.mxu0 0.0
    %436 = vmatprep.subr.mxu0 0.0
    %437 = vmatpush1.msra.mxu0 0.0
    %438 = vmatprep.subr.mxu0 0.0
    %439 = vmatpush1.msra.mxu0 0.0
    %440 = vmatprep.subr.mxu0 0.0
    %441 = vmatpush1.msra.mxu0 0.0
    %442 = vmatprep.subr.mxu0 0.0
    %443 = vmatpush1.msra.mxu0 0.0
    %444 = vmatprep.subr.mxu0 0.0
    %445 = vmatpush1.msra.mxu0 0.0
    %446 = vmatprep.subr.mxu0 0.0
    %447 = vmatpush1.msra.mxu0 0.0
    %448 = vmatprep.subr.mxu0 0.0
    %449 = vmatpush1.msra.mxu0 0.0
    %450 = vmatprep.subr.mxu0 0.0
    %451 = vmatpush1.msra.mxu0 0.0
    %452 = vmatprep.subr.mxu0 0.0
    %453 = vmatpush1.msra.mxu0 0.0
    %454 = vmatprep.subr.mxu0 0.0
    %455 = vmatpush1.msra.mxu0 0.0
    %456 = vmatprep.subr.mxu0 0.0
    %457 = vmatpush1.msra.mxu0 0.0
    %458 = vmatprep.subr.mxu0 0.0
    %459 = vmatpush1.msra.mxu0 0.0
    %460 = vmatprep.subr.mxu0 0.0
    %461 = vmatpush1.msra.mxu0 0.0
    %462 = vmatprep.mubr.f32.mxu0 0.0
    %463 = vmatmul.mubr.f32.gmra.mrb[0].mxu0 %v393
    %v464 = vpop.f32.mrb[0].mxu0
    %v465 = vadd.f32 0.0, %v464
    %v466 = vpop.f32.mrb[0].mxu0
    %467 = vmatprep.mubr.f32.mxu0 0.0
    %468 = vmatmul.mubr.f32.gmra.mrb[0].mxu0 %v396
    %v469 = vpop.f32.mrb[0].mxu0
    %v470 = vadd.f32 0.0, %v469
    %v471 = vpop.f32.mrb[0].mxu0
    %472 = vdwg.mxu0
    %473 = vmatprep.subr.mxu0 0.0
    %474 = vmatpush1.msra.mxu0 %v297
    %475 = vmatprep.subr.mxu0 0.0
    %476 = vmatpush1.msra.mxu0 %v298
    %477 = vmatprep.subr.mxu0 0.0
    %478 = vmatpush1.msra.mxu0 %v299
    %479 = vmatprep.subr.mxu0 0.0
    %480 = vmatpush1.msra.mxu0 %v300
    %481 = vmatprep.subr.mxu0 0.0
    %482 = vmatpush1.msra.mxu0 %v301
    %483 = vmatprep.subr.mxu0 0.0
    %484 = vmatpush1.msra.mxu0 %v302
    %485 = vmatprep.subr.mxu0 0.0
    %486 = vmatpush1.msra.mxu0 %v303
    %487 = vmatprep.subr.mxu0 0.0
    %488 = vmatpush1.msra.mxu0 %v304
    %489 = vmatprep.subr.mxu0 0.0
    %490 = vmatpush1.msra.mxu0 %v305
    %491 = vmatprep.subr.mxu0 0.0
    %492 = vmatpush1.msra.mxu0 %v306
    %493 = vmatprep.subr.mxu0 0.0
    %494 = vmatpush1.msra.mxu0 %v307
    %495 = vmatprep.subr.mxu0 0.0
    %496 = vmatpush1.msra.mxu0 %v308
    %497 = vmatprep.subr.mxu0 0.0
    %498 = vmatpush1.msra.mxu0 0.0
    %499 = vmatprep.subr.mxu0 0.0
    %500 = vmatpush1.msra.mxu0 0.0
    %501 = vmatprep.subr.mxu0 0.0
    %502 = vmatpush1.msra.mxu0 0.0
    %503 = vmatprep.subr.mxu0 0.0
    %504 = vmatpush1.msra.mxu0 0.0
    %505 = vmatprep.subr.mxu0 0.0
    %506 = vmatpush1.msra.mxu0 0.0
    %507 = vmatprep.subr.mxu0 0.0
    %508 = vmatpush1.msra.mxu0 0.0
    %509 = vmatprep.subr.mxu0 0.0
    %510 = vmatpush1.msra.mxu0 0.0
    %511 = vmatprep.subr.mxu0 0.0
    %512 = vmatpush1.msra.mxu0 0.0
    %513 = vmatprep.subr.mxu0 0.0
    %514 = vmatpush1.msra.mxu0 0.0
    %515 = vmatprep.subr.mxu0 0.0
    %516 = vmatpush1.msra.mxu0 0.0
    %517 = vmatprep.subr.mxu0 0.0
    %518 = vmatpush1.msra.mxu0 0.0
    %519 = vmatprep.subr.mxu0 0.0
    %520 = vmatpush1.msra.mxu0 0.0
    %521 = vmatprep.subr.mxu0 0.0
    %522 = vmatpush1.msra.mxu0 0.0
    %523 = vmatprep.subr.mxu0 0.0
    %524 = vmatpush1.msra.mxu0 0.0
    %525 = vmatprep.subr.mxu0 0.0
    %526 = vmatpush1.msra.mxu0 0.0
    %527 = vmatprep.subr.mxu0 0.0
    %528 = vmatpush1.msra.mxu0 0.0
    %529 = vmatprep.subr.mxu0 0.0
    %530 = vmatpush1.msra.mxu0 0.0
    %531 = vmatprep.subr.mxu0 0.0
    %532 = vmatpush1.msra.mxu0 0.0
    %533 = vmatprep.subr.mxu0 0.0
    %534 = vmatpush1.msra.mxu0 0.0
    %535 = vmatprep.subr.mxu0 0.0
    %536 = vmatpush1.msra.mxu0 0.0
    %537 = vmatprep.mubr.f32.mxu0 0.0
    %538 = vmatmul.mubr.f32.gmra.mrb[0].mxu0 %v393
    %v539 = vpop.f32.mrb[0].mxu0
    %v540 = vadd.f32 0.0, %v539
    %v541 = vpop.f32.mrb[0].mxu0
    %542 = vmatprep.mubr.f32.mxu0 0.0
    %543 = vmatmul.mubr.f32.gmra.mrb[0].mxu0 %v396
    %v544 = vpop.f32.mrb[0].mxu0
    %v545 = vadd.f32 0.0, %v544
    %v546 = vpop.f32.mrb[0].mxu0
    %547 = vdwg.mxu0
    %548 = vmatprep.subr.mxu0 0.0
    %549 = vmatpush1.msra.mxu0 %v309
    %550 = vmatprep.subr.mxu0 0.0
    %551 = vmatpush1.msra.mxu0 %v310
    %552 = vmatprep.subr.mxu0 0.0
    %553 = vmatpush1.msra.mxu0 %v311
    %554 = vmatprep.subr.mxu0 0.0
    %555 = vmatpush1.msra.mxu0 %v312
    %556 = vmatprep.subr.mxu0 0.0
    %557 = vmatpush1.msra.mxu0 %v313
    %558 = vmatprep.subr.mxu0 0.0
    %559 = vmatpush1.msra.mxu0 %v314
    %560 = vmatprep.subr.mxu0 0.0
    %561 = vmatpush1.msra.mxu0 %v315
    %562 = vmatprep.subr.mxu0 0.0
    %563 = vmatpush1.msra.mxu0 %v316
    %564 = vmatprep.subr.mxu0 0.0
    %565 = vmatpush1.msra.mxu0 %v317
    %566 = vmatprep.subr.mxu0 0.0
    %567 = vmatpush1.msra.mxu0 %v318
    %568 = vmatprep.subr.mxu0 0.0
    %569 = vmatpush1.msra.mxu0 %v319
    %570 = vmatprep.subr.mxu0 0.0
    %571 = vmatpush1.msra.mxu0 %v320
    %572 = vmatprep.subr.mxu0 0.0
    %573 = vmatpush1.msra.mxu0 0.0
    %574 = vmatprep.subr.mxu0 0.0
    %575 = vmatpush1.msra.mxu0 0.0
    %576 = vmatprep.subr.mxu0 0.0
    %577 = vmatpush1.msra.mxu0 0.0
    %578 = vmatprep.subr.mxu0 0.0
    %579 = vmatpush1.msra.mxu0 0.0
    %580 = vmatprep.subr.mxu0 0.0
    %581 = vmatpush1.msra.mxu0 0.0
    %582 = vmatprep.subr.mxu0 0.0
    %583 = vmatpush1.msra.mxu0 0.0
    %584 = vmatprep.subr.mxu0 0.0
    %585 = vmatpush1.msra.mxu0 0.0
    %586 = vmatprep.subr.mxu0 0.0
    %587 = vmatpush1.msra.mxu0 0.0
    %588 = vmatprep.subr.mxu0 0.0
    %589 = vmatpush1.msra.mxu0 0.0
    %590 = vmatprep.subr.mxu0 0.0
    %591 = vmatpush1.msra.mxu0 0.0
    %592 = vmatprep.subr.mxu0 0.0
    %593 = vmatpush1.msra.mxu0 0.0
    %594 = vmatprep.subr.mxu0 0.0
    %595 = vmatpush1.msra.mxu0 0.0
    %596 = vmatprep.subr.mxu0 0.0
    %597 = vmatpush1.msra.mxu0 0.0
    %598 = vmatprep.subr.mxu0 0.0
    %599 = vmatpush1.msra.mxu0 0.0
    %600 = vmatprep.subr.mxu0 0.0
    %601 = vmatpush1.msra.mxu0 0.0
    %602 = vmatprep.subr.mxu0 0.0
    %603 = vmatpush1.msra.mxu0 0.0
    %604 = vmatprep.subr.mxu0 0.0
    %605 = vmatpush1.msra.mxu0 0.0
    %606 = vmatprep.subr.mxu0 0.0
    %607 = vmatpush1.msra.mxu0 0.0
    %608 = vmatprep.subr.mxu0 0.0
    %609 = vmatpush1.msra.mxu0 0.0
    %610 = vmatprep.subr.mxu0 0.0
    %611 = vmatpush1.msra.mxu0 0.0
    %612 = vmatprep.mubr.f32.mxu0 0.0
    %613 = vmatmul.mubr.f32.gmra.mrb[0].mxu0 %v393
    %v614 = vpop.f32.mrb[0].mxu0
    %v615 = vadd.f32 0.0, %v614
    %v616 = vpop.f32.mrb[0].mxu0
    %617 = vmatprep.mubr.f32.mxu0 0.0
    %618 = vmatmul.mubr.f32.gmra.mrb[0].mxu0 %v396
    %v619 = vpop.f32.mrb[0].mxu0
    %v620 = vadd.f32 0.0, %v619
    %v621 = vpop.f32.mrb[0].mxu0
    %622 = vdwg.mxu0
    %vm623 = vcmask 130048
    %v625 = vsel %vm623, %v465, 0
    %v628 = vsel %vm623, %v540, 0
    %630 = vmatprep.subr.mxu0 0.0
    %631 = vmatpush1.xpose.msra.mxu0 %v628
    %632 = vmatprep.subr.mxu0 0.0
    %633 = vmatpush1.xpose.msra.mxu0 0.0
    %634 = vmatprep.subr.mxu0 0.0
    %635 = vmatpush1.xpose.msra.mxu0 0.0
    %636 = vmatprep.subr.mxu0 0.0
    %637 = vmatpush1.xpose.msra.mxu0 0.0
    %638 = vmatprep.subr.mxu0 0.0
    %639 = vmatpush1.xpose.msra.mxu0 0.0
    %640 = vmatprep.subr.mxu0 0.0
    %641 = vmatpush1.xpose.msra.mxu0 0.0
    %642 = vmatprep.subr.mxu0 0.0
    %643 = vmatpush1.xpose.msra.mxu0 0.0
    %644 = vmatprep.subr.mxu0 0.0
    %645 = vmatpush1.xpose.msra.mxu0 0.0
    %646 = vmatprep.subr.mxu0 0.0
    %647 = vmatpush1.xpose.msra.mxu0 0.0
    %648 = vmatprep.subr.mxu0 0.0
    %649 = vmatpush1.xpose.msra.mxu0 0.0
    %650 = vmatprep.subr.mxu0 0.0
    %651 = vmatpush1.xpose.msra.mxu0 0.0
    %652 = vmatprep.subr.mxu0 0.0
    %653 = vmatpush1.xpose.msra.mxu0 0.0
    %654 = vmatprep.subr.mxu0 0.0
    %655 = vmatpush1.xpose.msra.mxu0 0.0
    %656 = vmatprep.subr.mxu0 0.0
    %657 = vmatpush1.xpose.msra.mxu0 0.0
    %658 = vmatprep.subr.mxu0 0.0
    %659 = vmatpush1.xpose.msra.mxu0 0.0
    %660 = vmatprep.subr.mxu0 0.0
    %661 = vmatpush1.xpose.msra.mxu0 0.0
    %662 = vmatprep.subr.mxu0 0.0
    %663 = vmatpush1.xpose.msra.mxu0 0.0
    %664 = vmatprep.subr.mxu0 0.0
    %665 = vmatpush1.xpose.msra.mxu0 0.0
    %666 = vmatprep.subr.mxu0 0.0
    %667 = vmatpush1.xpose.msra.mxu0 0.0
    %668 = vmatprep.subr.mxu0 0.0
    %669 = vmatpush1.xpose.msra.mxu0 0.0
    %670 = vmatprep.subr.mxu0 0.0
    %671 = vmatpush1.xpose.msra.mxu0 0.0
    %672 = vmatprep.subr.mxu0 0.0
    %673 = vmatpush1.xpose.msra.mxu0 0.0
    %674 = vmatprep.subr.mxu0 0.0
    %675 = vmatpush1.xpose.msra.mxu0 0.0
    %676 = vmatprep.subr.mxu0 0.0
    %677 = vmatpush1.xpose.msra.mxu0 0.0
    %678 = vmatprep.subr.mxu0 0.0
    %679 = vmatpush1.xpose.msra.mxu0 0.0
    %680 = vmatprep.subr.mxu0 0.0
    %681 = vmatpush1.xpose.msra.mxu0 0.0
    %682 = vmatprep.subr.mxu0 0.0
    %683 = vmatpush1.xpose.msra.mxu0 0.0
    %684 = vmatprep.subr.mxu0 0.0
    %685 = vmatpush1.xpose.msra.mxu0 0.0
    %686 = vmatprep.subr.mxu0 0.0
    %687 = vmatpush1.xpose.msra.mxu0 0.0
    %688 = vmatprep.subr.mxu0 0.0
    %689 = vmatpush1.xpose.msra.mxu0 0.0
    %690 = vmatprep.subr.mxu0 0.0
    %691 = vmatpush1.xpose.msra.mxu0 0.0
    %692 = vmatprep.subr.mxu0 0.0
    %693 = vmatpush1.xpose.msra.mxu0 0.0
    %694 = vmatprep.mubr.f32.mxu0 0.0
    %695 = vmatmul.mubr.f32.gmra.mrb[0].mxu0 %v625
    %v696 = vpop.f32.mrb[0].mxu0
    %v697 = vadd.f32 0.0, %v696
    %v698 = vpop.f32.mrb[0].mxu0
    %699 = vdwg.mxu0
    %v700 = vmul.f32 %v697, 0.25
    %vm701 = vcmask 64512
    %v702 = vsel %vm701, %v700, -inf
    %703 = vmax.xlane.f32.xlu0 %v702
    %v704 = vpop.xlane.xlu0 %703
    %v705 = vsub.f32 %v700, %v704
    %v706 = vmul.f32 %v705, 1.442695
    %v707 = vpow.pop %v706
    %v708 = vsel %vm701, %v707, 0.0
    %709 = vadd.xlane.f32.xlu0 %v708
    %v710 = vpop.xlane.xlu0 %709
    %v711 = vrcp.pop %v710
    %v712 = vmul.f32 %v707, %v711
    %v714 = vsel %vm701, %v712, 0
    %716 = vmatprep.subr.mxu0 0.0
    %717 = vmatpush1.msra.mxu0 %v615
    %718 = vmatprep.subr.mxu0 0.0
    %719 = vmatpush1.msra.mxu0 0.0
    %720 = vmatprep.subr.mxu0 0.0
    %721 = vmatpush1.msra.mxu0 0.0
    %722 = vmatprep.subr.mxu0 0.0
    %723 = vmatpush1.msra.mxu0 0.0
    %724 = vmatprep.subr.mxu0 0.0
    %725 = vmatpush1.msra.mxu0 0.0
    %726 = vmatprep.subr.mxu0 0.0
    %727 = vmatpush1.msra.mxu0 0.0
    %728 = vmatprep.subr.mxu0 0.0
    %729 = vmatpush1.msra.mxu0 0.0
    %730 = vmatprep.subr.mxu0 0.0
    %731 = vmatpush1.msra.mxu0 0.0
    %732 = vmatprep.subr.mxu0 0.0
    %733 = vmatpush1.msra.mxu0 0.0
    %734 = vmatprep.subr.mxu0 0.0
    %735 = vmatpush1.msra.mxu0 0.0
    %736 = vmatprep.subr.mxu0 0.0
    %737 = vmatpush1.msra.mxu0 0.0
    %738 = vmatprep.subr.mxu0 0.0
    %739 = vmatpush1.msra.mxu0 0.0
    %740 = vmatprep.subr.mxu0 0.0
    %741 = vmatpush1.msra.mxu0 0.0
    %742 = vmatprep.subr.mxu0 0.0
    %743 = vmatpush1.msra.mxu0 0.0
    %744 = vmatprep.subr.mxu0 0.0
    %745 = vmatpush1.msra.mxu0 0.0
    %746 = vmatprep.subr.mxu0 0.0
    %747 = vmatpush1.msra.mxu0 0.0
    %748 = vmatprep.subr.mxu0 0.0
    %749 = vmatpush1.msra.mxu0 0.0
    %750 = vmatprep.subr.mxu0 0.0
    %751 = vmatpush1.msra.mxu0 0.0
    %752 = vmatprep.subr.mxu0 0.0
    %753 = vmatpush1.msra.mxu0 0.0
    %754 = vmatprep.subr.mxu0 0.0
    %755 = vmatpush1.msra.mxu0 0.0
    %756 = vmatprep.subr.mxu0 0.0
    %757 = vmatpush1.msra.mxu0 0.0
    %758 = vmatprep.subr.mxu0 0.0
    %759 = vmatpush1.msra.mxu0 0.0
    %760 = vmatprep.subr.mxu0 0.0
    %761 = vmatpush1.msra.mxu0 0.0
    %762 = vmatprep.subr.mxu0 0.0
    %763 = vmatpush1.msra.mxu0 0.0
    %764 = vmatprep.subr.mxu0 0.0
    %765 = vmatpush1.msra.mxu0 0.0
    %766 = vmatprep.subr.mxu0 0.0
    %767 = vmatpush1.msra.mxu0 0.0
    %768 = vmatprep.subr.mxu0 0.0
    %769 = vmatpush1.msra.mxu0 0.0
    %770 = vmatprep.subr.mxu0 0.0
    %771 = vmatpush1.msra.mxu0 0.0
    %772 = vmatprep.subr.mxu0 0.0
    %773 = vmatpush1.msra.mxu0 0.0
    %774 = vmatprep.subr.mxu0 0.0
    %775 = vmatpush1.msra.mxu0 0.0
    %776 = vmatprep.subr.mxu0 0.0
    %777 = vmatpush1.msra.mxu0 0.0
    %778 = vmatprep.subr.mxu0 0.0
    %779 = vmatpush1.msra.mxu0 0.0
    %780 = vmatprep.mubr.f32.mxu0 0.0
    %781 = vmatmul.mubr.f32.gmra.mrb[0].mxu0 %v714
    %v782 = vpop.f32.mrb[0].mxu0
    %v783 = vadd.f32 0.0, %v782
    %v784 = vpop.f32.mrb[0].mxu0
    %785 = vdwg.mxu0
    %786 = vrot.lane.b32.xlu0 %v465, 112
    %v787 = vpop.permute.xlu0 %786
    %788 = vrot.lane.b32.xlu0 %v540, 112
    %v789 = vpop.permute.xlu0 %788
    %v790 = vsel %vm623, %v787, 0
    %v792 = vsel %vm623, %v789, 0
    %794 = vmatprep.subr.mxu0 0.0
    %795 = vmatpush1.xpose.msra.mxu0 %v792
    %796 = vmatprep.subr.mxu0 0.0
    %797 = vmatpush1.xpose.msra.mxu0 0.0
    %798 = vmatprep.subr.mxu0 0.0
    %799 = vmatpush1.xpose.msra.mxu0 0.0
    %800 = vmatprep.subr.mxu0 0.0
    %801 = vmatpush1.xpose.msra.mxu0 0.0
    %802 = vmatprep.subr.mxu0 0.0
    %803 = vmatpush1.xpose.msra.mxu0 0.0
    %804 = vmatprep.subr.mxu0 0.0
    %805 = vmatpush1.xpose.msra.mxu0 0.0
    %806 = vmatprep.subr.mxu0 0.0
    %807 = vmatpush1.xpose.msra.mxu0 0.0
    %808 = vmatprep.subr.mxu0 0.0
    %809 = vmatpush1.xpose.msra.mxu0 0.0
    %810 = vmatprep.subr.mxu0 0.0
    %811 = vmatpush1.xpose.msra.mxu0 0.0
    %812 = vmatprep.subr.mxu0 0.0
    %813 = vmatpush1.xpose.msra.mxu0 0.0
    %814 = vmatprep.subr.mxu0 0.0
    %815 = vmatpush1.xpose.msra.mxu0 0.0
    %816 = vmatprep.subr.mxu0 0.0
    %817 = vmatpush1.xpose.msra.mxu0 0.0
    %818 = vmatprep.subr.mxu0 0.0
    %819 = vmatpush1.xpose.msra.mxu0 0.0
    %820 = vmatprep.subr.mxu0 0.0
    %821 = vmatpush1.xpose.msra.mxu0 0.0
    %822 = vmatprep.subr.mxu0 0.0
    %823 = vmatpush1.xpose.msra.mxu0 0.0
    %824 = vmatprep.subr.mxu0 0.0
    %825 = vmatpush1.xpose.msra.mxu0 0.0
    %826 = vmatprep.subr.mxu0 0.0
    %827 = vmatpush1.xpose.msra.mxu0 0.0
    %828 = vmatprep.subr.mxu0 0.0
    %829 = vmatpush1.xpose.msra.mxu0 0.0
    %830 = vmatprep.subr.mxu0 0.0
    %831 = vmatpush1.xpose.msra.mxu0 0.0
    %832 = vmatprep.subr.mxu0 0.0
    %833 = vmatpush1.xpose.msra.mxu0 0.0
    %834 = vmatprep.subr.mxu0 0.0
    %835 = vmatpush1.xpose.msra.mxu0 0.0
    %836 = vmatprep.subr.mxu0 0.0
    %837 = vmatpush1.xpose.msra.mxu0 0.0
    %838 = vmatprep.subr.mxu0 0.0
    %839 = vmatpush1.xpose.msra.mxu0 0.0
    %840 = vmatprep.subr.mxu0 0.0
    %841 = vmatpush1.xpose.msra.mxu0 0.0
    %842 = vmatprep.subr.mxu0 0.0
    %843 = vmatpush1.xpose.msra.mxu0 0.0
    %844 = vmatprep.subr.mxu0 0.0
    %845 = vmatpush1.xpose.msra.mxu0 0.0
    %846 = vmatprep.subr.mxu0 0.0
    %847 = vmatpush1.xpose.msra.mxu0 0.0
    %848 = vmatprep.subr.mxu0 0.0
    %849 = vmatpush1.xpose.msra.mxu0 0.0
    %850 = vmatprep.subr.mxu0 0.0
    %851 = vmatpush1.xpose.msra.mxu0 0.0
    %852 = vmatprep.subr.mxu0 0.0
    %853 = vmatpush1.xpose.msra.mxu0 0.0
    %854 = vmatprep.subr.mxu0 0.0
    %855 = vmatpush1.xpose.msra.mxu0 0.0
    %856 = vmatprep.subr.mxu0 0.0
    %857 = vmatpush1.xpose.msra.mxu0 0.0
    %858 = vmatprep.mubr.f32.mxu0 0.0
    %859 = vmatmul.mubr.f32.gmra.mrb[0].mxu0 %v790
    %v860 = vpop.f32.mrb[0].mxu0
    %v861 = vadd.f32 0.0, %v860
    %v862 = vpop.f32.mrb[0].mxu0
    %863 = vdwg.mxu0
    %v864 = vmul.f32 %v861, 0.25
    %v865 = vsel %vm701, %v864, -inf
    %866 = vmax.xlane.f32.xlu0 %v865
    %v867 = vpop.xlane.xlu0 %866
    %v868 = vsub.f32 %v864, %v867
    %v869 = vmul.f32 %v868, 1.442695
    %v870 = vpow.pop %v869
    %v871 = vsel %vm701, %v870, 0.0
    %872 = vadd.xlane.f32.xlu0 %v871
    %v873 = vpop.xlane.xlu0 %872
    %v874 = vrcp.pop %v873
    %v875 = vmul.f32 %v870, %v874
    %877 = vrot.lane.b32.xlu0 %v615, 112
    %v878 = vpop.permute.xlu0 %877
    %v881 = vsel %vm701, %v875, 0
    %883 = vmatprep.subr.mxu0 0.0
    %884 = vmatpush1.msra.mxu0 %v878
    %885 = vmatprep.subr.mxu0 0.0
    %886 = vmatpush1.msra.mxu0 0.0
    %887 = vmatprep.subr.mxu0 0.0
    %888 = vmatpush1.msra.mxu0 0.0
    %889 = vmatprep.subr.mxu0 0.0
    %890 = vmatpush1.msra.mxu0 0.0
    %891 = vmatprep.subr.mxu0 0.0
    %892 = vmatpush1.msra.mxu0 0.0
    %893 = vmatprep.subr.mxu0 0.0
    %894 = vmatpush1.msra.mxu0 0.0
    %895 = vmatprep.subr.mxu0 0.0
    %896 = vmatpush1.msra.mxu0 0.0
    %897 = vmatprep.subr.mxu0 0.0
    %898 = vmatpush1.msra.mxu0 0.0
    %899 = vmatprep.subr.mxu0 0.0
    %900 = vmatpush1.msra.mxu0 0.0
    %901 = vmatprep.subr.mxu0 0.0
    %902 = vmatpush1.msra.mxu0 0.0
    %903 = vmatprep.subr.mxu0 0.0
    %904 = vmatpush1.msra.mxu0 0.0
    %905 = vmatprep.subr.mxu0 0.0
    %906 = vmatpush1.msra.mxu0 0.0
    %907 = vmatprep.subr.mxu0 0.0
    %908 = vmatpush1.msra.mxu0 0.0
    %909 = vmatprep.subr.mxu0 0.0
    %910 = vmatpush1.msra.mxu0 0.0
    %911 = vmatprep.subr.mxu0 0.0
    %912 = vmatpush1.msra.mxu0 0.0
    %913 = vmatprep.subr.mxu0 0.0
    %914 = vmatpush1.msra.mxu0 0.0
    %915 = vmatprep.subr.mxu0 0.0
    %916 = vmatpush1.msra.mxu0 0.0
    %917 = vmatprep.subr.mxu0 0.0
    %918 = vmatpush1.msra.mxu0 0.0
    %919 = vmatprep.subr.mxu0 0.0
    %920 = vmatpush1.msra.mxu0 0.0
    %921 = vmatprep.subr.mxu0 0.0
    %922 = vmatpush1.msra.mxu0 0.0
    %923 = vmatprep.subr.mxu0 0.0
    %924 = vmatpush1.msra.mxu0 0.0
    %925 = vmatprep.subr.mxu0 0.0
    %926 = vmatpush1.msra.mxu0 0.0
    %927 = vmatprep.subr.mxu0 0.0
    %928 = vmatpush1.msra.mxu0 0.0
    %929 = vmatprep.subr.mxu0 0.0
    %930 = vmatpush1.msra.mxu0 0.0
    %931 = vmatprep.subr.mxu0 0.0
    %932 = vmatpush1.msra.mxu0 0.0
    %933 = vmatprep.subr.mxu0 0.0
    %934 = vmatpush1.msra.mxu0 0.0
    %935 = vmatprep.subr.mxu0 0.0
    %936 = vmatpush1.msra.mxu0 0.0
    %937 = vmatprep.subr.mxu0 0.0
    %938 = vmatpush1.msra.mxu0 0.0
    %939 = vmatprep.subr.mxu0 0.0
    %940 = vmatpush1.msra.mxu0 0.0
    %941 = vmatprep.subr.mxu0 0.0
    %942 = vmatpush1.msra.mxu0 0.0
    %943 = vmatprep.subr.mxu0 0.0
    %944 = vmatpush1.msra.mxu0 0.0
    %945 = vmatprep.subr.mxu0 0.0
    %946 = vmatpush1.msra.mxu0 0.0
    %947 = vmatprep.mubr.f32.mxu0 0.0
    %948 = vmatmul.mubr.f32.gmra.mrb[0].mxu0 %v881
    %v949 = vpop.f32.mrb[0].mxu0
    %v950 = vadd.f32 0.0, %v949
    %v951 = vpop.f32.mrb[0].mxu0
    %952 = vdwg.mxu0
    %954 = vrot.lane.b32.xlu0 %v950, 16
    %v955 = vpop.permute.xlu0 %954
    %v957 = vsel %vm623, %v783, %v955
    %v959 = vsel %vm623, %v470, 0
    %v962 = vsel %vm623, %v545, 0
    %964 = vmatprep.subr.mxu0 0.0
    %965 = vmatpush1.xpose.msra.mxu0 %v962
    %966 = vmatprep.subr.mxu0 0.0
    %967 = vmatpush1.xpose.msra.mxu0 0.0
    %968 = vmatprep.subr.mxu0 0.0
    %969 = vmatpush1.xpose.msra.mxu0 0.0
    %970 = vmatprep.subr.mxu0 0.0
    %971 = vmatpush1.xpose.msra.mxu0 0.0
    %972 = vmatprep.subr.mxu0 0.0
    %973 = vmatpush1.xpose.msra.mxu0 0.0
    %974 = vmatprep.subr.mxu0 0.0
    %975 = vmatpush1.xpose.msra.mxu0 0.0
    %976 = vmatprep.subr.mxu0 0.0
    %977 = vmatpush1.xpose.msra.mxu0 0.0
    %978 = vmatprep.subr.mxu0 0.0
    %979 = vmatpush1.xpose.msra.mxu0 0.0
    %980 = vmatprep.subr.mxu0 0.0
    %981 = vmatpush1.xpose.msra.mxu0 0.0
    %982 = vmatprep.subr.mxu0 0.0
    %983 = vmatpush1.xpose.msra.mxu0 0.0
    %984 = vmatprep.subr.mxu0 0.0
    %985 = vmatpush1.xpose.msra.mxu0 0.0
    %986 = vmatprep.subr.mxu0 0.0
    %987 = vmatpush1.xpose.msra.mxu0 0.0
    %988 = vmatprep.subr.mxu0 0.0
    %989 = vmatpush1.xpose.msra.mxu0 0.0
    %990 = vmatprep.subr.mxu0 0.0
    %991 = vmatpush1.xpose.msra.mxu0 0.0
    %992 = vmatprep.subr.mxu0 0.0
    %993 = vmatpush1.xpose.msra.mxu0 0.0
    %994 = vmatprep.subr.mxu0 0.0
    %995 = vmatpush1.xpose.msra.mxu0 0.0
    %996 = vmatprep.subr.mxu0 0.0
    %997 = vmatpush1.xpose.msra.mxu0 0.0
    %998 = vmatprep.subr.mxu0 0.0
    %999 = vmatpush1.xpose.msra.mxu0 0.0
    %1000 = vmatprep.subr.mxu0 0.0
    %1001 = vmatpush1.xpose.msra.mxu0 0.0
    %1002 = vmatprep.subr.mxu0 0.0
    %1003 = vmatpush1.xpose.msra.mxu0 0.0
    %1004 = vmatprep.subr.mxu0 0.0
    %1005 = vmatpush1.xpose.msra.mxu0 0.0
    %1006 = vmatprep.subr.mxu0 0.0
    %1007 = vmatpush1.xpose.msra.mxu0 0.0
    %1008 = vmatprep.subr.mxu0 0.0
    %1009 = vmatpush1.xpose.msra.mxu0 0.0
    %1010 = vmatprep.subr.mxu0 0.0
    %1011 = vmatpush1.xpose.msra.mxu0 0.0
    %1012 = vmatprep.subr.mxu0 0.0
    %1013 = vmatpush1.xpose.msra.mxu0 0.0
    %1014 = vmatprep.subr.mxu0 0.0
    %1015 = vmatpush1.xpose.msra.mxu0 0.0
    %1016 = vmatprep.subr.mxu0 0.0
    %1017 = vmatpush1.xpose.msra.mxu0 0.0
    %1018 = vmatprep.subr.mxu0 0.0
    %1019 = vmatpush1.xpose.msra.mxu0 0.0
    %1020 = vmatprep.subr.mxu0 0.0
    %1021 = vmatpush1.xpose.msra.mxu0 0.0
    %1022 = vmatprep.subr.mxu0 0.0
    %1023 = vmatpush1.xpose.msra.mxu0 0.0
    %1024 = vmatprep.subr.mxu0 0.0
    %1025 = vmatpush1.xpose.msra.mxu0 0.0
    %1026 = vmatprep.subr.mxu0 0.0
    %1027 = vmatpush1.xpose.msra.mxu0 0.0
    %1028 = vmatprep.mubr.f32.mxu0 0.0
    %1029 = vmatmul.mubr.f32.gmra.mrb[0].mxu0 %v959
    %v1030 = vpop.f32.mrb[0].mxu0
    %v1031 = vadd.f32 0.0, %v1030
    %v1032 = vpop.f32.mrb[0].mxu0
    %1033 = vdwg.mxu0
    %v1034 = vmul.f32 %v1031, 0.25
    %v1035 = vsel %vm701, %v1034, -inf
    %1036 = vmax.xlane.f32.xlu0 %v1035
    %v1037 = vpop.xlane.xlu0 %1036
    %v1038 = vsub.f32 %v1034, %v1037
    %v1039 = vmul.f32 %v1038, 1.442695
    %v1040 = vpow.pop %v1039
    %v1041 = vsel %vm701, %v1040, 0.0
    %1042 = vadd.xlane.f32.xlu0 %v1041
    %v1043 = vpop.xlane.xlu0 %1042
    %v1044 = vrcp.pop %v1043
    %v1045 = vmul.f32 %v1040, %v1044
    %v1047 = vsel %vm701, %v1045, 0
    %1049 = vmatprep.subr.mxu0 0.0
    %1050 = vmatpush1.msra.mxu0 %v620
    %1051 = vmatprep.subr.mxu0 0.0
    %1052 = vmatpush1.msra.mxu0 0.0
    %1053 = vmatprep.subr.mxu0 0.0
    %1054 = vmatpush1.msra.mxu0 0.0
    %1055 = vmatprep.subr.mxu0 0.0
    %1056 = vmatpush1.msra.mxu0 0.0
    %1057 = vmatprep.subr.mxu0 0.0
    %1058 = vmatpush1.msra.mxu0 0.0
    %1059 = vmatprep.subr.mxu0 0.0
    %1060 = vmatpush1.msra.mxu0 0.0
    %1061 = vmatprep.subr.mxu0 0.0
    %1062 = vmatpush1.msra.mxu0 0.0
    %1063 = vmatprep.subr.mxu0 0.0
    %1064 = vmatpush1.msra.mxu0 0.0
    %1065 = vmatprep.subr.mxu0 0.0
    %1066 = vmatpush1.msra.mxu0 0.0
    %1067 = vmatprep.subr.mxu0 0.0
    %1068 = vmatpush1.msra.mxu0 0.0
    %1069 = vmatprep.subr.mxu0 0.0
    %1070 = vmatpush1.msra.mxu0 0.0
    %1071 = vmatprep.subr.mxu0 0.0
    %1072 = vmatpush1.msra.mxu0 0.0
    %1073 = vmatprep.subr.mxu0 0.0
    %1074 = vmatpush1.msra.mxu0 0.0
    %1075 = vmatprep.subr.mxu0 0.0
    %1076 = vmatpush1.msra.mxu0 0.0
    %1077 = vmatprep.subr.mxu0 0.0
    %1078 = vmatpush1.msra.mxu0 0.0
    %1079 = vmatprep.subr.mxu0 0.0
    %1080 = vmatpush1.msra.mxu0 0.0
    %1081 = vmatprep.subr.mxu0 0.0
    %1082 = vmatpush1.msra.mxu0 0.0
    %1083 = vmatprep.subr.mxu0 0.0
    %1084 = vmatpush1.msra.mxu0 0.0
    %1085 = vmatprep.subr.mxu0 0.0
    %1086 = vmatpush1.msra.mxu0 0.0
    %1087 = vmatprep.subr.mxu0 0.0
    %1088 = vmatpush1.msra.mxu0 0.0
    %1089 = vmatprep.subr.mxu0 0.0
    %1090 = vmatpush1.msra.mxu0 0.0
    %1091 = vmatprep.subr.mxu0 0.0
    %1092 = vmatpush1.msra.mxu0 0.0
    %1093 = vmatprep.subr.mxu0 0.0
    %1094 = vmatpush1.msra.mxu0 0.0
    %1095 = vmatprep.subr.mxu0 0.0
    %1096 = vmatpush1.msra.mxu0 0.0
    %1097 = vmatprep.subr.mxu0 0.0
    %1098 = vmatpush1.msra.mxu0 0.0
    %1099 = vmatprep.subr.mxu0 0.0
    %1100 = vmatpush1.msra.mxu0 0.0
    %1101 = vmatprep.subr.mxu0 0.0
    %1102 = vmatpush1.msra.mxu0 0.0
    %1103 = vmatprep.subr.mxu0 0.0
    %1104 = vmatpush1.msra.mxu0 0.0
    %1105 = vmatprep.subr.mxu0 0.0
    %1106 = vmatpush1.msra.mxu0 0.0
    %1107 = vmatprep.subr.mxu0 0.0
    %1108 = vmatpush1.msra.mxu0 0.0
    %1109 = vmatprep.subr.mxu0 0.0
    %1110 = vmatpush1.msra.mxu0 0.0
    %1111 = vmatprep.subr.mxu0 0.0
    %1112 = vmatpush1.msra.mxu0 0.0
    %1113 = vmatprep.mubr.f32.mxu0 0.0
    %1114 = vmatmul.mubr.f32.gmra.mrb[0].mxu0 %v1047
    %v1115 = vpop.f32.mrb[0].mxu0
    %v1116 = vadd.f32 0.0, %v1115
    %v1117 = vpop.f32.mrb[0].mxu0
    %1118 = vdwg.mxu0
    %1119 = vrot.lane.b32.xlu0 %v470, 112
    %v1120 = vpop.permute.xlu0 %1119
    %1121 = vrot.lane.b32.xlu0 %v545, 112
    %v1122 = vpop.permute.xlu0 %1121
    %v1123 = vsel %vm623, %v1120, 0
    %v1125 = vsel %vm623, %v1122, 0
    %1127 = vmatprep.subr.mxu0 0.0
    %1128 = vmatpush1.xpose.msra.mxu0 %v1125
    %1129 = vmatprep.subr.mxu0 0.0
    %1130 = vmatpush1.xpose.msra.mxu0 0.0
    %1131 = vmatprep.subr.mxu0 0.0
    %1132 = vmatpush1.xpose.msra.mxu0 0.0
    %1133 = vmatprep.subr.mxu0 0.0
    %1134 = vmatpush1.xpose.msra.mxu0 0.0
    %1135 = vmatprep.subr.mxu0 0.0
    %1136 = vmatpush1.xpose.msra.mxu0 0.0
    %1137 = vmatprep.subr.mxu0 0.0
    %1138 = vmatpush1.xpose.msra.mxu0 0.0
    %1139 = vmatprep.subr.mxu0 0.0
    %1140 = vmatpush1.xpose.msra.mxu0 0.0
    %1141 = vmatprep.subr.mxu0 0.0
    %1142 = vmatpush1.xpose.msra.mxu0 0.0
    %1143 = vmatprep.subr.mxu0 0.0
    %1144 = vmatpush1.xpose.msra.mxu0 0.0
    %1145 = vmatprep.subr.mxu0 0.0
    %1146 = vmatpush1.xpose.msra.mxu0 0.0
    %1147 = vmatprep.subr.mxu0 0.0
    %1148 = vmatpush1.xpose.msra.mxu0 0.0
    %1149 = vmatprep.subr.mxu0 0.0
    %1150 = vmatpush1.xpose.msra.mxu0 0.0
    %1151 = vmatprep.subr.mxu0 0.0
    %1152 = vmatpush1.xpose.msra.mxu0 0.0
    %1153 = vmatprep.subr.mxu0 0.0
    %1154 = vmatpush1.xpose.msra.mxu0 0.0
    %1155 = vmatprep.subr.mxu0 0.0
    %1156 = vmatpush1.xpose.msra.mxu0 0.0
    %1157 = vmatprep.subr.mxu0 0.0
    %1158 = vmatpush1.xpose.msra.mxu0 0.0
    %1159 = vmatprep.subr.mxu0 0.0
    %1160 = vmatpush1.xpose.msra.mxu0 0.0
    %1161 = vmatprep.subr.mxu0 0.0
    %1162 = vmatpush1.xpose.msra.mxu0 0.0
    %1163 = vmatprep.subr.mxu0 0.0
    %1164 = vmatpush1.xpose.msra.mxu0 0.0
    %1165 = vmatprep.subr.mxu0 0.0
    %1166 = vmatpush1.xpose.msra.mxu0 0.0
    %1167 = vmatprep.subr.mxu0 0.0
    %1168 = vmatpush1.xpose.msra.mxu0 0.0
    %1169 = vmatprep.subr.mxu0 0.0
    %1170 = vmatpush1.xpose.msra.mxu0 0.0
    %1171 = vmatprep.subr.mxu0 0.0
    %1172 = vmatpush1.xpose.msra.mxu0 0.0
    %1173 = vmatprep.subr.mxu0 0.0
    %1174 = vmatpush1.xpose.msra.mxu0 0.0
    %1175 = vmatprep.subr.mxu0 0.0
    %1176 = vmatpush1.xpose.msra.mxu0 0.0
    %1177 = vmatprep.subr.mxu0 0.0
    %1178 = vmatpush1.xpose.msra.mxu0 0.0
    %1179 = vmatprep.subr.mxu0 0.0
    %1180 = vmatpush1.xpose.msra.mxu0 0.0
    %1181 = vmatprep.subr.mxu0 0.0
    %1182 = vmatpush1.xpose.msra.mxu0 0.0
    %1183 = vmatprep.subr.mxu0 0.0
    %1184 = vmatpush1.xpose.msra.mxu0 0.0
    %1185 = vmatprep.subr.mxu0 0.0
    %1186 = vmatpush1.xpose.msra.mxu0 0.0
    %1187 = vmatprep.subr.mxu0 0.0
    %1188 = vmatpush1.xpose.msra.mxu0 0.0
    %1189 = vmatprep.subr.mxu0 0.0
    %1190 = vmatpush1.xpose.msra.mxu0 0.0
    %1191 = vmatprep.mubr.f32.mxu0 0.0
    %1192 = vmatmul.mubr.f32.gmra.mrb[0].mxu0 %v1123
    %v1193 = vpop.f32.mrb[0].mxu0
    %v1194 = vadd.f32 0.0, %v1193
    %v1195 = vpop.f32.mrb[0].mxu0
    %1196 = vdwg.mxu0
    %v1197 = vmul.f32 %v1194, 0.25
    %v1198 = vsel %vm701, %v1197, -inf
    %1199 = vmax.xlane.f32.xlu0 %v1198
    %v1200 = vpop.xlane.xlu0 %1199
    %v1201 = vsub.f32 %v1197, %v1200
    %v1202 = vmul.f32 %v1201, 1.442695
    %v1203 = vpow.pop %v1202
    %v1204 = vsel %vm701, %v1203, 0.0
    %1205 = vadd.xlane.f32.xlu0 %v1204
    %v1206 = vpop.xlane.xlu0 %1205
    %v1207 = vrcp.pop %v1206
    %v1208 = vmul.f32 %v1203, %v1207
    %1210 = vrot.lane.b32.xlu0 %v620, 112
    %v1211 = vpop.permute.xlu0 %1210
    %v1214 = vsel %vm701, %v1208, 0
    %1216 = vmatprep.subr.mxu0 0.0
    %1217 = vmatpush1.msra.mxu0 %v1211
    %1218 = vmatprep.subr.mxu0 0.0
    %1219 = vmatpush1.msra.mxu0 0.0
    %1220 = vmatprep.subr.mxu0 0.0
    %1221 = vmatpush1.msra.mxu0 0.0
    %1222 = vmatprep.subr.mxu0 0.0
    %1223 = vmatpush1.msra.mxu0 0.0
    %1224 = vmatprep.subr.mxu0 0.0
    %1225 = vmatpush1.msra.mxu0 0.0
    %1226 = vmatprep.subr.mxu0 0.0
    %1227 = vmatpush1.msra.mxu0 0.0
    %1228 = vmatprep.subr.mxu0 0.0
    %1229 = vmatpush1.msra.mxu0 0.0
    %1230 = vmatprep.subr.mxu0 0.0
    %1231 = vmatpush1.msra.mxu0 0.0
    %1232 = vmatprep.subr.mxu0 0.0
    %1233 = vmatpush1.msra.mxu0 0.0
    %1234 = vmatprep.subr.mxu0 0.0
    %1235 = vmatpush1.msra.mxu0 0.0
    %1236 = vmatprep.subr.mxu0 0.0
    %1237 = vmatpush1.msra.mxu0 0.0
    %1238 = vmatprep.subr.mxu0 0.0
    %1239 = vmatpush1.msra.mxu0 0.0
    %1240 = vmatprep.subr.mxu0 0.0
    %1241 = vmatpush1.msra.mxu0 0.0
    %1242 = vmatprep.subr.mxu0 0.0
    %1243 = vmatpush1.msra.mxu0 0.0
    %1244 = vmatprep.subr.mxu0 0.0
    %1245 = vmatpush1.msra.mxu0 0.0
    %1246 = vmatprep.subr.mxu0 0.0
    %1247 = vmatpush1.msra.mxu0 0.0
    %1248 = vmatprep.subr.mxu0 0.0
    %1249 = vmatpush1.msra.mxu0 0.0
    %1250 = vmatprep.subr.mxu0 0.0
    %1251 = vmatpush1.msra.mxu0 0.0
    %1252 = vmatprep.subr.mxu0 0.0
    %1253 = vmatpush1.msra.mxu0 0.0
    %1254 = vmatprep.subr.mxu0 0.0
    %1255 = vmatpush1.msra.mxu0 0.0
    %1256 = vmatprep.subr.mxu0 0.0
    %1257 = vmatpush1.msra.mxu0 0.0
    %1258 = vmatprep.subr.mxu0 0.0
    %1259 = vmatpush1.msra.mxu0 0.0
    %1260 = vmatprep.subr.mxu0 0.0
    %1261 = vmatpush1.msra.mxu0 0.0
    %1262 = vmatprep.subr.mxu0 0.0
    %1263 = vmatpush1.msra.mxu0 0.0
    %1264 = vmatprep.subr.mxu0 0.0
    %1265 = vmatpush1.msra.mxu0 0.0
    %1266 = vmatprep.subr.mxu0 0.0
    %1267 = vmatpush1.msra.mxu0 0.0
    %1268 = vmatprep.subr.mxu0 0.0
    %1269 = vmatpush1.msra.mxu0 0.0
    %1270 = vmatprep.subr.mxu0 0.0
    %1271 = vmatpush1.msra.mxu0 0.0
    %1272 = vmatprep.subr.mxu0 0.0
    %1273 = vmatpush1.msra.mxu0 0.0
    %1274 = vmatprep.subr.mxu0 0.0
    %1275 = vmatpush1.msra.mxu0 0.0
    %1276 = vmatprep.subr.mxu0 0.0
    %1277 = vmatpush1.msra.mxu0 0.0
    %1278 = vmatprep.subr.mxu0 0.0
    %1279 = vmatpush1.msra.mxu0 0.0
    %1280 = vmatprep.mubr.f32.mxu0 0.0
    %1281 = vmatmul.mubr.f32.gmra.mrb[0].mxu0 %v1214
    %v1282 = vpop.f32.mrb[0].mxu0
    %v1283 = vadd.f32 0.0, %v1282
    %v1284 = vpop.f32.mrb[0].mxu0
    %1285 = vdwg.mxu0
    %1287 = vrot.lane.b32.xlu0 %v1283, 16
    %v1288 = vpop.permute.xlu0 %1287
    %v1290 = vsel %vm623, %v1116, %v1288
    %vm1291 = vcmask 261120
    %v1293 = vsel %vm1291, %v957, 0
    %v1296 = vsel %vm1291, %v1290, 0
    %1298 = vmatprep.subr.mxu0 0.0
    %1299 = vmatpush1.msra.mxu0 %v321
    %1300 = vmatprep.subr.mxu0 0.0
    %1301 = vmatpush1.msra.mxu0 %v322
    %1302 = vmatprep.subr.mxu0 0.0
    %1303 = vmatpush1.msra.mxu0 %v323
    %1304 = vmatprep.subr.mxu0 0.0
    %1305 = vmatpush1.msra.mxu0 %v324
    %1306 = vmatprep.subr.mxu0 0.0
    %1307 = vmatpush1.msra.mxu0 0.0
    %1308 = vmatprep.subr.mxu0 0.0
    %1309 = vmatpush1.msra.mxu0 0.0
    %1310 = vmatprep.subr.mxu0 0.0
    %1311 = vmatpush1.msra.mxu0 0.0
    %1312 = vmatprep.subr.mxu0 0.0
    %1313 = vmatpush1.msra.mxu0 0.0
    %1314 = vmatprep.subr.mxu0 0.0
    %1315 = vmatpush1.msra.mxu0 0.0
    %1316 = vmatprep.subr.mxu0 0.0
    %1317 = vmatpush1.msra.mxu0 0.0
    %1318 = vmatprep.subr.mxu0 0.0
    %1319 = vmatpush1.msra.mxu0 0.0
    %1320 = vmatprep.subr.mxu0 0.0
    %1321 = vmatpush1.msra.mxu0 0.0
    %1322 = vmatprep.subr.mxu0 0.0
    %1323 = vmatpush1.msra.mxu0 0.0
    %1324 = vmatprep.subr.mxu0 0.0
    %1325 = vmatpush1.msra.mxu0 0.0
    %1326 = vmatprep.subr.mxu0 0.0
    %1327 = vmatpush1.msra.mxu0 0.0
    %1328 = vmatprep.subr.mxu0 0.0
    %1329 = vmatpush1.msra.mxu0 0.0
    %1330 = vmatprep.subr.mxu0 0.0
    %1331 = vmatpush1.msra.mxu0 0.0
    %1332 = vmatprep.subr.mxu0 0.0
    %1333 = vmatpush1.msra.mxu0 0.0
    %1334 = vmatprep.subr.mxu0 0.0
    %1335 = vmatpush1.msra.mxu0 0.0
    %1336 = vmatprep.subr.mxu0 0.0
    %1337 = vmatpush1.msra.mxu0 0.0
    %1338 = vmatprep.subr.mxu0 0.0
    %1339 = vmatpush1.msra.mxu0 0.0
    %1340 = vmatprep.subr.mxu0 0.0
    %1341 = vmatpush1.msra.mxu0 0.0
    %1342 = vmatprep.subr.mxu0 0.0
    %1343 = vmatpush1.msra.mxu0 0.0
    %1344 = vmatprep.subr.mxu0 0.0
    %1345 = vmatpush1.msra.mxu0 0.0
    %1346 = vmatprep.subr.mxu0 0.0
    %1347 = vmatpush1.msra.mxu0 0.0
    %1348 = vmatprep.subr.mxu0 0.0
    %1349 = vmatpush1.msra.mxu0 0.0
    %1350 = vmatprep.subr.mxu0 0.0
    %1351 = vmatpush1.msra.mxu0 0.0
    %1352 = vmatprep.subr.mxu0 0.0
    %1353 = vmatpush1.msra.mxu0 0.0
    %1354 = vmatprep.subr.mxu0 0.0
    %1355 = vmatpush1.msra.mxu0 0.0
    %1356 = vmatprep.subr.mxu0 0.0
    %1357 = vmatpush1.msra.mxu0 0.0
    %1358 = vmatprep.subr.mxu0 0.0
    %1359 = vmatpush1.msra.mxu0 0.0
    %1360 = vmatprep.subr.mxu0 0.0
    %1361 = vmatpush1.msra.mxu0 0.0
    %1362 = vmatprep.mubr.f32.mxu0 0.0
    %1363 = vmatmul.mubr.f32.gmra.mrb[0].mxu0 %v1293
    %v1364 = vpop.f32.mrb[0].mxu0
    %v1365 = vadd.f32 0.0, %v1364
    %v1366 = vpop.f32.mrb[0].mxu0
    %1367 = vmatprep.mubr.f32.mxu0 0.0
    %1368 = vmatmul.mubr.f32.gmra.mrb[0].mxu0 %v1296
    %v1369 = vpop.f32.mrb[0].mxu0
    %v1370 = vadd.f32 0.0, %v1369
    %v1371 = vpop.f32.mrb[0].mxu0
    %1372 = vdwg.mxu0
    %v1373 = vadd.f32 %v275, %v1365
    %v1374 = vadd.f32 %v280, %v1370
    %v1376 = vlaneseq
    %v1377 = vshrl.u32 %v1376, 7
    %v1378 = vsub.s32 0, %v1377
    %v1379 = vrot.slane %v325, %v1378
    %v1381 = vadd.f32 %v1373, %v1379
    %v1382 = vadd.f32 %v1374, %v1379
    %v1383 = vsel %vm348, %v1381, 0.0
    %1384 = vadd.xlane.f32.xlu0 %v1383
    %v1385 = vpop.xlane.xlu0 %1384
    %v1386 = vsel %vm348, %v1382, 0.0
    %1387 = vadd.xlane.f32.xlu0 %v1386
    %v1388 = vpop.xlane.xlu0 %1387
    %v1389 = vmul.f32 %v1385, %v355
    %v1390 = vmul.f32 %v1388, %v355
    %v1391 = vsub.f32 %v1381, %v1389
    %v1392 = vsub.f32 %v1382, %v1390
    %v1393 = vmul.f32 %v1391, %v1391
    %v1394 = vmul.f32 %v1392, %v1392
    %v1395 = vsel %vm348, %v1393, 0.0
    %1396 = vadd.xlane.f32.xlu0 %v1395
    %v1397 = vpop.xlane.xlu0 %1396
    %v1398 = vsel %vm348, %v1394, 0.0
    %1399 = vadd.xlane.f32.xlu0 %v1398
    %v1400 = vpop.xlane.xlu0 %1399
    %v1401 = vmul.f32 %v1397, %v355
    %v1402 = vmul.f32 %v1400, %v355
    %v1403 = vadd.f32 %v1401, 1e-05
    %v1404 = vadd.f32 %v1402, 1e-05
    %v1405 = vrsqrt.pop %v1403
    %v1406 = vrsqrt.pop %v1404
    %v1407 = vmul.f32 %v1391, %v1405
    %v1408 = vmul.f32 %v1392, %v1406
    %v1410 = vlaneseq
    %v1411 = vshrl.u32 %v1410, 7
    %v1412 = vsub.s32 0, %v1411
    %v1413 = vrot.slane %v326, %v1412
    %v1415 = vmul.f32 %v1407, %v1413
    %v1416 = vmul.f32 %v1408, %v1413
    %v1418 = vlaneseq
    %v1419 = vshrl.u32 %v1418, 7
    %v1420 = vsub.s32 0, %v1419
    %v1421 = vrot.slane %v327, %v1420
    %v1423 = vadd.f32 %v1415, %v1421
    %v1424 = vadd.f32 %v1416, %v1421
    %v1426 = vlaneseq
    %v1427 = vshrl.u32 %v1426, 7
    %v1428 = vsub.s32 0, %v1427
    %v1429 = vrot.slane %v340, %v1428
    %v1432 = vsel %vm348, %v1423, 0
    %v1435 = vsel %vm348, %v1424, 0
    %1437 = vmatprep.subr.mxu0 0.0
    %1438 = vmatpush1.msra.mxu0 %v328
    %1439 = vmatprep.subr.mxu0 0.0
    %1440 = vmatpush1.msra.mxu0 %v329
    %1441 = vmatprep.subr.mxu0 0.0
    %1442 = vmatpush1.msra.mxu0 %v330
    %1443 = vmatprep.subr.mxu0 0.0
    %1444 = vmatpush1.msra.mxu0 %v331
    %1445 = vmatprep.subr.mxu0 0.0
    %1446 = vmatpush1.msra.mxu0 %v332
    %1447 = vmatprep.subr.mxu0 0.0
    %1448 = vmatpush1.msra.mxu0 %v333
    %1449 = vmatprep.subr.mxu0 0.0
    %1450 = vmatpush1.msra.mxu0 %v334
    %1451 = vmatprep.subr.mxu0 0.0
    %1452 = vmatpush1.msra.mxu0 %v335
    %1453 = vmatprep.subr.mxu0 0.0
    %1454 = vmatpush1.msra.mxu0 %v336
    %1455 = vmatprep.subr.mxu0 0.0
    %1456 = vmatpush1.msra.mxu0 %v337
    %1457 = vmatprep.subr.mxu0 0.0
    %1458 = vmatpush1.msra.mxu0 %v338
    %1459 = vmatprep.subr.mxu0 0.0
    %1460 = vmatpush1.msra.mxu0 %v339
    %1461 = vmatprep.subr.mxu0 0.0
    %1462 = vmatpush1.msra.mxu0 0.0
    %1463 = vmatprep.subr.mxu0 0.0
    %1464 = vmatpush1.msra.mxu0 0.0
    %1465 = vmatprep.subr.mxu0 0.0
    %1466 = vmatpush1.msra.mxu0 0.0
    %1467 = vmatprep.subr.mxu0 0.0
    %1468 = vmatpush1.msra.mxu0 0.0
    %1469 = vmatprep.subr.mxu0 0.0
    %1470 = vmatpush1.msra.mxu0 0.0
    %1471 = vmatprep.subr.mxu0 0.0
    %1472 = vmatpush1.msra.mxu0 0.0
    %1473 = vmatprep.subr.mxu0 0.0
    %1474 = vmatpush1.msra.mxu0 0.0
    %1475 = vmatprep.subr.mxu0 0.0
    %1476 = vmatpush1.msra.mxu0 0.0
    %1477 = vmatprep.subr.mxu0 0.0
    %1478 = vmatpush1.msra.mxu0 0.0
    %1479 = vmatprep.subr.mxu0 0.0
    %1480 = vmatpush1.msra.mxu0 0.0
    %1481 = vmatprep.subr.mxu0 0.0
    %1482 = vmatpush1.msra.mxu0 0.0
    %1483 = vmatprep.subr.mxu0 0.0
    %1484 = vmatpush1.msra.mxu0 0.0
    %1485 = vmatprep.subr.mxu0 0.0
    %1486 = vmatpush1.msra.mxu0 0.0
    %1487 = vmatprep.subr.mxu0 0.0
    %1488 = vmatpush1.msra.mxu0 0.0
    %1489 = vmatprep.subr.mxu0 0.0
    %1490 = vmatpush1.msra.mxu0 0.0
    %1491 = vmatprep.subr.mxu0 0.0
    %1492 = vmatpush1.msra.mxu0 0.0
    %1493 = vmatprep.subr.mxu0 0.0
    %1494 = vmatpush1.msra.mxu0 0.0
    %1495 = vmatprep.subr.mxu0 0.0
    %1496 = vmatpush1.msra.mxu0 0.0
    %1497 = vmatprep.subr.mxu0 0.0
    %1498 = vmatpush1.msra.mxu0 0.0
    %1499 = vmatprep.subr.mxu0 0.0
    %1500 = vmatpush1.msra.mxu0 0.0
    %1501 = vmatprep.mubr.f32.mxu0 0.0
    %1502 = vmatmul.mubr.f32.gmra.mrb[0].mxu0 %v1432
    %v1503 = vpop.f32.mrb[0].mxu0
    %v1504 = vadd.f32 %v1429, %v1503
    %v1505 = vpop.f32.mrb[0].mxu0
    %1506 = vmatprep.mubr.f32.mxu0 0.0
    %1507 = vmatmul.mubr.f32.gmra.mrb[0].mxu0 %v1435
    %v1508 = vpop.f32.mrb[0].mxu0
    %v1509 = vadd.f32 %v1429, %v1508
    %v1510 = vpop.f32.mrb[0].mxu0
    %1511 = vdwg.mxu0
    %v1512 = vtanh.pop %v1504
    %v1513 = vtanh.pop %v1509
    %vm1514 = vcmask 392192
    %v1516 = vsel %vm1514, %v1512, 0
    %v1519 = vsel %vm1514, %v1513, 0
    %1521 = vmatprep.subr.mxu0 0.0
    %1522 = vmatpush1.msra.mxu0 %v341
    %1523 = vmatprep.subr.mxu0 0.0
    %1524 = vmatpush1.msra.mxu0 %v342
    %1525 = vmatprep.subr.mxu0 0.0
    %1526 = vmatpush1.msra.mxu0 %v343
    %1527 = vmatprep.subr.mxu0 0.0
    %1528 = vmatpush1.msra.mxu0 %v344
    %1529 = vmatprep.subr.mxu0 0.0
    %1530 = vmatpush1.msra.mxu0 %v345
    %1531 = vmatprep.subr.mxu0 0.0
    %1532 = vmatpush1.msra.mxu0 %v346
    %1533 = vmatprep.subr.mxu0 0.0
    %1534 = vmatpush1.msra.mxu0 0.0
    %1535 = vmatprep.subr.mxu0 0.0
    %1536 = vmatpush1.msra.mxu0 0.0
    %1537 = vmatprep.subr.mxu0 0.0
    %1538 = vmatpush1.msra.mxu0 0.0
    %1539 = vmatprep.subr.mxu0 0.0
    %1540 = vmatpush1.msra.mxu0 0.0
    %1541 = vmatprep.subr.mxu0 0.0
    %1542 = vmatpush1.msra.mxu0 0.0
    %1543 = vmatprep.subr.mxu0 0.0
    %1544 = vmatpush1.msra.mxu0 0.0
    %1545 = vmatprep.subr.mxu0 0.0
    %1546 = vmatpush1.msra.mxu0 0.0
    %1547 = vmatprep.subr.mxu0 0.0
    %1548 = vmatpush1.msra.mxu0 0.0
    %1549 = vmatprep.subr.mxu0 0.0
    %1550 = vmatpush1.msra.mxu0 0.0
    %1551 = vmatprep.subr.mxu0 0.0
    %1552 = vmatpush1.msra.mxu0 0.0
    %1553 = vmatprep.subr.mxu0 0.0
    %1554 = vmatpush1.msra.mxu0 0.0
    %1555 = vmatprep.subr.mxu0 0.0
    %1556 = vmatpush1.msra.mxu0 0.0
    %1557 = vmatprep.subr.mxu0 0.0
    %1558 = vmatpush1.msra.mxu0 0.0
    %1559 = vmatprep.subr.mxu0 0.0
    %1560 = vmatpush1.msra.mxu0 0.0
    %1561 = vmatprep.subr.mxu0 0.0
    %1562 = vmatpush1.msra.mxu0 0.0
    %1563 = vmatprep.subr.mxu0 0.0
    %1564 = vmatpush1.msra.mxu0 0.0
    %1565 = vmatprep.subr.mxu0 0.0
    %1566 = vmatpush1.msra.mxu0 0.0
    %1567 = vmatprep.subr.mxu0 0.0
    %1568 = vmatpush1.msra.mxu0 0.0
    %1569 = vmatprep.subr.mxu0 0.0
    %1570 = vmatpush1.msra.mxu0 0.0
    %1571 = vmatprep.subr.mxu0 0.0
    %1572 = vmatpush1.msra.mxu0 0.0
    %1573 = vmatprep.subr.mxu0 0.0
    %1574 = vmatpush1.msra.mxu0 0.0
    %1575 = vmatprep.subr.mxu0 0.0
    %1576 = vmatpush1.msra.mxu0 0.0
    %1577 = vmatprep.subr.mxu0 0.0
    %1578 = vmatpush1.msra.mxu0 0.0
    %1579 = vmatprep.subr.mxu0 0.0
    %1580 = vmatpush1.msra.mxu0 0.0
    %1581 = vmatprep.subr.mxu0 0.0
    %1582 = vmatpush1.msra.mxu0 0.0
    %1583 = vmatprep.subr.mxu0 0.0
    %1584 = vmatpush1.msra.mxu0 0.0
    %1585 = vmatprep.mubr.f32.mxu0 0.0
    %1586 = vmatmul.mubr.f32.gmra.mrb[0].mxu0 %v1516
    %v1587 = vpop.f32.mrb[0].mxu0
    %v1588 = vadd.f32 0.0, %v1587
    %v1589 = vpop.f32.mrb[0].mxu0
    %1590 = vmatprep.mubr.f32.mxu0 0.0
    %1591 = vmatmul.mubr.f32.gmra.mrb[0].mxu0 %v1519
    %v1592 = vpop.f32.mrb[0].mxu0
    %v1593 = vadd.f32 0.0, %v1592
    %v1594 = vpop.f32.mrb[0].mxu0
    %1595 = vdwg.mxu0
    %v1596 = vadd.f32 %v1381, %v1588
    %v1597 = vadd.f32 %v1382, %v1593
    %v1599 = vlaneseq
    %v1600 = vshrl.u32 %v1599, 7
    %v1601 = vsub.s32 0, %v1600
    %v1602 = vrot.slane %v347, %v1601
    %v1604 = vadd.f32 %v1596, %v1602
    %v1605 = vadd.f32 %v1597, %v1602
    %s1606 = scalar_lea.vmem %s3, 1
    %v1607 = vld [vmem:[%s1606] sm:$0x1]
    %s1608 = scalar_lea.vmem %s4, 1
    %v1609 = vld [vmem:[%s1608] sm:$0x1]
    %s1610 = scalar_lea.vmem %s5, 96
    %v1611 = vld [vmem:[%s1610] sm:$0xff]
    %v1612 = vld [vmem:[%s1610 + $0x8] sm:$0xff]
    %v1613 = vld [vmem:[%s1610 + $0x10] sm:$0xff]
    %v1614 = vld [vmem:[%s1610 + $0x18] sm:$0xff]
    %v1615 = vld [vmem:[%s1610 + $0x20] sm:$0xff]
    %v1616 = vld [vmem:[%s1610 + $0x28] sm:$0xff]
    %v1617 = vld [vmem:[%s1610 + $0x30] sm:$0xff]
    %v1618 = vld [vmem:[%s1610 + $0x38] sm:$0xff]
    %v1619 = vld [vmem:[%s1610 + $0x40] sm:$0xff]
    %v1620 = vld [vmem:[%s1610 + $0x48] sm:$0xff]
    %v1621 = vld [vmem:[%s1610 + $0x50] sm:$0xff]
    %v1622 = vld [vmem:[%s1610 + $0x58] sm:$0xff]
    %s1623 = scalar_lea.vmem %s6, 96
    %v1624 = vld [vmem:[%s1623] sm:$0xff]
    %v1625 = vld [vmem:[%s1623 + $0x8] sm:$0xff]
    %v1626 = vld [vmem:[%s1623 + $0x10] sm:$0xff]
    %v1627 = vld [vmem:[%s1623 + $0x18] sm:$0xff]
    %v1628 = vld [vmem:[%s1623 + $0x20] sm:$0xff]
    %v1629 = vld [vmem:[%s1623 + $0x28] sm:$0xff]
    %v1630 = vld [vmem:[%s1623 + $0x30] sm:$0xff]
    %v1631 = vld [vmem:[%s1623 + $0x38] sm:$0xff]
    %v1632 = vld [vmem:[%s1623 + $0x40] sm:$0xff]
    %v1633 = vld [vmem:[%s1623 + $0x48] sm:$0xff]
    %v1634 = vld [vmem:[%s1623 + $0x50] sm:$0xff]
    %v1635 = vld [vmem:[%s1623 + $0x58] sm:$0xff]
    %s1636 = scalar_lea.vmem %s7, 96
    %v1637 = vld [vmem:[%s1636] sm:$0xff]
    %v1638 = vld [vmem:[%s1636 + $0x8] sm:$0xff]
    %v1639 = vld [vmem:[%s1636 + $0x10] sm:$0xff]
    %v1640 = vld [vmem:[%s1636 + $0x18] sm:$0xff]
    %v1641 = vld [vmem:[%s1636 + $0x20] sm:$0xff]
    %v1642 = vld [vmem:[%s1636 + $0x28] sm:$0xff]
    %v1643 = vld [vmem:[%s1636 + $0x30] sm:$0xff]
    %v1644 = vld [vmem:[%s1636 + $0x38] sm:$0xff]
    %v1645 = vld [vmem:[%s1636 + $0x40] sm:$0xff]
    %v1646 = vld [vmem:[%s1636 + $0x48] sm:$0xff]
    %v1647 = vld [vmem:[%s1636 + $0x50] sm:$0xff]
    %v1648 = vld [vmem:[%s1636 + $0x58] sm:$0xff]
    %s1649 = scalar_lea.vmem %s8, 32
    %v1650 = vld [vmem:[%s1649] sm:$0xff]
    %v1651 = vld [vmem:[%s1649 + $0x8] sm:$0xff]
    %v1652 = vld [vmem:[%s1649 + $0x10] sm:$0xff]
    %v1653 = vld [vmem:[%s1649 + $0x18] sm:$0xff]
    %s1654 = scalar_lea.vmem %s9, 1
    %v1655 = vld [vmem:[%s1654] sm:$0x1]
    %s1656 = scalar_lea.vmem %s10, 1
    %v1657 = vld [vmem:[%s1656] sm:$0x1]
    %s1658 = scalar_lea.vmem %s11, 1
    %v1659 = vld [vmem:[%s1658] sm:$0x1]
    %s1660 = scalar_lea.vmem %s12, 96
    %v1661 = vld [vmem:[%s1660] sm:$0xff]
    %v1662 = vld [vmem:[%s1660 + $0x8] sm:$0xff]
    %v1663 = vld [vmem:[%s1660 + $0x10] sm:$0xff]
    %v1664 = vld [vmem:[%s1660 + $0x18] sm:$0xff]
    %v1665 = vld [vmem:[%s1660 + $0x20] sm:$0xff]
    %v1666 = vld [vmem:[%s1660 + $0x28] sm:$0xff]
    %v1667 = vld [vmem:[%s1660 + $0x30] sm:$0xff]
    %v1668 = vld [vmem:[%s1660 + $0x38] sm:$0xff]
    %v1669 = vld [vmem:[%s1660 + $0x40] sm:$0xff]
    %v1670 = vld [vmem:[%s1660 + $0x48] sm:$0xff]
    %v1671 = vld [vmem:[%s1660 + $0x50] sm:$0xff]
    %v1672 = vld [vmem:[%s1660 + $0x58] sm:$0xff]
    %s1673 = scalar_lea.vmem %s13, 1
    %v1674 = vld [vmem:[%s1673] sm:$0x1]
    %s1675 = scalar_lea.vmem %s14, 48
    %v1676 = vld [vmem:[%s1675] sm:$0xff]
    %v1677 = vld [vmem:[%s1675 + $0x8] sm:$0xff]
    %v1678 = vld [vmem:[%s1675 + $0x10] sm:$0xff]
    %v1679 = vld [vmem:[%s1675 + $0x18] sm:$0xff]
    %v1680 = vld [vmem:[%s1675 + $0x20] sm:$0xff]
    %v1681 = vld [vmem:[%s1675 + $0x28] sm:$0xff]
    %s1682 = scalar_lea.vmem %s15, 1
    %v1683 = vld [vmem:[%s1682] sm:$0x1]
    %v1684 = vsel %vm348, %v1604, 0.0
    %1685 = vadd.xlane.f32.xlu0 %v1684
    %v1686 = vpop.xlane.xlu0 %1685
    %v1687 = vsel %vm348, %v1605, 0.0
    %1688 = vadd.xlane.f32.xlu0 %v1687
    %v1689 = vpop.xlane.xlu0 %1688
    %v1690 = vmul.f32 %v1686, %v355
    %v1691 = vmul.f32 %v1689, %v355
    %v1692 = vsub.f32 %v1604, %v1690
    %v1693 = vsub.f32 %v1605, %v1691
    %v1694 = vmul.f32 %v1692, %v1692
    %v1695 = vmul.f32 %v1693, %v1693
    %v1696 = vsel %vm348, %v1694, 0.0
    %1697 = vadd.xlane.f32.xlu0 %v1696
    %v1698 = vpop.xlane.xlu0 %1697
    %v1699 = vsel %vm348, %v1695, 0.0
    %1700 = vadd.xlane.f32.xlu0 %v1699
    %v1701 = vpop.xlane.xlu0 %1700
    %v1702 = vmul.f32 %v1698, %v355
    %v1703 = vmul.f32 %v1701, %v355
    %v1704 = vadd.f32 %v1702, 1e-05
    %v1705 = vadd.f32 %v1703, 1e-05
    %v1706 = vrsqrt.pop %v1704
    %v1707 = vrsqrt.pop %v1705
    %v1708 = vmul.f32 %v1692, %v1706
    %v1709 = vmul.f32 %v1693, %v1707
    %v1711 = vlaneseq
    %v1712 = vshrl.u32 %v1711, 7
    %v1713 = vsub.s32 0, %v1712
    %v1714 = vrot.slane %v1607, %v1713
    %v1716 = vmul.f32 %v1708, %v1714
    %v1717 = vmul.f32 %v1709, %v1714
    %v1719 = vlaneseq
    %v1720 = vshrl.u32 %v1719, 7
    %v1721 = vsub.s32 0, %v1720
    %v1722 = vrot.slane %v1609, %v1721
    %v1724 = vadd.f32 %v1716, %v1722
    %v1725 = vadd.f32 %v1717, %v1722
    %v1727 = vsel %vm348, %v1724, 0
    %v1730 = vsel %vm348, %v1725, 0
    %1732 = vmatprep.subr.mxu0 0.0
    %1733 = vmatpush1.msra.mxu0 %v1611
    %1734 = vmatprep.subr.mxu0 0.0
    %1735 = vmatpush1.msra.mxu0 %v1612
    %1736 = vmatprep.subr.mxu0 0.0
    %1737 = vmatpush1.msra.mxu0 %v1613
    %1738 = vmatprep.subr.mxu0 0.0
    %1739 = vmatpush1.msra.mxu0 %v1614
    %1740 = vmatprep.subr.mxu0 0.0
    %1741 = vmatpush1.msra.mxu0 %v1615
    %1742 = vmatprep.subr.mxu0 0.0
    %1743 = vmatpush1.msra.mxu0 %v1616
    %1744 = vmatprep.subr.mxu0 0.0
    %1745 = vmatpush1.msra.mxu0 %v1617
    %1746 = vmatprep.subr.mxu0 0.0
    %1747 = vmatpush1.msra.mxu0 %v1618
    %1748 = vmatprep.subr.mxu0 0.0
    %1749 = vmatpush1.msra.mxu0 %v1619
    %1750 = vmatprep.subr.mxu0 0.0
    %1751 = vmatpush1.msra.mxu0 %v1620
    %1752 = vmatprep.subr.mxu0 0.0
    %1753 = vmatpush1.msra.mxu0 %v1621
    %1754 = vmatprep.subr.mxu0 0.0
    %1755 = vmatpush1.msra.mxu0 %v1622
    %1756 = vmatprep.subr.mxu0 0.0
    %1757 = vmatpush1.msra.mxu0 0.0
    %1758 = vmatprep.subr.mxu0 0.0
    %1759 = vmatpush1.msra.mxu0 0.0
    %1760 = vmatprep.subr.mxu0 0.0
    %1761 = vmatpush1.msra.mxu0 0.0
    %1762 = vmatprep.subr.mxu0 0.0
    %1763 = vmatpush1.msra.mxu0 0.0
    %1764 = vmatprep.subr.mxu0 0.0
    %1765 = vmatpush1.msra.mxu0 0.0
    %1766 = vmatprep.subr.mxu0 0.0
    %1767 = vmatpush1.msra.mxu0 0.0
    %1768 = vmatprep.subr.mxu0 0.0
    %1769 = vmatpush1.msra.mxu0 0.0
    %1770 = vmatprep.subr.mxu0 0.0
    %1771 = vmatpush1.msra.mxu0 0.0
    %1772 = vmatprep.subr.mxu0 0.0
    %1773 = vmatpush1.msra.mxu0 0.0
    %1774 = vmatprep.subr.mxu0 0.0
    %1775 = vmatpush1.msra.mxu0 0.0
    %1776 = vmatprep.subr.mxu0 0.0
    %1777 = vmatpush1.msra.mxu0 0.0
    %1778 = vmatprep.subr.mxu0 0.0
    %1779 = vmatpush1.msra.mxu0 0.0
    %1780 = vmatprep.subr.mxu0 0.0
    %1781 = vmatpush1.msra.mxu0 0.0
    %1782 = vmatprep.subr.mxu0 0.0
    %1783 = vmatpush1.msra.mxu0 0.0
    %1784 = vmatprep.subr.mxu0 0.0
    %1785 = vmatpush1.msra.mxu0 0.0
    %1786 = vmatprep.subr.mxu0 0.0
    %1787 = vmatpush1.msra.mxu0 0.0
    %1788 = vmatprep.subr.mxu0 0.0
    %1789 = vmatpush1.msra.mxu0 0.0
    %1790 = vmatprep.subr.mxu0 0.0
    %1791 = vmatpush1.msra.mxu0 0.0
    %1792 = vmatprep.subr.mxu0 0.0
    %1793 = vmatpush1.msra.mxu0 0.0
    %1794 = vmatprep.subr.mxu0 0.0
    %1795 = vmatpush1.msra.mxu0 0.0
    %1796 = vmatprep.mubr.f32.mxu0 0.0
    %1797 = vmatmul.mubr.f32.gmra.mrb[0].mxu0 %v1727
    %v1798 = vpop.f32.mrb[0].mxu0
    %v1799 = vadd.f32 0.0, %v1798
    %v1800 = vpop.f32.mrb[0].mxu0
    %1801 = vmatprep.mubr.f32.mxu0 0.0
    %1802 = vmatmul.mubr.f32.gmra.mrb[0].mxu0 %v1730
    %v1803 = vpop.f32.mrb[0].mxu0
    %v1804 = vadd.f32 0.0, %v1803
    %v1805 = vpop.f32.mrb[0].mxu0
    %1806 = vdwg.mxu0
    %1807 = vmatprep.subr.mxu0 0.0
    %1808 = vmatpush1.msra.mxu0 %v1624
    %1809 = vmatprep.subr.mxu0 0.0
    %1810 = vmatpush1.msra.mxu0 %v1625
    %1811 = vmatprep.subr.mxu0 0.0
    %1812 = vmatpush1.msra.mxu0 %v1626
    %1813 = vmatprep.subr.mxu0 0.0
    %1814 = vmatpush1.msra.mxu0 %v1627
    %1815 = vmatprep.subr.mxu0 0.0
    %1816 = vmatpush1.msra.mxu0 %v1628
    %1817 = vmatprep.subr.mxu0 0.0
    %1818 = vmatpush1.msra.mxu0 %v1629
    %1819 = vmatprep.subr.mxu0 0.0
    %1820 = vmatpush1.msra.mxu0 %v1630
    %1821 = vmatprep.subr.mxu0 0.0
    %1822 = vmatpush1.msra.mxu0 %v1631
    %1823 = vmatprep.subr.mxu0 0.0
    %1824 = vmatpush1.msra.mxu0 %v1632
    %1825 = vmatprep.subr.mxu0 0.0
    %1826 = vmatpush1.msra.mxu0 %v1633
    %1827 = vmatprep.subr.mxu0 0.0
    %1828 = vmatpush1.msra.mxu0 %v1634
    %1829 = vmatprep.subr.mxu0 0.0
    %1830 = vmatpush1.msra.mxu0 %v1635
    %1831 = vmatprep.subr.mxu0 0.0
    %1832 = vmatpush1.msra.mxu0 0.0
    %1833 = vmatprep.subr.mxu0 0.0
    %1834 = vmatpush1.msra.mxu0 0.0
    %1835 = vmatprep.subr.mxu0 0.0
    %1836 = vmatpush1.msra.mxu0 0.0
    %1837 = vmatprep.subr.mxu0 0.0
    %1838 = vmatpush1.msra.mxu0 0.0
    %1839 = vmatprep.subr.mxu0 0.0
    %1840 = vmatpush1.msra.mxu0 0.0
    %1841 = vmatprep.subr.mxu0 0.0
    %1842 = vmatpush1.msra.mxu0 0.0
    %1843 = vmatprep.subr.mxu0 0.0
    %1844 = vmatpush1.msra.mxu0 0.0
    %1845 = vmatprep.subr.mxu0 0.0
    %1846 = vmatpush1.msra.mxu0 0.0
    %1847 = vmatprep.subr.mxu0 0.0
    %1848 = vmatpush1.msra.mxu0 0.0
    %1849 = vmatprep.subr.mxu0 0.0
    %1850 = vmatpush1.msra.mxu0 0.0
    %1851 = vmatprep.subr.mxu0 0.0
    %1852 = vmatpush1.msra.mxu0 0.0
    %1853 = vmatprep.subr.mxu0 0.0
    %1854 = vmatpush1.msra.mxu0 0.0
    %1855 = vmatprep.subr.mxu0 0.0
    %1856 = vmatpush1.msra.mxu0 0.0
    %1857 = vmatprep.subr.mxu0 0.0
    %1858 = vmatpush1.msra.mxu0 0.0
    %1859 = vmatprep.subr.mxu0 0.0
    %1860 = vmatpush1.msra.mxu0 0.0
    %1861 = vmatprep.subr.mxu0 0.0
    %1862 = vmatpush1.msra.mxu0 0.0
    %1863 = vmatprep.subr.mxu0 0.0
    %1864 = vmatpush1.msra.mxu0 0.0
    %1865 = vmatprep.subr.mxu0 0.0
    %1866 = vmatpush1.msra.mxu0 0.0
    %1867 = vmatprep.subr.mxu0 0.0
    %1868 = vmatpush1.msra.mxu0 0.0
    %1869 = vmatprep.subr.mxu0 0.0
    %1870 = vmatpush1.msra.mxu0 0.0
    %1871 = vmatprep.mubr.f32.mxu0 0.0
    %1872 = vmatmul.mubr.f32.gmra.mrb[0].mxu0 %v1727
    %v1873 = vpop.f32.mrb[0].mxu0
    %v1874 = vadd.f32 0.0, %v1873
    %v1875 = vpop.f32.mrb[0].mxu0
    %1876 = vmatprep.mubr.f32.mxu0 0.0
    %1877 = vmatmul.mubr.f32.gmra.mrb[0].mxu0 %v1730
    %v1878 = vpop.f32.mrb[0].mxu0
    %v1879 = vadd.f32 0.0, %v1878
    %v1880 = vpop.f32.mrb[0].mxu0
    %1881 = vdwg.mxu0
    %1882 = vmatprep.subr.mxu0 0.0
    %1883 = vmatpush1.msra.mxu0 %v1637
    %1884 = vmatprep.subr.mxu0 0.0
    %1885 = vmatpush1.msra.mxu0 %v1638
    %1886 = vmatprep.subr.mxu0 0.0
    %1887 = vmatpush1.msra.mxu0 %v1639
    %1888 = vmatprep.subr.mxu0 0.0
    %1889 = vmatpush1.msra.mxu0 %v1640
    %1890 = vmatprep.subr.mxu0 0.0
    %1891 = vmatpush1.msra.mxu0 %v1641
    %1892 = vmatprep.subr.mxu0 0.0
    %1893 = vmatpush1.msra.mxu0 %v1642
    %1894 = vmatprep.subr.mxu0 0.0
    %1895 = vmatpush1.msra.mxu0 %v1643
    %1896 = vmatprep.subr.mxu0 0.0
    %1897 = vmatpush1.msra.mxu0 %v1644
    %1898 = vmatprep.subr.mxu0 0.0
    %1899 = vmatpush1.msra.mxu0 %v1645
    %1900 = vmatprep.subr.mxu0 0.0
    %1901 = vmatpush1.msra.mxu0 %v1646
    %1902 = vmatprep.subr.mxu0 0.0
    %1903 = vmatpush1.msra.mxu0 %v1647
    %1904 = vmatprep.subr.mxu0 0.0
    %1905 = vmatpush1.msra.mxu0 %v1648
    %1906 = vmatprep.subr.mxu0 0.0
    %1907 = vmatpush1.msra.mxu0 0.0
    %1908 = vmatprep.subr.mxu0 0.0
    %1909 = vmatpush1.msra.mxu0 0.0
    %1910 = vmatprep.subr.mxu0 0.0
    %1911 = vmatpush1.msra.mxu0 0.0
    %1912 = vmatprep.subr.mxu0 0.0
    %1913 = vmatpush1.msra.mxu0 0.0
    %1914 = vmatprep.subr.mxu0 0.0
    %1915 = vmatpush1.msra.mxu0 0.0
    %1916 = vmatprep.subr.mxu0 0.0
    %1917 = vmatpush1.msra.mxu0 0.0
    %1918 = vmatprep.subr.mxu0 0.0
    %1919 = vmatpush1.msra.mxu0 0.0
    %1920 = vmatprep.subr.mxu0 0.0
    %1921 = vmatpush1.msra.mxu0 0.0
    %1922 = vmatprep.subr.mxu0 0.0
    %1923 = vmatpush1.msra.mxu0 0.0
    %1924 = vmatprep.subr.mxu0 0.0
    %1925 = vmatpush1.msra.mxu0 0.0
    %1926 = vmatprep.subr.mxu0 0.0
    %1927 = vmatpush1.msra.mxu0 0.0
    %1928 = vmatprep.subr.mxu0 0.0
    %1929 = vmatpush1.msra.mxu0 0.0
    %1930 = vmatprep.subr.mxu0 0.0
    %1931 = vmatpush1.msra.mxu0 0.0
    %1932 = vmatprep.subr.mxu0 0.0
    %1933 = vmatpush1.msra.mxu0 0.0
    %1934 = vmatprep.subr.mxu0 0.0
    %1935 = vmatpush1.msra.mxu0 0.0
    %1936 = vmatprep.subr.mxu0 0.0
    %1937 = vmatpush1.msra.mxu0 0.0
    %1938 = vmatprep.subr.mxu0 0.0
    %1939 = vmatpush1.msra.mxu0 0.0
    %1940 = vmatprep.subr.mxu0 0.0
    %1941 = vmatpush1.msra.mxu0 0.0
    %1942 = vmatprep.subr.mxu0 0.0
    %1943 = vmatpush1.msra.mxu0 0.0
    %1944 = vmatprep.subr.mxu0 0.0
    %1945 = vmatpush1.msra.mxu0 0.0
    %1946 = vmatprep.mubr.f32.mxu0 0.0
    %1947 = vmatmul.mubr.f32.gmra.mrb[0].mxu0 %v1727
    %v1948 = vpop.f32.mrb[0].mxu0
    %v1949 = vadd.f32 0.0, %v1948
    %v1950 = vpop.f32.mrb[0].mxu0
    %1951 = vmatprep.mubr.f32.mxu0 0.0
    %1952 = vmatmul.mubr.f32.gmra.mrb[0].mxu0 %v1730
    %v1953 = vpop.f32.mrb[0].mxu0
    %v1954 = vadd.f32 0.0, %v1953
    %v1955 = vpop.f32.mrb[0].mxu0
    %1956 = vdwg.mxu0
    %v1958 = vsel %vm623, %v1799, 0
    %v1961 = vsel %vm623, %v1874, 0
    %1963 = vmatprep.subr.mxu0 0.0
    %1964 = vmatpush1.xpose.msra.mxu0 %v1961
    %1965 = vmatprep.subr.mxu0 0.0
    %1966 = vmatpush1.xpose.msra.mxu0 0.0
    %1967 = vmatprep.subr.mxu0 0.0
    %1968 = vmatpush1.xpose.msra.mxu0 0.0
    %1969 = vmatprep.subr.mxu0 0.0
    %1970 = vmatpush1.xpose.msra.mxu0 0.0
    %1971 = vmatprep.subr.mxu0 0.0
    %1972 = vmatpush1.xpose.msra.mxu0 0.0
    %1973 = vmatprep.subr.mxu0 0.0
    %1974 = vmatpush1.xpose.msra.mxu0 0.0
    %1975 = vmatprep.subr.mxu0 0.0
    %1976 = vmatpush1.xpose.msra.mxu0 0.0
    %1977 = vmatprep.subr.mxu0 0.0
    %1978 = vmatpush1.xpose.msra.mxu0 0.0
    %1979 = vmatprep.subr.mxu0 0.0
    %1980 = vmatpush1.xpose.msra.mxu0 0.0
    %1981 = vmatprep.subr.mxu0 0.0
    %1982 = vmatpush1.xpose.msra.mxu0 0.0
    %1983 = vmatprep.subr.mxu0 0.0
    %1984 = vmatpush1.xpose.msra.mxu0 0.0
    %1985 = vmatprep.subr.mxu0 0.0
    %1986 = vmatpush1.xpose.msra.mxu0 0.0
    %1987 = vmatprep.subr.mxu0 0.0
    %1988 = vmatpush1.xpose.msra.mxu0 0.0
    %1989 = vmatprep.subr.mxu0 0.0
    %1990 = vmatpush1.xpose.msra.mxu0 0.0
    %1991 = vmatprep.subr.mxu0 0.0
    %1992 = vmatpush1.xpose.msra.mxu0 0.0
    %1993 = vmatprep.subr.mxu0 0.0
    %1994 = vmatpush1.xpose.msra.mxu0 0.0
    %1995 = vmatprep.subr.mxu0 0.0
    %1996 = vmatpush1.xpose.msra.mxu0 0.0
    %1997 = vmatprep.subr.mxu0 0.0
    %1998 = vmatpush1.xpose.msra.mxu0 0.0
    %1999 = vmatprep.subr.mxu0 0.0
    %2000 = vmatpush1.xpose.msra.mxu0 0.0
    %2001 = vmatprep.subr.mxu0 0.0
    %2002 = vmatpush1.xpose.msra.mxu0 0.0
    %2003 = vmatprep.subr.mxu0 0.0
    %2004 = vmatpush1.xpose.msra.mxu0 0.0
    %2005 = vmatprep.subr.mxu0 0.0
    %2006 = vmatpush1.xpose.msra.mxu0 0.0
    %2007 = vmatprep.subr.mxu0 0.0
    %2008 = vmatpush1.xpose.msra.mxu0 0.0
    %2009 = vmatprep.subr.mxu0 0.0
    %2010 = vmatpush1.xpose.msra.mxu0 0.0
    %2011 = vmatprep.subr.mxu0 0.0
    %2012 = vmatpush1.xpose.msra.mxu0 0.0
    %2013 = vmatprep.subr.mxu0 0.0
    %2014 = vmatpush1.xpose.msra.mxu0 0.0
    %2015 = vmatprep.subr.mxu0 0.0
    %2016 = vmatpush1.xpose.msra.mxu0 0.0
    %2017 = vmatprep.subr.mxu0 0.0
    %2018 = vmatpush1.xpose.msra.mxu0 0.0
    %2019 = vmatprep.subr.mxu0 0.0
    %2020 = vmatpush1.xpose.msra.mxu0 0.0
    %2021 = vmatprep.subr.mxu0 0.0
    %2022 = vmatpush1.xpose.msra.mxu0 0.0
    %2023 = vmatprep.subr.mxu0 0.0
    %2024 = vmatpush1.xpose.msra.mxu0 0.0
    %2025 = vmatprep.subr.mxu0 0.0
    %2026 = vmatpush1.xpose.msra.mxu0 0.0
    %2027 = vmatprep.mubr.f32.mxu0 0.0
    %2028 = vmatmul.mubr.f32.gmra.mrb[0].mxu0 %v1958
    %v2029 = vpop.f32.mrb[0].mxu0
    %v2030 = vadd.f32 0.0, %v2029
    %v2031 = vpop.f32.mrb[0].mxu0
    %2032 = vdwg.mxu0
    %v2033 = vmul.f32 %v2030, 0.25
    %v2034 = vsel %vm701, %v2033, -inf
    %2035 = vmax.xlane.f32.xlu0 %v2034
    %v2036 = vpop.xlane.xlu0 %2035
    %v2037 = vsub.f32 %v2033, %v2036
    %v2038 = vmul.f32 %v2037, 1.442695
    %v2039 = vpow.pop %v2038
    %v2040 = vsel %vm701, %v2039, 0.0
    %2041 = vadd.xlane.f32.xlu0 %v2040
    %v2042 = vpop.xlane.xlu0 %2041
    %v2043 = vrcp.pop %v2042
    %v2044 = vmul.f32 %v2039, %v2043
    %v2046 = vsel %vm701, %v2044, 0
    %2048 = vmatprep.subr.mxu0 0.0
    %2049 = vmatpush1.msra.mxu0 %v1949
    %2050 = vmatprep.subr.mxu0 0.0
    %2051 = vmatpush1.msra.mxu0 0.0
    %2052 = vmatprep.subr.mxu0 0.0
    %2053 = vmatpush1.msra.mxu0 0.0
    %2054 = vmatprep.subr.mxu0 0.0
    %2055 = vmatpush1.msra.mxu0 0.0
    %2056 = vmatprep.subr.mxu0 0.0
    %2057 = vmatpush1.msra.mxu0 0.0
    %2058 = vmatprep.subr.mxu0 0.0
    %2059 = vmatpush1.msra.mxu0 0.0
    %2060 = vmatprep.subr.mxu0 0.0
    %2061 = vmatpush1.msra.mxu0 0.0
    %2062 = vmatprep.subr.mxu0 0.0
    %2063 = vmatpush1.msra.mxu0 0.0
    %2064 = vmatprep.subr.mxu0 0.0
    %2065 = vmatpush1.msra.mxu0 0.0
    %2066 = vmatprep.subr.mxu0 0.0
    %2067 = vmatpush1.msra.mxu0 0.0
    %2068 = vmatprep.subr.mxu0 0.0
    %2069 = vmatpush1.msra.mxu0 0.0
    %2070 = vmatprep.subr.mxu0 0.0
    %2071 = vmatpush1.msra.mxu0 0.0
    %2072 = vmatprep.subr.mxu0 0.0
    %2073 = vmatpush1.msra.mxu0 0.0
    %2074 = vmatprep.subr.mxu0 0.0
    %2075 = vmatpush1.msra.mxu0 0.0
    %2076 = vmatprep.subr.mxu0 0.0
    %2077 = vmatpush1.msra.mxu0 0.0
    %2078 = vmatprep.subr.mxu0 0.0
    %2079 = vmatpush1.msra.mxu0 0.0
    %2080 = vmatprep.subr.mxu0 0.0
    %2081 = vmatpush1.msra.mxu0 0.0
    %2082 = vmatprep.subr.mxu0 0.0
    %2083 = vmatpush1.msra.mxu0 0.0
    %2084 = vmatprep.subr.mxu0 0.0
    %2085 = vmatpush1.msra.mxu0 0.0
    %2086 = vmatprep.subr.mxu0 0.0
    %2087 = vmatpush1.msra.mxu0 0.0
    %2088 = vmatprep.subr.mxu0 0.0
    %2089 = vmatpush1.msra.mxu0 0.0
    %2090 = vmatprep.subr.mxu0 0.0
    %2091 = vmatpush1.msra.mxu0 0.0
    %2092 = vmatprep.subr.mxu0 0.0
    %2093 = vmatpush1.msra.mxu0 0.0
    %2094 = vmatprep.subr.mxu0 0.0
    %2095 = vmatpush1.msra.mxu0 0.0
    %2096 = vmatprep.subr.mxu0 0.0
    %2097 = vmatpush1.msra.mxu0 0.0
    %2098 = vmatprep.subr.mxu0 0.0
    %2099 = vmatpush1.msra.mxu0 0.0
    %2100 = vmatprep.subr.mxu0 0.0
    %2101 = vmatpush1.msra.mxu0 0.0
    %2102 = vmatprep.subr.mxu0 0.0
    %2103 = vmatpush1.msra.mxu0 0.0
    %2104 = vmatprep.subr.mxu0 0.0
    %2105 = vmatpush1.msra.mxu0 0.0
    %2106 = vmatprep.subr.mxu0 0.0
    %2107 = vmatpush1.msra.mxu0 0.0
    %2108 = vmatprep.subr.mxu0 0.0
    %2109 = vmatpush1.msra.mxu0 0.0
    %2110 = vmatprep.subr.mxu0 0.0
    %2111 = vmatpush1.msra.mxu0 0.0
    %2112 = vmatprep.mubr.f32.mxu0 0.0
    %2113 = vmatmul.mubr.f32.gmra.mrb[0].mxu0 %v2046
    %v2114 = vpop.f32.mrb[0].mxu0
    %v2115 = vadd.f32 0.0, %v2114
    %v2116 = vpop.f32.mrb[0].mxu0
    %2117 = vdwg.mxu0
    %2118 = vrot.lane.b32.xlu0 %v1799, 112
    %v2119 = vpop.permute.xlu0 %2118
    %2120 = vrot.lane.b32.xlu0 %v1874, 112
    %v2121 = vpop.permute.xlu0 %2120
    %v2122 = vsel %vm623, %v2119, 0
    %v2124 = vsel %vm623, %v2121, 0
    %2126 = vmatprep.subr.mxu0 0.0
    %2127 = vmatpush1.xpose.msra.mxu0 %v2124
    %2128 = vmatprep.subr.mxu0 0.0
    %2129 = vmatpush1.xpose.msra.mxu0 0.0
    %2130 = vmatprep.subr.mxu0 0.0
    %2131 = vmatpush1.xpose.msra.mxu0 0.0
    %2132 = vmatprep.subr.mxu0 0.0
    %2133 = vmatpush1.xpose.msra.mxu0 0.0
    %2134 = vmatprep.subr.mxu0 0.0
    %2135 = vmatpush1.xpose.msra.mxu0 0.0
    %2136 = vmatprep.subr.mxu0 0.0
    %2137 = vmatpush1.xpose.msra.mxu0 0.0
    %2138 = vmatprep.subr.mxu0 0.0
    %2139 = vmatpush1.xpose.msra.mxu0 0.0
    %2140 = vmatprep.subr.mxu0 0.0
    %2141 = vmatpush1.xpose.msra.mxu0 0.0
    %2142 = vmatprep.subr.mxu0 0.0
    %2143 = vmatpush1.xpose.msra.mxu0 0.0
    %2144 = vmatprep.subr.mxu0 0.0
    %2145 = vmatpush1.xpose.msra.mxu0 0.0
    %2146 = vmatprep.subr.mxu0 0.0
    %2147 = vmatpush1.xpose.msra.mxu0 0.0
    %2148 = vmatprep.subr.mxu0 0.0
    %2149 = vmatpush1.xpose.msra.mxu0 0.0
    %2150 = vmatprep.subr.mxu0 0.0
    %2151 = vmatpush1.xpose.msra.mxu0 0.0
    %2152 = vmatprep.subr.mxu0 0.0
    %2153 = vmatpush1.xpose.msra.mxu0 0.0
    %2154 = vmatprep.subr.mxu0 0.0
    %2155 = vmatpush1.xpose.msra.mxu0 0.0
    %2156 = vmatprep.subr.mxu0 0.0
    %2157 = vmatpush1.xpose.msra.mxu0 0.0
    %2158 = vmatprep.subr.mxu0 0.0
    %2159 = vmatpush1.xpose.msra.mxu0 0.0
    %2160 = vmatprep.subr.mxu0 0.0
    %2161 = vmatpush1.xpose.msra.mxu0 0.0
    %2162 = vmatprep.subr.mxu0 0.0
    %2163 = vmatpush1.xpose.msra.mxu0 0.0
    %2164 = vmatprep.subr.mxu0 0.0
    %2165 = vmatpush1.xpose.msra.mxu0 0.0
    %2166 = vmatprep.subr.mxu0 0.0
    %2167 = vmatpush1.xpose.msra.mxu0 0.0
    %2168 = vmatprep.subr.mxu0 0.0
    %2169 = vmatpush1.xpose.msra.mxu0 0.0
    %2170 = vmatprep.subr.mxu0 0.0
    %2171 = vmatpush1.xpose.msra.mxu0 0.0
    %2172 = vmatprep.subr.mxu0 0.0
    %2173 = vmatpush1.xpose.msra.mxu0 0.0
    %2174 = vmatprep.subr.mxu0 0.0
    %2175 = vmatpush1.xpose.msra.mxu0 0.0
    %2176 = vmatprep.subr.mxu0 0.0
    %2177 = vmatpush1.xpose.msra.mxu0 0.0
    %2178 = vmatprep.subr.mxu0 0.0
    %2179 = vmatpush1.xpose.msra.mxu0 0.0
    %2180 = vmatprep.subr.mxu0 0.0
    %2181 = vmatpush1.xpose.msra.mxu0 0.0
    %2182 = vmatprep.subr.mxu0 0.0
    %2183 = vmatpush1.xpose.msra.mxu0 0.0
    %2184 = vmatprep.subr.mxu0 0.0
    %2185 = vmatpush1.xpose.msra.mxu0 0.0
    %2186 = vmatprep.subr.mxu0 0.0
    %2187 = vmatpush1.xpose.msra.mxu0 0.0
    %2188 = vmatprep.subr.mxu0 0.0
    %2189 = vmatpush1.xpose.msra.mxu0 0.0
    %2190 = vmatprep.mubr.f32.mxu0 0.0
    %2191 = vmatmul.mubr.f32.gmra.mrb[0].mxu0 %v2122
    %v2192 = vpop.f32.mrb[0].mxu0
    %v2193 = vadd.f32 0.0, %v2192
    %v2194 = vpop.f32.mrb[0].mxu0
    %2195 = vdwg.mxu0
    %v2196 = vmul.f32 %v2193, 0.25
    %v2197 = vsel %vm701, %v2196, -inf
    %2198 = vmax.xlane.f32.xlu0 %v2197
    %v2199 = vpop.xlane.xlu0 %2198
    %v2200 = vsub.f32 %v2196, %v2199
    %v2201 = vmul.f32 %v2200, 1.442695
    %v2202 = vpow.pop %v2201
    %v2203 = vsel %vm701, %v2202, 0.0
    %2204 = vadd.xlane.f32.xlu0 %v2203
    %v2205 = vpop.xlane.xlu0 %2204
    %v2206 = vrcp.pop %v2205
    %v2207 = vmul.f32 %v2202, %v2206
    %2209 = vrot.lane.b32.xlu0 %v1949, 112
    %v2210 = vpop.permute.xlu0 %2209
    %v2213 = vsel %vm701, %v2207, 0
    %2215 = vmatprep.subr.mxu0 0.0
    %2216 = vmatpush1.msra.mxu0 %v2210
    %2217 = vmatprep.subr.mxu0 0.0
    %2218 = vmatpush1.msra.mxu0 0.0
    %2219 = vmatprep.subr.mxu0 0.0
    %2220 = vmatpush1.msra.mxu0 0.0
    %2221 = vmatprep.subr.mxu0 0.0
    %2222 = vmatpush1.msra.mxu0 0.0
    %2223 = vmatprep.subr.mxu0 0.0
    %2224 = vmatpush1.msra.mxu0 0.0
    %2225 = vmatprep.subr.mxu0 0.0
    %2226 = vmatpush1.msra.mxu0 0.0
    %2227 = vmatprep.subr.mxu0 0.0
    %2228 = vmatpush1.msra.mxu0 0.0
    %2229 = vmatprep.subr.mxu0 0.0
    %2230 = vmatpush1.msra.mxu0 0.0
    %2231 = vmatprep.subr.mxu0 0.0
    %2232 = vmatpush1.msra.mxu0 0.0
    %2233 = vmatprep.subr.mxu0 0.0
    %2234 = vmatpush1.msra.mxu0 0.0
    %2235 = vmatprep.subr.mxu0 0.0
    %2236 = vmatpush1.msra.mxu0 0.0
    %2237 = vmatprep.subr.mxu0 0.0
    %2238 = vmatpush1.msra.mxu0 0.0
    %2239 = vmatprep.subr.mxu0 0.0
    %2240 = vmatpush1.msra.mxu0 0.0
    %2241 = vmatprep.subr.mxu0 0.0
    %2242 = vmatpush1.msra.mxu0 0.0
    %2243 = vmatprep.subr.mxu0 0.0
    %2244 = vmatpush1.msra.mxu0 0.0
    %2245 = vmatprep.subr.mxu0 0.0
    %2246 = vmatpush1.msra.mxu0 0.0
    %2247 = vmatprep.subr.mxu0 0.0
    %2248 = vmatpush1.msra.mxu0 0.0
    %2249 = vmatprep.subr.mxu0 0.0
    %2250 = vmatpush1.msra.mxu0 0.0
    %2251 = vmatprep.subr.mxu0 0.0
    %2252 = vmatpush1.msra.mxu0 0.0
    %2253 = vmatprep.subr.mxu0 0.0
    %2254 = vmatpush1.msra.mxu0 0.0
    %2255 = vmatprep.subr.mxu0 0.0
    %2256 = vmatpush1.msra.mxu0 0.0
    %2257 = vmatprep.subr.mxu0 0.0
    %2258 = vmatpush1.msra.mxu0 0.0
    %2259 = vmatprep.subr.mxu0 0.0
    %2260 = vmatpush1.msra.mxu0 0.0
    %2261 = vmatprep.subr.mxu0 0.0
    %2262 = vmatpush1.msra.mxu0 0.0
    %2263 = vmatprep.subr.mxu0 0.0
    %2264 = vmatpush1.msra.mxu0 0.0
    %2265 = vmatprep.subr.mxu0 0.0
    %2266 = vmatpush1.msra.mxu0 0.0
    %2267 = vmatprep.subr.mxu0 0.0
    %2268 = vmatpush1.msra.mxu0 0.0
    %2269 = vmatprep.subr.mxu0 0.0
    %2270 = vmatpush1.msra.mxu0 0.0
    %2271 = vmatprep.subr.mxu0 0.0
    %2272 = vmatpush1.msra.mxu0 0.0
    %2273 = vmatprep.subr.mxu0 0.0
    %2274 = vmatpush1.msra.mxu0 0.0
    %2275 = vmatprep.subr.mxu0 0.0
    %2276 = vmatpush1.msra.mxu0 0.0
    %2277 = vmatprep.subr.mxu0 0.0
    %2278 = vmatpush1.msra.mxu0 0.0
    %2279 = vmatprep.mubr.f32.mxu0 0.0
    %2280 = vmatmul.mubr.f32.gmra.mrb[0].mxu0 %v2213
    %v2281 = vpop.f32.mrb[0].mxu0
    %v2282 = vadd.f32 0.0, %v2281
    %v2283 = vpop.f32.mrb[0].mxu0
    %2284 = vdwg.mxu0
    %2286 = vrot.lane.b32.xlu0 %v2282, 16
    %v2287 = vpop.permute.xlu0 %2286
    %v2289 = vsel %vm623, %v2115, %v2287
    %v2291 = vsel %vm623, %v1804, 0
    %v2294 = vsel %vm623, %v1879, 0
    %2296 = vmatprep.subr.mxu0 0.0
    %2297 = vmatpush1.xpose.msra.mxu0 %v2294
    %2298 = vmatprep.subr.mxu0 0.0
    %2299 = vmatpush1.xpose.msra.mxu0 0.0
    %2300 = vmatprep.subr.mxu0 0.0
    %2301 = vmatpush1.xpose.msra.mxu0 0.0
    %2302 = vmatprep.subr.mxu0 0.0
    %2303 = vmatpush1.xpose.msra.mxu0 0.0
    %2304 = vmatprep.subr.mxu0 0.0
    %2305 = vmatpush1.xpose.msra.mxu0 0.0
    %2306 = vmatprep.subr.mxu0 0.0
    %2307 = vmatpush1.xpose.msra.mxu0 0.0
    %2308 = vmatprep.subr.mxu0 0.0
    %2309 = vmatpush1.xpose.msra.mxu0 0.0
    %2310 = vmatprep.subr.mxu0 0.0
    %2311 = vmatpush1.xpose.msra.mxu0 0.0
    %2312 = vmatprep.subr.mxu0 0.0
    %2313 = vmatpush1.xpose.msra.mxu0 0.0
    %2314 = vmatprep.subr.mxu0 0.0
    %2315 = vmatpush1.xpose.msra.mxu0 0.0
    %2316 = vmatprep.subr.mxu0 0.0
    %2317 = vmatpush1.xpose.msra.mxu0 0.0
    %2318 = vmatprep.subr.mxu0 0.0
    %2319 = vmatpush1.xpose.msra.mxu0 0.0
    %2320 = vmatprep.subr.mxu0 0.0
    %2321 = vmatpush1.xpose.msra.mxu0 0.0
    %2322 = vmatprep.subr.mxu0 0.0
    %2323 = vmatpush1.xpose.msra.mxu0 0.0
    %2324 = vmatprep.subr.mxu0 0.0
    %2325 = vmatpush1.xpose.msra.mxu0 0.0
    %2326 = vmatprep.subr.mxu0 0.0
    %2327 = vmatpush1.xpose.msra.mxu0 0.0
    %2328 = vmatprep.subr.mxu0 0.0
    %2329 = vmatpush1.xpose.msra.mxu0 0.0
    %2330 = vmatprep.subr.mxu0 0.0
    %2331 = vmatpush1.xpose.msra.mxu0 0.0
    %2332 = vmatprep.subr.mxu0 0.0
    %2333 = vmatpush1.xpose.msra.mxu0 0.0
    %2334 = vmatprep.subr.mxu0 0.0
    %2335 = vmatpush1.xpose.msra.mxu0 0.0
    %2336 = vmatprep.subr.mxu0 0.0
    %2337 = vmatpush1.xpose.msra.mxu0 0.0
    %2338 = vmatprep.subr.mxu0 0.0
    %2339 = vmatpush1.xpose.msra.mxu0 0.0
    %2340 = vmatprep.subr.mxu0 0.0
    %2341 = vmatpush1.xpose.msra.mxu0 0.0
    %2342 = vmatprep.subr.mxu0 0.0
    %2343 = vmatpush1.xpose.msra.mxu0 0.0
    %2344 = vmatprep.subr.mxu0 0.0
    %2345 = vmatpush1.xpose.msra.mxu0 0.0
    %2346 = vmatprep.subr.mxu0 0.0
    %2347 = vmatpush1.xpose.msra.mxu0 0.0
    %2348 = vmatprep.subr.mxu0 0.0
    %2349 = vmatpush1.xpose.msra.mxu0 0.0
    %2350 = vmatprep.subr.mxu0 0.0
    %2351 = vmatpush1.xpose.msra.mxu0 0.0
    %2352 = vmatprep.subr.mxu0 0.0
    %2353 = vmatpush1.xpose.msra.mxu0 0.0
    %2354 = vmatprep.subr.mxu0 0.0
    %2355 = vmatpush1.xpose.msra.mxu0 0.0
    %2356 = vmatprep.subr.mxu0 0.0
    %2357 = vmatpush1.xpose.msra.mxu0 0.0
    %2358 = vmatprep.subr.mxu0 0.0
    %2359 = vmatpush1.xpose.msra.mxu0 0.0
    %2360 = vmatprep.mubr.f32.mxu0 0.0
    %2361 = vmatmul.mubr.f32.gmra.mrb[0].mxu0 %v2291
    %v2362 = vpop.f32.mrb[0].mxu0
    %v2363 = vadd.f32 0.0, %v2362
    %v2364 = vpop.f32.mrb[0].mxu0
    %2365 = vdwg.mxu0
    %v2366 = vmul.f32 %v2363, 0.25
    %v2367 = vsel %vm701, %v2366, -inf
    %2368 = vmax.xlane.f32.xlu0 %v2367
    %v2369 = vpop.xlane.xlu0 %2368
    %v2370 = vsub.f32 %v2366, %v2369
    %v2371 = vmul.f32 %v2370, 1.442695
    %v2372 = vpow.pop %v2371
    %v2373 = vsel %vm701, %v2372, 0.0
    %2374 = vadd.xlane.f32.xlu0 %v2373
    %v2375 = vpop.xlane.xlu0 %2374
    %v2376 = vrcp.pop %v2375
    %v2377 = vmul.f32 %v2372, %v2376
    %v2379 = vsel %vm701, %v2377, 0
    %2381 = vmatprep.subr.mxu0 0.0
    %2382 = vmatpush1.msra.mxu0 %v1954
    %2383 = vmatprep.subr.mxu0 0.0
    %2384 = vmatpush1.msra.mxu0 0.0
    %2385 = vmatprep.subr.mxu0 0.0
    %2386 = vmatpush1.msra.mxu0 0.0
    %2387 = vmatprep.subr.mxu0 0.0
    %2388 = vmatpush1.msra.mxu0 0.0
    %2389 = vmatprep.subr.mxu0 0.0
    %2390 = vmatpush1.msra.mxu0 0.0
    %2391 = vmatprep.subr.mxu0 0.0
    %2392 = vmatpush1.msra.mxu0 0.0
    %2393 = vmatprep.subr.mxu0 0.0
    %2394 = vmatpush1.msra.mxu0 0.0
    %2395 = vmatprep.subr.mxu0 0.0
    %2396 = vmatpush1.msra.mxu0 0.0
    %2397 = vmatprep.subr.mxu0 0.0
    %2398 = vmatpush1.msra.mxu0 0.0
    %2399 = vmatprep.subr.mxu0 0.0
    %2400 = vmatpush1.msra.mxu0 0.0
    %2401 = vmatprep.subr.mxu0 0.0
    %2402 = vmatpush1.msra.mxu0 0.0
    %2403 = vmatprep.subr.mxu0 0.0
    %2404 = vmatpush1.msra.mxu0 0.0
    %2405 = vmatprep.subr.mxu0 0.0
    %2406 = vmatpush1.msra.mxu0 0.0
    %2407 = vmatprep.subr.mxu0 0.0
    %2408 = vmatpush1.msra.mxu0 0.0
    %2409 = vmatprep.subr.mxu0 0.0
    %2410 = vmatpush1.msra.mxu0 0.0
    %2411 = vmatprep.subr.mxu0 0.0
    %2412 = vmatpush1.msra.mxu0 0.0
    %2413 = vmatprep.subr.mxu0 0.0
    %2414 = vmatpush1.msra.mxu0 0.0
    %2415 = vmatprep.subr.mxu0 0.0
    %2416 = vmatpush1.msra.mxu0 0.0
    %2417 = vmatprep.subr.mxu0 0.0
    %2418 = vmatpush1.msra.mxu0 0.0
    %2419 = vmatprep.subr.mxu0 0.0
    %2420 = vmatpush1.msra.mxu0 0.0
    %2421 = vmatprep.subr.mxu0 0.0
    %2422 = vmatpush1.msra.mxu0 0.0
    %2423 = vmatprep.subr.mxu0 0.0
    %2424 = vmatpush1.msra.mxu0 0.0
    %2425 = vmatprep.subr.mxu0 0.0
    %2426 = vmatpush1.msra.mxu0 0.0
    %2427 = vmatprep.subr.mxu0 0.0
    %2428 = vmatpush1.msra.mxu0 0.0
    %2429 = vmatprep.subr.mxu0 0.0
    %2430 = vmatpush1.msra.mxu0 0.0
    %2431 = vmatprep.subr.mxu0 0.0
    %2432 = vmatpush1.msra.mxu0 0.0
    %2433 = vmatprep.subr.mxu0 0.0
    %2434 = vmatpush1.msra.mxu0 0.0
    %2435 = vmatprep.subr.mxu0 0.0
    %2436 = vmatpush1.msra.mxu0 0.0
    %2437 = vmatprep.subr.mxu0 0.0
    %2438 = vmatpush1.msra.mxu0 0.0
    %2439 = vmatprep.subr.mxu0 0.0
    %2440 = vmatpush1.msra.mxu0 0.0
    %2441 = vmatprep.subr.mxu0 0.0
    %2442 = vmatpush1.msra.mxu0 0.0
    %2443 = vmatprep.subr.mxu0 0.0
    %2444 = vmatpush1.msra.mxu0 0.0
    %2445 = vmatprep.mubr.f32.mxu0 0.0
    %2446 = vmatmul.mubr.f32.gmra.mrb[0].mxu0 %v2379
    %v2447 = vpop.f32.mrb[0].mxu0
    %v2448 = vadd.f32 0.0, %v2447
    %v2449 = vpop.f32.mrb[0].mxu0
    %2450 = vdwg.mxu0
    %2451 = vrot.lane.b32.xlu0 %v1804, 112
    %v2452 = vpop.permute.xlu0 %2451
    %2453 = vrot.lane.b32.xlu0 %v1879, 112
    %v2454 = vpop.permute.xlu0 %2453
    %v2455 = vsel %vm623, %v2452, 0
    %v2457 = vsel %vm623, %v2454, 0
    %2459 = vmatprep.subr.mxu0 0.0
    %2460 = vmatpush1.xpose.msra.mxu0 %v2457
    %2461 = vmatprep.subr.mxu0 0.0
    %2462 = vmatpush1.xpose.msra.mxu0 0.0
    %2463 = vmatprep.subr.mxu0 0.0
    %2464 = vmatpush1.xpose.msra.mxu0 0.0
    %2465 = vmatprep.subr.mxu0 0.0
    %2466 = vmatpush1.xpose.msra.mxu0 0.0
    %2467 = vmatprep.subr.mxu0 0.0
    %2468 = vmatpush1.xpose.msra.mxu0 0.0
    %2469 = vmatprep.subr.mxu0 0.0
    %2470 = vmatpush1.xpose.msra.mxu0 0.0
    %2471 = vmatprep.subr.mxu0 0.0
    %2472 = vmatpush1.xpose.msra.mxu0 0.0
    %2473 = vmatprep.subr.mxu0 0.0
    %2474 = vmatpush1.xpose.msra.mxu0 0.0
    %2475 = vmatprep.subr.mxu0 0.0
    %2476 = vmatpush1.xpose.msra.mxu0 0.0
    %2477 = vmatprep.subr.mxu0 0.0
    %2478 = vmatpush1.xpose.msra.mxu0 0.0
    %2479 = vmatprep.subr.mxu0 0.0
    %2480 = vmatpush1.xpose.msra.mxu0 0.0
    %2481 = vmatprep.subr.mxu0 0.0
    %2482 = vmatpush1.xpose.msra.mxu0 0.0
    %2483 = vmatprep.subr.mxu0 0.0
    %2484 = vmatpush1.xpose.msra.mxu0 0.0
    %2485 = vmatprep.subr.mxu0 0.0
    %2486 = vmatpush1.xpose.msra.mxu0 0.0
    %2487 = vmatprep.subr.mxu0 0.0
    %2488 = vmatpush1.xpose.msra.mxu0 0.0
    %2489 = vmatprep.subr.mxu0 0.0
    %2490 = vmatpush1.xpose.msra.mxu0 0.0
    %2491 = vmatprep.subr.mxu0 0.0
    %2492 = vmatpush1.xpose.msra.mxu0 0.0
    %2493 = vmatprep.subr.mxu0 0.0
    %2494 = vmatpush1.xpose.msra.mxu0 0.0
    %2495 = vmatprep.subr.mxu0 0.0
    %2496 = vmatpush1.xpose.msra.mxu0 0.0
    %2497 = vmatprep.subr.mxu0 0.0
    %2498 = vmatpush1.xpose.msra.mxu0 0.0
    %2499 = vmatprep.subr.mxu0 0.0
    %2500 = vmatpush1.xpose.msra.mxu0 0.0
    %2501 = vmatprep.subr.mxu0 0.0
    %2502 = vmatpush1.xpose.msra.mxu0 0.0
    %2503 = vmatprep.subr.mxu0 0.0
    %2504 = vmatpush1.xpose.msra.mxu0 0.0
    %2505 = vmatprep.subr.mxu0 0.0
    %2506 = vmatpush1.xpose.msra.mxu0 0.0
    %2507 = vmatprep.subr.mxu0 0.0
    %2508 = vmatpush1.xpose.msra.mxu0 0.0
    %2509 = vmatprep.subr.mxu0 0.0
    %2510 = vmatpush1.xpose.msra.mxu0 0.0
    %2511 = vmatprep.subr.mxu0 0.0
    %2512 = vmatpush1.xpose.msra.mxu0 0.0
    %2513 = vmatprep.subr.mxu0 0.0
    %2514 = vmatpush1.xpose.msra.mxu0 0.0
    %2515 = vmatprep.subr.mxu0 0.0
    %2516 = vmatpush1.xpose.msra.mxu0 0.0
    %2517 = vmatprep.subr.mxu0 0.0
    %2518 = vmatpush1.xpose.msra.mxu0 0.0
    %2519 = vmatprep.subr.mxu0 0.0
    %2520 = vmatpush1.xpose.msra.mxu0 0.0
    %2521 = vmatprep.subr.mxu0 0.0
    %2522 = vmatpush1.xpose.msra.mxu0 0.0
    %2523 = vmatprep.mubr.f32.mxu0 0.0
    %2524 = vmatmul.mubr.f32.gmra.mrb[0].mxu0 %v2455
    %v2525 = vpop.f32.mrb[0].mxu0
    %v2526 = vadd.f32 0.0, %v2525
    %v2527 = vpop.f32.mrb[0].mxu0
    %2528 = vdwg.mxu0
    %v2529 = vmul.f32 %v2526, 0.25
    %v2530 = vsel %vm701, %v2529, -inf
    %2531 = vmax.xlane.f32.xlu0 %v2530
    %v2532 = vpop.xlane.xlu0 %2531
    %v2533 = vsub.f32 %v2529, %v2532
    %v2534 = vmul.f32 %v2533, 1.442695
    %v2535 = vpow.pop %v2534
    %v2536 = vsel %vm701, %v2535, 0.0
    %2537 = vadd.xlane.f32.xlu0 %v2536
    %v2538 = vpop.xlane.xlu0 %2537
    %v2539 = vrcp.pop %v2538
    %v2540 = vmul.f32 %v2535, %v2539
    %2542 = vrot.lane.b32.xlu0 %v1954, 112
    %v2543 = vpop.permute.xlu0 %2542
    %v2546 = vsel %vm701, %v2540, 0
    %2548 = vmatprep.subr.mxu0 0.0
    %2549 = vmatpush1.msra.mxu0 %v2543
    %2550 = vmatprep.subr.mxu0 0.0
    %2551 = vmatpush1.msra.mxu0 0.0
    %2552 = vmatprep.subr.mxu0 0.0
    %2553 = vmatpush1.msra.mxu0 0.0
    %2554 = vmatprep.subr.mxu0 0.0
    %2555 = vmatpush1.msra.mxu0 0.0
    %2556 = vmatprep.subr.mxu0 0.0
    %2557 = vmatpush1.msra.mxu0 0.0
    %2558 = vmatprep.subr.mxu0 0.0
    %2559 = vmatpush1.msra.mxu0 0.0
    %2560 = vmatprep.subr.mxu0 0.0
    %2561 = vmatpush1.msra.mxu0 0.0
    %2562 = vmatprep.subr.mxu0 0.0
    %2563 = vmatpush1.msra.mxu0 0.0
    %2564 = vmatprep.subr.mxu0 0.0
    %2565 = vmatpush1.msra.mxu0 0.0
    %2566 = vmatprep.subr.mxu0 0.0
    %2567 = vmatpush1.msra.mxu0 0.0
    %2568 = vmatprep.subr.mxu0 0.0
    %2569 = vmatpush1.msra.mxu0 0.0
    %2570 = vmatprep.subr.mxu0 0.0
    %2571 = vmatpush1.msra.mxu0 0.0
    %2572 = vmatprep.subr.mxu0 0.0
    %2573 = vmatpush1.msra.mxu0 0.0
    %2574 = vmatprep.subr.mxu0 0.0
    %2575 = vmatpush1.msra.mxu0 0.0
    %2576 = vmatprep.subr.mxu0 0.0
    %2577 = vmatpush1.msra.mxu0 0.0
    %2578 = vmatprep.subr.mxu0 0.0
    %2579 = vmatpush1.msra.mxu0 0.0
    %2580 = vmatprep.subr.mxu0 0.0
    %2581 = vmatpush1.msra.mxu0 0.0
    %2582 = vmatprep.subr.mxu0 0.0
    %2583 = vmatpush1.msra.mxu0 0.0
    %2584 = vmatprep.subr.mxu0 0.0
    %2585 = vmatpush1.msra.mxu0 0.0
    %2586 = vmatprep.subr.mxu0 0.0
    %2587 = vmatpush1.msra.mxu0 0.0
    %2588 = vmatprep.subr.mxu0 0.0
    %2589 = vmatpush1.msra.mxu0 0.0
    %2590 = vmatprep.subr.mxu0 0.0
    %2591 = vmatpush1.msra.mxu0 0.0
    %2592 = vmatprep.subr.mxu0 0.0
    %2593 = vmatpush1.msra.mxu0 0.0
    %2594 = vmatprep.subr.mxu0 0.0
    %2595 = vmatpush1.msra.mxu0 0.0
    %2596 = vmatprep.subr.mxu0 0.0
    %2597 = vmatpush1.msra.mxu0 0.0
    %2598 = vmatprep.subr.mxu0 0.0
    %2599 = vmatpush1.msra.mxu0 0.0
    %2600 = vmatprep.subr.mxu0 0.0
    %2601 = vmatpush1.msra.mxu0 0.0
    %2602 = vmatprep.subr.mxu0 0.0
    %2603 = vmatpush1.msra.mxu0 0.0
    %2604 = vmatprep.subr.mxu0 0.0
    %2605 = vmatpush1.msra.mxu0 0.0
    %2606 = vmatprep.subr.mxu0 0.0
    %2607 = vmatpush1.msra.mxu0 0.0
    %2608 = vmatprep.subr.mxu0 0.0
    %2609 = vmatpush1.msra.mxu0 0.0
    %2610 = vmatprep.subr.mxu0 0.0
    %2611 = vmatpush1.msra.mxu0 0.0
    %2612 = vmatprep.mubr.f32.mxu0 0.0
    %2613 = vmatmul.mubr.f32.gmra.mrb[0].mxu0 %v2546
    %v2614 = vpop.f32.mrb[0].mxu0
    %v2615 = vadd.f32 0.0, %v2614
    %v2616 = vpop.f32.mrb[0].mxu0
    %2617 = vdwg.mxu0
    %2619 = vrot.lane.b32.xlu0 %v2615, 16
    %v2620 = vpop.permute.xlu0 %2619
    %v2622 = vsel %vm623, %v2448, %v2620
    %v2624 = vsel %vm1291, %v2289, 0
    %v2627 = vsel %vm1291, %v2622, 0
    %2629 = vmatprep.subr.mxu0 0.0
    %2630 = vmatpush1.msra.mxu0 %v1650
    %2631 = vmatprep.subr.mxu0 0.0
    %2632 = vmatpush1.msra.mxu0 %v1651
    %2633 = vmatprep.subr.mxu0 0.0
    %2634 = vmatpush1.msra.mxu0 %v1652
    %2635 = vmatprep.subr.mxu0 0.0
    %2636 = vmatpush1.msra.mxu0 %v1653
    %2637 = vmatprep.subr.mxu0 0.0
    %2638 = vmatpush1.msra.mxu0 0.0
    %2639 = vmatprep.subr.mxu0 0.0
    %2640 = vmatpush1.msra.mxu0 0.0
    %2641 = vmatprep.subr.mxu0 0.0
    %2642 = vmatpush1.msra.mxu0 0.0
    %2643 = vmatprep.subr.mxu0 0.0
    %2644 = vmatpush1.msra.mxu0 0.0
    %2645 = vmatprep.subr.mxu0 0.0
    %2646 = vmatpush1.msra.mxu0 0.0
    %2647 = vmatprep.subr.mxu0 0.0
    %2648 = vmatpush1.msra.mxu0 0.0
    %2649 = vmatprep.subr.mxu0 0.0
    %2650 = vmatpush1.msra.mxu0 0.0
    %2651 = vmatprep.subr.mxu0 0.0
    %2652 = vmatpush1.msra.mxu0 0.0
    %2653 = vmatprep.subr.mxu0 0.0
    %2654 = vmatpush1.msra.mxu0 0.0
    %2655 = vmatprep.subr.mxu0 0.0
    %2656 = vmatpush1.msra.mxu0 0.0
    %2657 = vmatprep.subr.mxu0 0.0
    %2658 = vmatpush1.msra.mxu0 0.0
    %2659 = vmatprep.subr.mxu0 0.0
    %2660 = vmatpush1.msra.mxu0 0.0
    %2661 = vmatprep.subr.mxu0 0.0
    %2662 = vmatpush1.msra.mxu0 0.0
    %2663 = vmatprep.subr.mxu0 0.0
    %2664 = vmatpush1.msra.mxu0 0.0
    %2665 = vmatprep.subr.mxu0 0.0
    %2666 = vmatpush1.msra.mxu0 0.0
    %2667 = vmatprep.subr.mxu0 0.0
    %2668 = vmatpush1.msra.mxu0 0.0
    %2669 = vmatprep.subr.mxu0 0.0
    %2670 = vmatpush1.msra.mxu0 0.0
    %2671 = vmatprep.subr.mxu0 0.0
    %2672 = vmatpush1.msra.mxu0 0.0
    %2673 = vmatprep.subr.mxu0 0.0
    %2674 = vmatpush1.msra.mxu0 0.0
    %2675 = vmatprep.subr.mxu0 0.0
    %2676 = vmatpush1.msra.mxu0 0.0
    %2677 = vmatprep.subr.mxu0 0.0
    %2678 = vmatpush1.msra.mxu0 0.0
    %2679 = vmatprep.subr.mxu0 0.0
    %2680 = vmatpush1.msra.mxu0 0.0
    %2681 = vmatprep.subr.mxu0 0.0
    %2682 = vmatpush1.msra.mxu0 0.0
    %2683 = vmatprep.subr.mxu0 0.0
    %2684 = vmatpush1.msra.mxu0 0.0
    %2685 = vmatprep.subr.mxu0 0.0
    %2686 = vmatpush1.msra.mxu0 0.0
    %2687 = vmatprep.subr.mxu0 0.0
    %2688 = vmatpush1.msra.mxu0 0.0
    %2689 = vmatprep.subr.mxu0 0.0
    %2690 = vmatpush1.msra.mxu0 0.0
    %2691 = vmatprep.subr.mxu0 0.0
    %2692 = vmatpush1.msra.mxu0 0.0
    %2693 = vmatprep.mubr.f32.mxu0 0.0
    %2694 = vmatmul.mubr.f32.gmra.mrb[0].mxu0 %v2624
    %v2695 = vpop.f32.mrb[0].mxu0
    %v2696 = vadd.f32 0.0, %v2695
    %v2697 = vpop.f32.mrb[0].mxu0
    %2698 = vmatprep.mubr.f32.mxu0 0.0
    %2699 = vmatmul.mubr.f32.gmra.mrb[0].mxu0 %v2627
    %v2700 = vpop.f32.mrb[0].mxu0
    %v2701 = vadd.f32 0.0, %v2700
    %v2702 = vpop.f32.mrb[0].mxu0
    %2703 = vdwg.mxu0
    %v2704 = vadd.f32 %v1604, %v2696
    %v2705 = vadd.f32 %v1605, %v2701
    %v2707 = vlaneseq
    %v2708 = vshrl.u32 %v2707, 7
    %v2709 = vsub.s32 0, %v2708
    %v2710 = vrot.slane %v1655, %v2709
    %v2712 = vadd.f32 %v2704, %v2710
    %v2713 = vadd.f32 %v2705, %v2710
    %v2714 = vsel %vm348, %v2712, 0.0
    %2715 = vadd.xlane.f32.xlu0 %v2714
    %v2716 = vpop.xlane.xlu0 %2715
    %v2717 = vsel %vm348, %v2713, 0.0
    %2718 = vadd.xlane.f32.xlu0 %v2717
    %v2719 = vpop.xlane.xlu0 %2718
    %v2720 = vmul.f32 %v2716, %v355
    %v2721 = vmul.f32 %v2719, %v355
    %v2722 = vsub.f32 %v2712, %v2720
    %v2723 = vsub.f32 %v2713, %v2721
    %v2724 = vmul.f32 %v2722, %v2722
    %v2725 = vmul.f32 %v2723, %v2723
    %v2726 = vsel %vm348, %v2724, 0.0
    %2727 = vadd.xlane.f32.xlu0 %v2726
    %v2728 = vpop.xlane.xlu0 %2727
    %v2729 = vsel %vm348, %v2725, 0.0
    %2730 = vadd.xlane.f32.xlu0 %v2729
    %v2731 = vpop.xlane.xlu0 %2730
    %v2732 = vmul.f32 %v2728, %v355
    %v2733 = vmul.f32 %v2731, %v355
    %v2734 = vadd.f32 %v2732, 1e-05
    %v2735 = vadd.f32 %v2733, 1e-05
    %v2736 = vrsqrt.pop %v2734
    %v2737 = vrsqrt.pop %v2735
    %v2738 = vmul.f32 %v2722, %v2736
    %v2739 = vmul.f32 %v2723, %v2737
    %v2741 = vlaneseq
    %v2742 = vshrl.u32 %v2741, 7
    %v2743 = vsub.s32 0, %v2742
    %v2744 = vrot.slane %v1657, %v2743
    %v2746 = vmul.f32 %v2738, %v2744
    %v2747 = vmul.f32 %v2739, %v2744
    %v2749 = vlaneseq
    %v2750 = vshrl.u32 %v2749, 7
    %v2751 = vsub.s32 0, %v2750
    %v2752 = vrot.slane %v1659, %v2751
    %v2754 = vadd.f32 %v2746, %v2752
    %v2755 = vadd.f32 %v2747, %v2752
    %v2757 = vlaneseq
    %v2758 = vshrl.u32 %v2757, 7
    %v2759 = vsub.s32 0, %v2758
    %v2760 = vrot.slane %v1674, %v2759
    %v2763 = vsel %vm348, %v2754, 0
    %v2766 = vsel %vm348, %v2755, 0
    %2768 = vmatprep.subr.mxu0 0.0
    %2769 = vmatpush1.msra.mxu0 %v1661
    %2770 = vmatprep.subr.mxu0 0.0
    %2771 = vmatpush1.msra.mxu0 %v1662
    %2772 = vmatprep.subr.mxu0 0.0
    %2773 = vmatpush1.msra.mxu0 %v1663
    %2774 = vmatprep.subr.mxu0 0.0
    %2775 = vmatpush1.msra.mxu0 %v1664
    %2776 = vmatprep.subr.mxu0 0.0
    %2777 = vmatpush1.msra.mxu0 %v1665
    %2778 = vmatprep.subr.mxu0 0.0
    %2779 = vmatpush1.msra.mxu0 %v1666
    %2780 = vmatprep.subr.mxu0 0.0
    %2781 = vmatpush1.msra.mxu0 %v1667
    %2782 = vmatprep.subr.mxu0 0.0
    %2783 = vmatpush1.msra.mxu0 %v1668
    %2784 = vmatprep.subr.mxu0 0.0
    %2785 = vmatpush1.msra.mxu0 %v1669
    %2786 = vmatprep.subr.mxu0 0.0
    %2787 = vmatpush1.msra.mxu0 %v1670
    %2788 = vmatprep.subr.mxu0 0.0
    %2789 = vmatpush1.msra.mxu0 %v1671
    %2790 = vmatprep.subr.mxu0 0.0
    %2791 = vmatpush1.msra.mxu0 %v1672
    %2792 = vmatprep.subr.mxu0 0.0
    %2793 = vmatpush1.msra.mxu0 0.0
    %2794 = vmatprep.subr.mxu0 0.0
    %2795 = vmatpush1.msra.mxu0 0.0
    %2796 = vmatprep.subr.mxu0 0.0
    %2797 = vmatpush1.msra.mxu0 0.0
    %2798 = vmatprep.subr.mxu0 0.0
    %2799 = vmatpush1.msra.mxu0 0.0
    %2800 = vmatprep.subr.mxu0 0.0
    %2801 = vmatpush1.msra.mxu0 0.0
    %2802 = vmatprep.subr.mxu0 0.0
    %2803 = vmatpush1.msra.mxu0 0.0
    %2804 = vmatprep.subr.mxu0 0.0
    %2805 = vmatpush1.msra.mxu0 0.0
    %2806 = vmatprep.subr.mxu0 0.0
    %2807 = vmatpush1.msra.mxu0 0.0
    %2808 = vmatprep.subr.mxu0 0.0
    %2809 = vmatpush1.msra.mxu0 0.0
    %2810 = vmatprep.subr.mxu0 0.0
    %2811 = vmatpush1.msra.mxu0 0.0
    %2812 = vmatprep.subr.mxu0 0.0
    %2813 = vmatpush1.msra.mxu0 0.0
    %2814 = vmatprep.subr.mxu0 0.0
    %2815 = vmatpush1.msra.mxu0 0.0
    %2816 = vmatprep.subr.mxu0 0.0
    %2817 = vmatpush1.msra.mxu0 0.0
    %2818 = vmatprep.subr.mxu0 0.0
    %2819 = vmatpush1.msra.mxu0 0.0
    %2820 = vmatprep.subr.mxu0 0.0
    %2821 = vmatpush1.msra.mxu0 0.0
    %2822 = vmatprep.subr.mxu0 0.0
    %2823 = vmatpush1.msra.mxu0 0.0
    %2824 = vmatprep.subr.mxu0 0.0
    %2825 = vmatpush1.msra.mxu0 0.0
    %2826 = vmatprep.subr.mxu0 0.0
    %2827 = vmatpush1.msra.mxu0 0.0
    %2828 = vmatprep.subr.mxu0 0.0
    %2829 = vmatpush1.msra.mxu0 0.0
    %2830 = vmatprep.subr.mxu0 0.0
    %2831 = vmatpush1.msra.mxu0 0.0
    %2832 = vmatprep.mubr.f32.mxu0 0.0
    %2833 = vmatmul.mubr.f32.gmra.mrb[0].mxu0 %v2763
    %v2834 = vpop.f32.mrb[0].mxu0
    %v2835 = vadd.f32 %v2760, %v2834
    %v2836 = vpop.f32.mrb[0].mxu0
    %2837 = vmatprep.mubr.f32.mxu0 0.0
    %2838 = vmatmul.mubr.f32.gmra.mrb[0].mxu0 %v2766
    %v2839 = vpop.f32.mrb[0].mxu0
    %v2840 = vadd.f32 %v2760, %v2839
    %v2841 = vpop.f32.mrb[0].mxu0
    %2842 = vdwg.mxu0
    %v2843 = vtanh.pop %v2835
    %v2844 = vtanh.pop %v2840
    %v2846 = vsel %vm1514, %v2843, 0
    %v2849 = vsel %vm1514, %v2844, 0
    %2851 = vmatprep.subr.mxu0 0.0
    %2852 = vmatpush1.msra.mxu0 %v1676
    %2853 = vmatprep.subr.mxu0 0.0
    %2854 = vmatpush1.msra.mxu0 %v1677
    %2855 = vmatprep.subr.mxu0 0.0
    %2856 = vmatpush1.msra.mxu0 %v1678
    %2857 = vmatprep.subr.mxu0 0.0
    %2858 = vmatpush1.msra.mxu0 %v1679
    %2859 = vmatprep.subr.mxu0 0.0
    %2860 = vmatpush1.msra.mxu0 %v1680
    %2861 = vmatprep.subr.mxu0 0.0
    %2862 = vmatpush1.msra.mxu0 %v1681
    %2863 = vmatprep.subr.mxu0 0.0
    %2864 = vmatpush1.msra.mxu0 0.0
    %2865 = vmatprep.subr.mxu0 0.0
    %2866 = vmatpush1.msra.mxu0 0.0
    %2867 = vmatprep.subr.mxu0 0.0
    %2868 = vmatpush1.msra.mxu0 0.0
    %2869 = vmatprep.subr.mxu0 0.0
    %2870 = vmatpush1.msra.mxu0 0.0
    %2871 = vmatprep.subr.mxu0 0.0
    %2872 = vmatpush1.msra.mxu0 0.0
    %2873 = vmatprep.subr.mxu0 0.0
    %2874 = vmatpush1.msra.mxu0 0.0
    %2875 = vmatprep.subr.mxu0 0.0
    %2876 = vmatpush1.msra.mxu0 0.0
    %2877 = vmatprep.subr.mxu0 0.0
    %2878 = vmatpush1.msra.mxu0 0.0
    %2879 = vmatprep.subr.mxu0 0.0
    %2880 = vmatpush1.msra.mxu0 0.0
    %2881 = vmatprep.subr.mxu0 0.0
    %2882 = vmatpush1.msra.mxu0 0.0
    %2883 = vmatprep.subr.mxu0 0.0
    %2884 = vmatpush1.msra.mxu0 0.0
    %2885 = vmatprep.subr.mxu0 0.0
    %2886 = vmatpush1.msra.mxu0 0.0
    %2887 = vmatprep.subr.mxu0 0.0
    %2888 = vmatpush1.msra.mxu0 0.0
    %2889 = vmatprep.subr.mxu0 0.0
    %2890 = vmatpush1.msra.mxu0 0.0
    %2891 = vmatprep.subr.mxu0 0.0
    %2892 = vmatpush1.msra.mxu0 0.0
    %2893 = vmatprep.subr.mxu0 0.0
    %2894 = vmatpush1.msra.mxu0 0.0
    %2895 = vmatprep.subr.mxu0 0.0
    %2896 = vmatpush1.msra.mxu0 0.0
    %2897 = vmatprep.subr.mxu0 0.0
    %2898 = vmatpush1.msra.mxu0 0.0
    %2899 = vmatprep.subr.mxu0 0.0
    %2900 = vmatpush1.msra.mxu0 0.0
    %2901 = vmatprep.subr.mxu0 0.0
    %2902 = vmatpush1.msra.mxu0 0.0
    %2903 = vmatprep.subr.mxu0 0.0
    %2904 = vmatpush1.msra.mxu0 0.0
    %2905 = vmatprep.subr.mxu0 0.0
    %2906 = vmatpush1.msra.mxu0 0.0
    %2907 = vmatprep.subr.mxu0 0.0
    %2908 = vmatpush1.msra.mxu0 0.0
    %2909 = vmatprep.subr.mxu0 0.0
    %2910 = vmatpush1.msra.mxu0 0.0
    %2911 = vmatprep.subr.mxu0 0.0
    %2912 = vmatpush1.msra.mxu0 0.0
    %2913 = vmatprep.subr.mxu0 0.0
    %2914 = vmatpush1.msra.mxu0 0.0
    %2915 = vmatprep.mubr.f32.mxu0 0.0
    %2916 = vmatmul.mubr.f32.gmra.mrb[0].mxu0 %v2846
    %v2917 = vpop.f32.mrb[0].mxu0
    %v2918 = vadd.f32 0.0, %v2917
    %v2919 = vpop.f32.mrb[0].mxu0
    %2920 = vmatprep.mubr.f32.mxu0 0.0
    %2921 = vmatmul.mubr.f32.gmra.mrb[0].mxu0 %v2849
    %v2922 = vpop.f32.mrb[0].mxu0
    %v2923 = vadd.f32 0.0, %v2922
    %v2924 = vpop.f32.mrb[0].mxu0
    %2925 = vdwg.mxu0
    %v2926 = vadd.f32 %v2712, %v2918
    %v2927 = vadd.f32 %v2713, %v2923
    %v2929 = vlaneseq
    %v2930 = vshrl.u32 %v2929, 7
    %v2931 = vsub.s32 0, %v2930
    %v2932 = vrot.slane %v1683, %v2931
    %v2934 = vadd.f32 %v2926, %v2932
    %v2935 = vadd.f32 %v2927, %v2932
    %v2936 = vld [vmem:[%s16] sm:$0x1]
    %v2937 = vld [vmem:[%s17] sm:$0x1]
    %v2938 = vsel %vm348, %v2934, 0.0
    %2939 = vadd.xlane.f32.xlu0 %v2938
    %v2940 = vpop.xlane.xlu0 %2939
    %v2941 = vsel %vm348, %v2935, 0.0
    %2942 = vadd.xlane.f32.xlu0 %v2941
    %v2943 = vpop.xlane.xlu0 %2942
    %v2944 = vmul.f32 %v2940, %v355
    %v2945 = vmul.f32 %v2943, %v355
    %v2946 = vsub.f32 %v2934, %v2944
    %v2947 = vsub.f32 %v2935, %v2945
    %v2948 = vmul.f32 %v2946, %v2946
    %v2949 = vmul.f32 %v2947, %v2947
    %v2950 = vsel %vm348, %v2948, 0.0
    %2951 = vadd.xlane.f32.xlu0 %v2950
    %v2952 = vpop.xlane.xlu0 %2951
    %v2953 = vsel %vm348, %v2949, 0.0
    %2954 = vadd.xlane.f32.xlu0 %v2953
    %v2955 = vpop.xlane.xlu0 %2954
    %v2956 = vmul.f32 %v2952, %v355
    %v2957 = vmul.f32 %v2955, %v355
    %v2958 = vadd.f32 %v2956, 1e-05
    %v2959 = vadd.f32 %v2957, 1e-05
    %v2960 = vrsqrt.pop %v2958
    %v2961 = vrsqrt.pop %v2959
    %v2962 = vmul.f32 %v2946, %v2960
    %v2963 = vmul.f32 %v2947, %v2961
    %v2965 = vlaneseq
    %v2966 = vshrl.u32 %v2965, 7
    %v2967 = vsub.s32 0, %v2966
    %v2968 = vrot.slane %v2936, %v2967
    %v2970 = vmul.f32 %v2962, %v2968
    %v2971 = vmul.f32 %v2963, %v2968
    %v2973 = vlaneseq
    %v2974 = vshrl.u32 %v2973, 7
    %v2975 = vsub.s32 0, %v2974
    %v2976 = vrot.slane %v2937, %v2975
    %v2978 = vadd.f32 %v2970, %v2976
    %v2979 = vadd.f32 %v2971, %v2976
    %2980 = vst.msk [vmem:[#allocation2] sm:$0xff] %vm348, %v2978
    %2981 = vst.msk [vmem:[#allocation2 + $0x8] sm:$0xff] %vm348, %v2979
    // Predicated region
    $region74: #{tpu_custom_call.1} parent=1 // pred_check
      _
    $region75: #{tpu_custom_call.1} parent=1 // pred_check_branch
      %2983 = sbr.rel (0) target = $region77
    $region76: #{tpu_custom_call.1} parent=1 // pred_region
      %s2985 = ssub.s32 256, 256
      %2986 = vsyncadd [#allocation3], %s2985
      %s2987 = sshll.u32 [#allocation2], 4
      %s2988 = int_to_ptr.vmem [resolvable:$true] %s2987
      %2993 = dma.vmem_to_hbm [thread:$0]  %s2988, 256, %s18, [#allocation3], 128, 128, 8
    $region77: #{tpu_custom_call.1} parent=1 // pred_fallthru
      _
    // Predicated region
    $region78: #{tpu_custom_call.1} parent=1 // pred_check
      _
    $region79: #{tpu_custom_call.1} parent=1 // pred_check_branch
      %2995 = sbr.rel (0) target = $region81
    $region80: #{tpu_custom_call.1} parent=1 // pred_region
      %2996 = dma.done [#allocation3], 256
    $region81: #{tpu_custom_call.1} parent=1 // pred_fallthru
      _
    %2997 = vsyncpa [#allocation3], 1

</llo_original>
